<compile_context>
chip_gen: v5e
topology: v5e:2x2
jax: 0.10.0
libtpu: 0.0.40
codegen_flags: <defaults>
</compile_context>

<pallas_src>
import functools
import math

import jax
import jax.numpy as jnp
from jax import lax
from jax.experimental import pallas as pl
from jax.experimental.pallas import tpu as pltpu


# --------------------------- Model configuration ---------------------------

CFG = dict(
    vocab_size=100,
    type_vocab_size=2,
    max_position=16,
    hidden=128,          # small stand-in for BERT-base's 768
    num_layers=2,
    num_heads=2,
    head_dim=64,
    intermediate=256,
    num_classes=3,
    head_pad=128,        # lane-dense padded classifier output width
)

LN_EPS = 1e-12


# --------------------------- in-kernel helpers ------------------------------

def _layernorm_f32(x, g, b, eps):
    mu = jnp.mean(x, axis=-1, keepdims=True)
    xc = x - mu
    var = jnp.mean(xc * xc, axis=-1, keepdims=True)
    return xc * jax.lax.rsqrt(var + eps) * g + b


def _gelu_f32(x):
    c = math.sqrt(2.0 / math.pi)
    return 0.5 * x * (1.0 + jnp.tanh(c * (x + 0.044715 * x * x * x)))


# ----------------------- whole-model fused kernel ---------------------------

def _bert_fused_kernel(emb_ref, mask_ref, embg_ref, embb_ref,
                       wqkv_ref, bqkv_ref, wo_ref, bo_ref,
                       ln1g_ref, ln1b_ref, w1_ref, b1_ref, w2_ref, b2_ref,
                       ln2g_ref, ln2b_ref,
                       pw_ref, pb_ref, cw_ref, cb_ref,
                       o_ref, *, batch, seq, num_layers, num_heads, head_dim, eps):
    bf16 = jnp.bfloat16
    H = emb_ref.shape[-1]

    # ---- embedding LayerNorm; residual stream stays f32 in VMEM ----
    h = _layernorm_f32(emb_ref[...].astype(jnp.float32),
                       embg_ref[...], embb_ref[...], eps)          # (B*S, H) f32

    # ---- additive key mask, broadcast to (S,S) once per sequence (hoisted) ----
    mask = mask_ref[...]                                           # (B, S) f32
    bias = [jnp.broadcast_to(mask[b:b + 1, :], (seq, seq)) for b in range(batch)]

    for l in range(num_layers):
        wqkv = wqkv_ref[l]; bqkv = bqkv_ref[l]                     # (H,3H) bf16, (1,3H) f32
        wo = wo_ref[l]; bo = bo_ref[l]
        ln1g = ln1g_ref[l]; ln1b = ln1b_ref[l]
        w1 = w1_ref[l]; b1 = b1_ref[l]
        w2 = w2_ref[l]; b2 = b2_ref[l]
        ln2g = ln2g_ref[l]; ln2b = ln2b_ref[l]

        # ---- fused QKV projection on the full (B*S, H) slab (Q pre-scaled) ----
        qkv = jnp.dot(h.astype(bf16), wqkv,
                      preferred_element_type=jnp.float32) + bqkv   # (B*S, 3H) f32

        # ---- per-sequence multi-head attention; per-head accumulation into W_O ----
        attn_rows = []
        for b in range(batch):
            r0 = b * seq
            acc = None
            for hd in range(num_heads):
                c0 = hd * head_dim
                q = qkv[r0:r0 + seq, c0:c0 + head_dim].astype(bf16)
                k = qkv[r0:r0 + seq, H + c0:H + c0 + head_dim].astype(bf16)
                v = qkv[r0:r0 + seq, 2 * H + c0:2 * H + c0 + head_dim].astype(bf16)
                # contract on head_dim without materializing K^T
                s = lax.dot_general(q, k, (((1,), (1,)), ((), ())),
                                    preferred_element_type=jnp.float32)
                s = s + bias[b]                                    # (S, S) f32
                m = jnp.max(s, axis=-1, keepdims=True)
                p = jnp.exp(s - m)
                p = p * pl.reciprocal(jnp.sum(p, axis=-1, keepdims=True), approx=True)
                ctx = jnp.dot(p.astype(bf16), v,
                              preferred_element_type=jnp.float32)  # (S, Dh) f32
                part = jnp.dot(ctx.astype(bf16), wo[c0:c0 + head_dim, :],
                               preferred_element_type=jnp.float32)  # (S, H) f32
                acc = part if acc is None else acc + part
            attn_rows.append(acc)
        attn = jnp.concatenate(attn_rows, axis=0) + bo             # (B*S, H) f32

        # ---- output projection epilogue: residual + LayerNorm ----
        h1 = _layernorm_f32(attn + h, ln1g, ln1b, eps)

        # ---- feed-forward (GELU) + residual + LayerNorm on the full slab ----
        f = jnp.dot(h1.astype(bf16), w1, preferred_element_type=jnp.float32) + b1
        f = _gelu_f32(f)
        f2 = jnp.dot(f.astype(bf16), w2, preferred_element_type=jnp.float32) + b2
        h = _layernorm_f32(f2 + h1, ln2g, ln2b, eps)

    # ---- pooler on [CLS] rows + classifier head (Dropout identity, eval) ----
    cls = jnp.concatenate([h[b * seq:b * seq + 1, :] for b in range(batch)], axis=0)
    pooled = jnp.tanh(jnp.dot(cls.astype(bf16), pw_ref[...],
                              preferred_element_type=jnp.float32) + pb_ref[...])
    logits = jnp.dot(pooled.astype(bf16), cw_ref[...],
                     preferred_element_type=jnp.float32) + cb_ref[...]
    o_ref[...] = jnp.maximum(logits, 0.0).astype(o_ref.dtype)      # (B, Np) lane-dense


def fused_bert_pallas(emb, mask_bias, kp, cfg):
    """emb: (B*S, H) f32 embedding sums (pre-LN); mask_bias: (B, S) f32 additive mask."""
    BS, H = emb.shape
    B, S = mask_bias.shape
    L, I, Np = cfg["num_layers"], cfg["intermediate"], cfg["head_pad"]

    def full(shape):
        nd = len(shape)
        return pl.BlockSpec(shape, lambda *_: (0,) * nd)   # whole array, VMEM-resident

    kernel = functools.partial(
        _bert_fused_kernel,
        batch=B, seq=S, num_layers=L,
        num_heads=cfg["num_heads"], head_dim=cfg["head_dim"], eps=LN_EPS)

    return pl.pallas_call(
        kernel,
        out_shape=jax.ShapeDtypeStruct((B, Np), jnp.float32),
        grid=(1,),
        in_specs=[
            full((BS, H)),                                  # embedding sums
            full((B, S)),                                   # additive key mask
            full((1, H)), full((1, H)),                     # embedding LN gamma/beta
            full((L, H, 3 * H)), full((L, 1, 3 * H)),       # wqkv (Q pre-scaled), bqkv
            full((L, H, H)), full((L, 1, H)),               # wo, bo
            full((L, 1, H)), full((L, 1, H)),               # ln1 gamma/beta
            full((L, H, I)), full((L, 1, I)),               # w1, b1
            full((L, I, H)), full((L, 1, H)),               # w2, b2
            full((L, 1, H)), full((L, 1, H)),               # ln2 gamma/beta
            full((H, H)), full((1, H)),                     # pooler W, b
            full((H, Np)), full((1, Np)),                   # padded classifier W, b
        ],
        out_specs=full((B, Np)),
        compiler_params=pltpu.CompilerParams(
            dimension_semantics=("arbitrary",)),
    )(emb, mask_bias,
      kp["emb_ln_g"], kp["emb_ln_b"],
      kp["wqkv"], kp["bqkv"], kp["wo"], kp["bo"],
      kp["ln1_g"], kp["ln1_b"], kp["w1"], kp["b1"], kp["w2"], kp["b2"],
      kp["ln2_g"], kp["ln2_b"],
      kp["pool_w"], kp["pool_b"], kp["cls_w_pad"], kp["cls_b_pad"])


# ------------------------------ parameters -----------------------------------

def init_params(key, cfg):
    """Deterministic synthetic parameters.  Matmul weights are bf16 (MXU-native);
    biases and LayerNorm params stay f32 for the VPU epilogues."""
    H, I = cfg["hidden"], cfg["intermediate"]
    NC, NP = cfg["num_classes"], cfg["head_pad"]
    wdt = jnp.bfloat16

    def nrm(k, shape, dtype=wdt):
        return (0.02 * jax.random.normal(k, shape, dtype=jnp.float32)).astype(dtype)

    keys = iter(jax.random.split(key, 64))
    cls_w = nrm(next(keys), (H, NC))
    cls_w_pad = jnp.zeros((H, NP), wdt).at[:, :NC].set(cls_w)

    p = {
        "word_emb": nrm(next(keys), (cfg["vocab_size"], H), jnp.float32),
        "pos_emb": nrm(next(keys), (cfg["max_position"], H), jnp.float32),
        "type_emb": nrm(next(keys), (cfg["type_vocab_size"], H), jnp.float32),
        "emb_ln_g": jnp.ones((H,), jnp.float32),
        "emb_ln_b": jnp.zeros((H,), jnp.float32),
        "layers": [],
        "pool_w": nrm(next(keys), (H, H)),
        "pool_b": jnp.zeros((H,), jnp.float32),
        "cls_w_pad": cls_w_pad,
        "cls_b_pad": jnp.zeros((NP,), jnp.float32),
    }
    for _ in range(cfg["num_layers"]):
        p["layers"].append({
            "wqkv": nrm(next(keys), (H, 3 * H)),           # fused q|k|v weight
            "bqkv": jnp.zeros((3 * H,), jnp.float32),
            "wo": nrm(next(keys), (H, H)), "bo": jnp.zeros((H,), jnp.float32),
            "ln1_g": jnp.ones((H,), jnp.float32), "ln1_b": jnp.zeros((H,), jnp.float32),
            "w1": nrm(next(keys), (H, I)), "b1": jnp.zeros((I,), jnp.float32),
            "w2": nrm(next(keys), (I, H)), "b2": jnp.zeros((H,), jnp.float32),
            "ln2_g": jnp.ones((H,), jnp.float32), "ln2_b": jnp.zeros((H,), jnp.float32),
        })
    return p


def prepare_kernel_params(params, cfg):
    """Stack per-layer weights along a leading layer axis and fold 1/sqrt(head_dim)
    into the Q columns of the fused QKV weight/bias (scale=1/8 is a power of two,
    so the bf16 weights stay bit-exact)."""
    H, I = cfg["hidden"], cfg["intermediate"]
    L, Np = cfg["num_layers"], cfg["head_pad"]
    scale = 1.0 / math.sqrt(cfg["head_dim"])
    layers = params["layers"]

    def stack(key, reshape_to=None):
        t = jnp.stack([lyr[key] for lyr in layers], axis=0)
        return t.reshape((L,) + reshape_to) if reshape_to is not None else t

    wqkv, bqkv = [], []
    for lyr in layers:
        w = lyr["wqkv"]
        wq = (w[:, :H].astype(jnp.float32) * scale).astype(w.dtype)
        wqkv.append(jnp.concatenate([wq, w[:, H:]], axis=1))
        b = lyr["bqkv"]
        bqkv.append(jnp.concatenate([b[:H] * scale, b[H:]]))

    return {
        "word_emb": params["word_emb"],
        "pos_emb": params["pos_emb"],
        "type_emb": params["type_emb"],
        "emb_ln_g": params["emb_ln_g"].reshape(1, H),
        "emb_ln_b": params["emb_ln_b"].reshape(1, H),
        "wqkv": jnp.stack(wqkv, axis=0),
        "bqkv": jnp.stack(bqkv, axis=0).reshape(L, 1, 3 * H),
        "wo": stack("wo"), "bo": stack("bo", (1, H)),
        "ln1_g": stack("ln1_g", (1, H)), "ln1_b": stack("ln1_b", (1, H)),
        "w1": stack("w1"), "b1": stack("b1", (1, I)),
        "w2": stack("w2"), "b2": stack("b2", (1, H)),
        "ln2_g": stack("ln2_g", (1, H)), "ln2_b": stack("ln2_b", (1, H)),
        "pool_w": params["pool_w"],
        "pool_b": params["pool_b"].reshape(1, H),
        "cls_w_pad": params["cls_w_pad"],
        "cls_b_pad": params["cls_b_pad"].reshape(1, Np),
    }


# ------------------------------ forward pass ---------------------------------

def bert_classifier_forward(kp, input_ids, attention_mask, cfg):
    B, S = input_ids.shape
    H = cfg["hidden"]

    # ---- embeddings: gather + pos/type add in XLA; LayerNorm inside the kernel ----
    # TODO(synk): token_type_ids hard-coded to segment 0 (single-sentence input).
    word = jnp.take(kp["word_emb"], input_ids, axis=0)             # (B, S, H)
    pos = kp["pos_emb"][:S][None, :, :]
    tok = kp["type_emb"][0][None, None, :]
    emb = (word + pos + tok).reshape(B * S, H)                     # f32, 16x128

    # additive key mask shared by all heads: (B, S)
    mask_bias = (1.0 - attention_mask.astype(jnp.float32)) * -1e9

    # ---- whole network in one fused Pallas kernel ----
    logits_pad = fused_bert_pallas(emb, mask_bias, kp, cfg)        # (B, 128) f32
    return logits_pad[:, :cfg["num_classes"]]


# --------------------------- pure-JAX f32 reference --------------------------

def bert_classifier_reference(params, input_ids, attention_mask, cfg):
    B, S = input_ids.shape
    H, Hh, Dh = cfg["hidden"], cfg["num_heads"], cfg["head_dim"]
    f32 = lambda t: t.astype(jnp.float32)

    def ln(x, g, b):
        mu = x.mean(-1, keepdims=True)
        xc = x - mu
        var = (xc * xc).mean(-1, keepdims=True)
        return xc * jax.lax.rsqrt(var + LN_EPS) * g + b

    word = jnp.take(f32(params["word_emb"]), input_ids, axis=0)
    emb = word + f32(params["pos_emb"])[:S][None] + f32(params["type_emb"])[0][None, None]
    h = ln(emb, f32(params["emb_ln_g"]), f32(params["emb_ln_b"]))
    bias = ((1.0 - attention_mask.astype(jnp.float32)) * -1e9)[:, None, None, :]
    c = math.sqrt(2.0 / math.pi)

    for lyr in params["layers"]:
        qkv = h @ f32(lyr["wqkv"]) + f32(lyr["bqkv"])
        q, k, v = jnp.split(qkv, 3, axis=-1)
        heads = lambda t: t.reshape(B, S, Hh, Dh).transpose(0, 2, 1, 3)
        q, k, v = heads(q), heads(k), heads(v)
        s = jnp.einsum("bhqd,bhkd->bhqk", q, k) / math.sqrt(Dh) + bias
        p = jax.nn.softmax(s, axis=-1)
        ctx = jnp.einsum("bhqk,bhkd->bhqd", p, v).transpose(0, 2, 1, 3).reshape(B, S, H)
        h = ln(ctx @ f32(lyr["wo"]) + f32(lyr["bo"]) + h,
               f32(lyr["ln1_g"]), f32(lyr["ln1_b"]))
        ff = h @ f32(lyr["w1"]) + f32(lyr["b1"])
        ff = 0.5 * ff * (1.0 + jnp.tanh(c * (ff + 0.044715 * ff ** 3)))
        h = ln(ff @ f32(lyr["w2"]) + f32(lyr["b2"]) + h,
               f32(lyr["ln2_g"]), f32(lyr["ln2_b"]))

    pooled = jnp.tanh(h[:, 0, :] @ f32(params["pool_w"]) + f32(params["pool_b"]))
    nc = cfg["num_classes"]
    logits = pooled @ f32(params["cls_w_pad"][:, :nc]) + f32(params["cls_b_pad"][:nc])
    return jnp.maximum(logits, 0.0)


# ----------------------------------- main ------------------------------------

if __name__ == "__main__":
    key = jax.random.PRNGKey(0)
    pkey, ikey = jax.random.split(key)

    cfg = CFG
    params = init_params(pkey, cfg)
    kparams = prepare_kernel_params(params, cfg)

    B, S = 2, 8
    input_ids = jax.random.randint(ikey, (B, S), 0, cfg["vocab_size"], dtype=jnp.int32)
    # attention mask: second sequence has its last 3 tokens padded out
    attention_mask = jnp.array(
        [[1, 1, 1, 1, 1, 1, 1, 1],
         [1, 1, 1, 1, 1, 0, 0, 0]], dtype=jnp.int32)

    fwd = jax.jit(functools.partial(bert_classifier_forward, cfg=cfg))
    out = jax.block_until_ready(fwd(kparams, input_ids, attention_mask))

    assert out.shape == (B, cfg["num_classes"])
    assert bool(jnp.all(out >= 0.0))  # ReLU output is non-negative

    ref = bert_classifier_reference(params, input_ids, attention_mask, cfg)
    max_err = float(jnp.max(jnp.abs(out - ref)))
    assert max_err < 5e-2, f"kernel/reference mismatch: {max_err}"

    print("KERNEL_OK")
</pallas_src>

<mosaic_0001>
module attributes {stable_mosaic.version = 11 : i64} {
  func.func @_bert_fused_kernel(%arg0: i32, %arg1: memref<16x128xf32, #tpu.memory_space<vmem>>, %arg2: memref<2x8xf32, #tpu.memory_space<vmem>>, %arg3: memref<1x128xf32, #tpu.memory_space<vmem>>, %arg4: memref<1x128xf32, #tpu.memory_space<vmem>>, %arg5: memref<2x128x384xbf16, #tpu.memory_space<vmem>>, %arg6: memref<2x1x384xf32, #tpu.memory_space<vmem>>, %arg7: memref<2x128x128xbf16, #tpu.memory_space<vmem>>, %arg8: memref<2x1x128xf32, #tpu.memory_space<vmem>>, %arg9: memref<2x1x128xf32, #tpu.memory_space<vmem>>, %arg10: memref<2x1x128xf32, #tpu.memory_space<vmem>>, %arg11: memref<2x128x256xbf16, #tpu.memory_space<vmem>>, %arg12: memref<2x1x256xf32, #tpu.memory_space<vmem>>, %arg13: memref<2x256x128xbf16, #tpu.memory_space<vmem>>, %arg14: memref<2x1x128xf32, #tpu.memory_space<vmem>>, %arg15: memref<2x1x128xf32, #tpu.memory_space<vmem>>, %arg16: memref<2x1x128xf32, #tpu.memory_space<vmem>>, %arg17: memref<128x128xbf16, #tpu.memory_space<vmem>>, %arg18: memref<1x128xf32, #tpu.memory_space<vmem>>, %arg19: memref<128x128xbf16, #tpu.memory_space<vmem>>, %arg20: memref<1x128xf32, #tpu.memory_space<vmem>>, %arg21: memref<2x128xf32, #tpu.memory_space<vmem>>) attributes {dimension_semantics = [#tpu.dimension_semantics<arbitrary>], iteration_bounds = array<i64: 1>, scalar_prefetch = 0 : i64, scratch_operands = 0 : i64, tpu.core_type = #tpu.core_type<tc>, window_params = [{pipeline_mode = #tpu.pipeline_mode<synchronous>, transform_indices = @transform_0, window_bounds = array<i64: 16, 128>}, {pipeline_mode = #tpu.pipeline_mode<synchronous>, transform_indices = @transform_1, window_bounds = array<i64: 2, 8>}, {pipeline_mode = #tpu.pipeline_mode<synchronous>, transform_indices = @transform_2, window_bounds = array<i64: 1, 128>}, {pipeline_mode = #tpu.pipeline_mode<synchronous>, transform_indices = @transform_3, window_bounds = array<i64: 1, 128>}, {pipeline_mode = #tpu.pipeline_mode<synchronous>, transform_indices = @transform_4, window_bounds = array<i64: 2, 128, 384>}, {pipeline_mode = #tpu.pipeline_mode<synchronous>, transform_indices = @transform_5, window_bounds = array<i64: 2, 1, 384>}, {pipeline_mode = #tpu.pipeline_mode<synchronous>, transform_indices = @transform_6, window_bounds = array<i64: 2, 128, 128>}, {pipeline_mode = #tpu.pipeline_mode<synchronous>, transform_indices = @transform_7, window_bounds = array<i64: 2, 1, 128>}, {pipeline_mode = #tpu.pipeline_mode<synchronous>, transform_indices = @transform_8, window_bounds = array<i64: 2, 1, 128>}, {pipeline_mode = #tpu.pipeline_mode<synchronous>, transform_indices = @transform_9, window_bounds = array<i64: 2, 1, 128>}, {pipeline_mode = #tpu.pipeline_mode<synchronous>, transform_indices = @transform_10, window_bounds = array<i64: 2, 128, 256>}, {pipeline_mode = #tpu.pipeline_mode<synchronous>, transform_indices = @transform_11, window_bounds = array<i64: 2, 1, 256>}, {pipeline_mode = #tpu.pipeline_mode<synchronous>, transform_indices = @transform_12, window_bounds = array<i64: 2, 256, 128>}, {pipeline_mode = #tpu.pipeline_mode<synchronous>, transform_indices = @transform_13, window_bounds = array<i64: 2, 1, 128>}, {pipeline_mode = #tpu.pipeline_mode<synchronous>, transform_indices = @transform_14, window_bounds = array<i64: 2, 1, 128>}, {pipeline_mode = #tpu.pipeline_mode<synchronous>, transform_indices = @transform_15, window_bounds = array<i64: 2, 1, 128>}, {pipeline_mode = #tpu.pipeline_mode<synchronous>, transform_indices = @transform_16, window_bounds = array<i64: 128, 128>}, {pipeline_mode = #tpu.pipeline_mode<synchronous>, transform_indices = @transform_17, window_bounds = array<i64: 1, 128>}, {pipeline_mode = #tpu.pipeline_mode<synchronous>, transform_indices = @transform_18, window_bounds = array<i64: 128, 128>}, {pipeline_mode = #tpu.pipeline_mode<synchronous>, transform_indices = @transform_19, window_bounds = array<i64: 1, 128>}, {pipeline_mode = #tpu.pipeline_mode<synchronous>, transform_indices = @transform_20, window_bounds = array<i64: 2, 128>}]} {
    %c0 = arith.constant 0 : index
    %c0_0 = arith.constant 0 : index
    %0 = vector.load %arg1[%c0, %c0_0] : memref<16x128xf32, #tpu.memory_space<vmem>>, vector<16x128xf32>
    %c0_1 = arith.constant 0 : index
    %c0_2 = arith.constant 0 : index
    %1 = vector.load %arg3[%c0_1, %c0_2] : memref<1x128xf32, #tpu.memory_space<vmem>>, vector<1x128xf32>
    %c0_3 = arith.constant 0 : index
    %c0_4 = arith.constant 0 : index
    %2 = vector.load %arg4[%c0_3, %c0_4] : memref<1x128xf32, #tpu.memory_space<vmem>>, vector<1x128xf32>
    %cst = arith.constant dense<0.000000e+00> : vector<16xf32>
    %3 = vector.multi_reduction <add>, %0, %cst [1] : vector<16x128xf32> to vector<16xf32>
    %4 = vector.shape_cast %3 : vector<16xf32> to vector<16x1xf32>
    %cst_5 = arith.constant 1.280000e+02 : f32
    %5 = vector.broadcast %cst_5 : f32 to vector<16x1xf32>
    %6 = arith.divf %4, %5 : vector<16x1xf32>
    %7 = vector.broadcast %6 : vector<16x1xf32> to vector<16x128xf32>
    %8 = arith.subf %0, %7 : vector<16x128xf32>
    %9 = arith.mulf %8, %8 : vector<16x128xf32>
    %cst_6 = arith.constant dense<0.000000e+00> : vector<16xf32>
    %10 = vector.multi_reduction <add>, %9, %cst_6 [1] : vector<16x128xf32> to vector<16xf32>
    %11 = vector.shape_cast %10 : vector<16xf32> to vector<16x1xf32>
    %cst_7 = arith.constant 1.280000e+02 : f32
    %12 = vector.broadcast %cst_7 : f32 to vector<16x1xf32>
    %13 = arith.divf %11, %12 : vector<16x1xf32>
    %cst_8 = arith.constant 9.99999996E-13 : f32
    %14 = vector.broadcast %cst_8 : f32 to vector<16x1xf32>
    %15 = arith.addf %13, %14 : vector<16x1xf32>
    %16 = math.rsqrt %15 : vector<16x1xf32>
    %17 = vector.broadcast %16 : vector<16x1xf32> to vector<16x128xf32>
    %18 = arith.mulf %8, %17 : vector<16x128xf32>
    %19 = vector.broadcast %1 : vector<1x128xf32> to vector<16x128xf32>
    %20 = arith.mulf %18, %19 : vector<16x128xf32>
    %21 = vector.broadcast %2 : vector<1x128xf32> to vector<16x128xf32>
    %22 = arith.addf %20, %21 : vector<16x128xf32>
    %c0_9 = arith.constant 0 : index
    %c0_10 = arith.constant 0 : index
    %23 = vector.load %arg2[%c0_9, %c0_10] : memref<2x8xf32, #tpu.memory_space<vmem>>, vector<2x8xf32>
    %24 = vector.extract_strided_slice %23 {offsets = [0, 0], sizes = [1, 8], strides = [1, 1]} : vector<2x8xf32> to vector<1x8xf32>
    %25 = vector.shape_cast %24 : vector<1x8xf32> to vector<1x8xf32>
    %26 = vector.broadcast %25 : vector<1x8xf32> to vector<8x8xf32>
    %27 = vector.extract_strided_slice %23 {offsets = [1, 0], sizes = [1, 8], strides = [1, 1]} : vector<2x8xf32> to vector<1x8xf32>
    %28 = vector.shape_cast %27 : vector<1x8xf32> to vector<1x8xf32>
    %29 = vector.broadcast %28 : vector<1x8xf32> to vector<8x8xf32>
    %c0_11 = arith.constant 0 : index
    %c0_12 = arith.constant 0 : index
    %c0_13 = arith.constant 0 : index
    %30 = vector.load %arg5[%c0_11, %c0_12, %c0_13] : memref<2x128x384xbf16, #tpu.memory_space<vmem>>, vector<1x128x384xbf16>
    %31 = vector.shape_cast %30 : vector<1x128x384xbf16> to vector<128x384xbf16>
    %c0_14 = arith.constant 0 : index
    %c0_15 = arith.constant 0 : index
    %c0_16 = arith.constant 0 : index
    %32 = vector.load %arg6[%c0_14, %c0_15, %c0_16] : memref<2x1x384xf32, #tpu.memory_space<vmem>>, vector<1x1x384xf32>
    %33 = vector.shape_cast %32 : vector<1x1x384xf32> to vector<1x384xf32>
    %c0_17 = arith.constant 0 : index
    %c0_18 = arith.constant 0 : index
    %c0_19 = arith.constant 0 : index
    %34 = vector.load %arg7[%c0_17, %c0_18, %c0_19] : memref<2x128x128xbf16, #tpu.memory_space<vmem>>, vector<1x128x128xbf16>
    %35 = vector.shape_cast %34 : vector<1x128x128xbf16> to vector<128x128xbf16>
    %c0_20 = arith.constant 0 : index
    %c0_21 = arith.constant 0 : index
    %c0_22 = arith.constant 0 : index
    %36 = vector.load %arg8[%c0_20, %c0_21, %c0_22] : memref<2x1x128xf32, #tpu.memory_space<vmem>>, vector<1x1x128xf32>
    %37 = vector.shape_cast %36 : vector<1x1x128xf32> to vector<1x128xf32>
    %c0_23 = arith.constant 0 : index
    %c0_24 = arith.constant 0 : index
    %c0_25 = arith.constant 0 : index
    %38 = vector.load %arg9[%c0_23, %c0_24, %c0_25] : memref<2x1x128xf32, #tpu.memory_space<vmem>>, vector<1x1x128xf32>
    %39 = vector.shape_cast %38 : vector<1x1x128xf32> to vector<1x128xf32>
    %c0_26 = arith.constant 0 : index
    %c0_27 = arith.constant 0 : index
    %c0_28 = arith.constant 0 : index
    %40 = vector.load %arg10[%c0_26, %c0_27, %c0_28] : memref<2x1x128xf32, #tpu.memory_space<vmem>>, vector<1x1x128xf32>
    %41 = vector.shape_cast %40 : vector<1x1x128xf32> to vector<1x128xf32>
    %c0_29 = arith.constant 0 : index
    %c0_30 = arith.constant 0 : index
    %c0_31 = arith.constant 0 : index
    %42 = vector.load %arg11[%c0_29, %c0_30, %c0_31] : memref<2x128x256xbf16, #tpu.memory_space<vmem>>, vector<1x128x256xbf16>
    %43 = vector.shape_cast %42 : vector<1x128x256xbf16> to vector<128x256xbf16>
    %c0_32 = arith.constant 0 : index
    %c0_33 = arith.constant 0 : index
    %c0_34 = arith.constant 0 : index
    %44 = vector.load %arg12[%c0_32, %c0_33, %c0_34] : memref<2x1x256xf32, #tpu.memory_space<vmem>>, vector<1x1x256xf32>
    %45 = vector.shape_cast %44 : vector<1x1x256xf32> to vector<1x256xf32>
    %c0_35 = arith.constant 0 : index
    %c0_36 = arith.constant 0 : index
    %c0_37 = arith.constant 0 : index
    %46 = vector.load %arg13[%c0_35, %c0_36, %c0_37] : memref<2x256x128xbf16, #tpu.memory_space<vmem>>, vector<1x256x128xbf16>
    %47 = vector.shape_cast %46 : vector<1x256x128xbf16> to vector<256x128xbf16>
    %c0_38 = arith.constant 0 : index
    %c0_39 = arith.constant 0 : index
    %c0_40 = arith.constant 0 : index
    %48 = vector.load %arg14[%c0_38, %c0_39, %c0_40] : memref<2x1x128xf32, #tpu.memory_space<vmem>>, vector<1x1x128xf32>
    %49 = vector.shape_cast %48 : vector<1x1x128xf32> to vector<1x128xf32>
    %c0_41 = arith.constant 0 : index
    %c0_42 = arith.constant 0 : index
    %c0_43 = arith.constant 0 : index
    %50 = vector.load %arg15[%c0_41, %c0_42, %c0_43] : memref<2x1x128xf32, #tpu.memory_space<vmem>>, vector<1x1x128xf32>
    %51 = vector.shape_cast %50 : vector<1x1x128xf32> to vector<1x128xf32>
    %c0_44 = arith.constant 0 : index
    %c0_45 = arith.constant 0 : index
    %c0_46 = arith.constant 0 : index
    %52 = vector.load %arg16[%c0_44, %c0_45, %c0_46] : memref<2x1x128xf32, #tpu.memory_space<vmem>>, vector<1x1x128xf32>
    %53 = vector.shape_cast %52 : vector<1x1x128xf32> to vector<1x128xf32>
    %54 = arith.truncf %22 : vector<16x128xf32> to vector<16x128xbf16>
    %cst_47 = arith.constant dense<0.000000e+00> : vector<16x384xf32>
    %55 = tpu.matmul %54, %31, %cst_47 {dimension_numbers = #tpu.dot_dimension_numbers<[1], [0], [0], [1], [0, 0, 1, 1], [], []>} : vector<16x128xbf16>, vector<128x384xbf16>, vector<16x384xf32> -> vector<16x384xf32>
    %56 = vector.broadcast %33 : vector<1x384xf32> to vector<16x384xf32>
    %57 = arith.addf %55, %56 : vector<16x384xf32>
    %58 = vector.extract_strided_slice %57 {offsets = [0, 0], sizes = [8, 64], strides = [1, 1]} : vector<16x384xf32> to vector<8x64xf32>
    %59 = arith.truncf %58 : vector<8x64xf32> to vector<8x64xbf16>
    %60 = vector.extract_strided_slice %57 {offsets = [0, 128], sizes = [8, 64], strides = [1, 1]} : vector<16x384xf32> to vector<8x64xf32>
    %61 = arith.truncf %60 : vector<8x64xf32> to vector<8x64xbf16>
    %62 = vector.extract_strided_slice %57 {offsets = [0, 256], sizes = [8, 64], strides = [1, 1]} : vector<16x384xf32> to vector<8x64xf32>
    %63 = arith.truncf %62 : vector<8x64xf32> to vector<8x64xbf16>
    %cst_48 = arith.constant dense<0.000000e+00> : vector<8x8xf32>
    %64 = tpu.matmul %59, %61, %cst_48 {dimension_numbers = #tpu.dot_dimension_numbers<[1], [1], [0], [0], [0, 0, 1, 0], [], []>} : vector<8x64xbf16>, vector<8x64xbf16>, vector<8x8xf32> -> vector<8x8xf32>
    %65 = arith.addf %64, %26 : vector<8x8xf32>
    %cst_49 = arith.constant dense<0xFF800000> : vector<8xf32>
    %66 = vector.multi_reduction <maximumf>, %65, %cst_49 [1] : vector<8x8xf32> to vector<8xf32>
    %67 = vector.shape_cast %66 : vector<8xf32> to vector<8x1xf32>
    %68 = vector.broadcast %67 : vector<8x1xf32> to vector<8x8xf32>
    %69 = arith.subf %65, %68 : vector<8x8xf32>
    %70 = math.exp %69 : vector<8x8xf32>
    %cst_50 = arith.constant dense<0.000000e+00> : vector<8xf32>
    %71 = vector.multi_reduction <add>, %70, %cst_50 [1] : vector<8x8xf32> to vector<8xf32>
    %72 = vector.shape_cast %71 : vector<8xf32> to vector<8x1xf32>
    %73 = tpu.reciprocal %72 {approx = true} : vector<8x1xf32> -> vector<8x1xf32>
    %74 = vector.broadcast %73 : vector<8x1xf32> to vector<8x8xf32>
    %75 = arith.mulf %70, %74 : vector<8x8xf32>
    %76 = arith.truncf %75 : vector<8x8xf32> to vector<8x8xbf16>
    %cst_51 = arith.constant dense<0.000000e+00> : vector<8x64xf32>
    %77 = tpu.matmul %76, %63, %cst_51 {dimension_numbers = #tpu.dot_dimension_numbers<[1], [0], [0], [1], [0, 0, 1, 1], [], []>} : vector<8x8xbf16>, vector<8x64xbf16>, vector<8x64xf32> -> vector<8x64xf32>
    %78 = arith.truncf %77 : vector<8x64xf32> to vector<8x64xbf16>
    %79 = vector.extract_strided_slice %35 {offsets = [0, 0], sizes = [64, 128], strides = [1, 1]} : vector<128x128xbf16> to vector<64x128xbf16>
    %cst_52 = arith.constant dense<0.000000e+00> : vector<8x128xf32>
    %80 = tpu.matmul %78, %79, %cst_52 {dimension_numbers = #tpu.dot_dimension_numbers<[1], [0], [0], [1], [0, 0, 1, 1], [], []>} : vector<8x64xbf16>, vector<64x128xbf16>, vector<8x128xf32> -> vector<8x128xf32>
    %81 = vector.extract_strided_slice %57 {offsets = [0, 64], sizes = [8, 64], strides = [1, 1]} : vector<16x384xf32> to vector<8x64xf32>
    %82 = arith.truncf %81 : vector<8x64xf32> to vector<8x64xbf16>
    %83 = vector.extract_strided_slice %57 {offsets = [0, 192], sizes = [8, 64], strides = [1, 1]} : vector<16x384xf32> to vector<8x64xf32>
    %84 = arith.truncf %83 : vector<8x64xf32> to vector<8x64xbf16>
    %85 = vector.extract_strided_slice %57 {offsets = [0, 320], sizes = [8, 64], strides = [1, 1]} : vector<16x384xf32> to vector<8x64xf32>
    %86 = arith.truncf %85 : vector<8x64xf32> to vector<8x64xbf16>
    %cst_53 = arith.constant dense<0.000000e+00> : vector<8x8xf32>
    %87 = tpu.matmul %82, %84, %cst_53 {dimension_numbers = #tpu.dot_dimension_numbers<[1], [1], [0], [0], [0, 0, 1, 0], [], []>} : vector<8x64xbf16>, vector<8x64xbf16>, vector<8x8xf32> -> vector<8x8xf32>
    %88 = arith.addf %87, %26 : vector<8x8xf32>
    %cst_54 = arith.constant dense<0xFF800000> : vector<8xf32>
    %89 = vector.multi_reduction <maximumf>, %88, %cst_54 [1] : vector<8x8xf32> to vector<8xf32>
    %90 = vector.shape_cast %89 : vector<8xf32> to vector<8x1xf32>
    %91 = vector.broadcast %90 : vector<8x1xf32> to vector<8x8xf32>
    %92 = arith.subf %88, %91 : vector<8x8xf32>
    %93 = math.exp %92 : vector<8x8xf32>
    %cst_55 = arith.constant dense<0.000000e+00> : vector<8xf32>
    %94 = vector.multi_reduction <add>, %93, %cst_55 [1] : vector<8x8xf32> to vector<8xf32>
    %95 = vector.shape_cast %94 : vector<8xf32> to vector<8x1xf32>
    %96 = tpu.reciprocal %95 {approx = true} : vector<8x1xf32> -> vector<8x1xf32>
    %97 = vector.broadcast %96 : vector<8x1xf32> to vector<8x8xf32>
    %98 = arith.mulf %93, %97 : vector<8x8xf32>
    %99 = arith.truncf %98 : vector<8x8xf32> to vector<8x8xbf16>
    %cst_56 = arith.constant dense<0.000000e+00> : vector<8x64xf32>
    %100 = tpu.matmul %99, %86, %cst_56 {dimension_numbers = #tpu.dot_dimension_numbers<[1], [0], [0], [1], [0, 0, 1, 1], [], []>} : vector<8x8xbf16>, vector<8x64xbf16>, vector<8x64xf32> -> vector<8x64xf32>
    %101 = arith.truncf %100 : vector<8x64xf32> to vector<8x64xbf16>
    %102 = vector.extract_strided_slice %35 {offsets = [64, 0], sizes = [64, 128], strides = [1, 1]} : vector<128x128xbf16> to vector<64x128xbf16>
    %cst_57 = arith.constant dense<0.000000e+00> : vector<8x128xf32>
    %103 = tpu.matmul %101, %102, %cst_57 {dimension_numbers = #tpu.dot_dimension_numbers<[1], [0], [0], [1], [0, 0, 1, 1], [], []>} : vector<8x64xbf16>, vector<64x128xbf16>, vector<8x128xf32> -> vector<8x128xf32>
    %104 = arith.addf %80, %103 : vector<8x128xf32>
    %105 = vector.extract_strided_slice %57 {offsets = [8, 0], sizes = [8, 64], strides = [1, 1]} : vector<16x384xf32> to vector<8x64xf32>
    %106 = arith.truncf %105 : vector<8x64xf32> to vector<8x64xbf16>
    %107 = vector.extract_strided_slice %57 {offsets = [8, 128], sizes = [8, 64], strides = [1, 1]} : vector<16x384xf32> to vector<8x64xf32>
    %108 = arith.truncf %107 : vector<8x64xf32> to vector<8x64xbf16>
    %109 = vector.extract_strided_slice %57 {offsets = [8, 256], sizes = [8, 64], strides = [1, 1]} : vector<16x384xf32> to vector<8x64xf32>
    %110 = arith.truncf %109 : vector<8x64xf32> to vector<8x64xbf16>
    %cst_58 = arith.constant dense<0.000000e+00> : vector<8x8xf32>
    %111 = tpu.matmul %106, %108, %cst_58 {dimension_numbers = #tpu.dot_dimension_numbers<[1], [1], [0], [0], [0, 0, 1, 0], [], []>} : vector<8x64xbf16>, vector<8x64xbf16>, vector<8x8xf32> -> vector<8x8xf32>
    %112 = arith.addf %111, %29 : vector<8x8xf32>
    %cst_59 = arith.constant dense<0xFF800000> : vector<8xf32>
    %113 = vector.multi_reduction <maximumf>, %112, %cst_59 [1] : vector<8x8xf32> to vector<8xf32>
    %114 = vector.shape_cast %113 : vector<8xf32> to vector<8x1xf32>
    %115 = vector.broadcast %114 : vector<8x1xf32> to vector<8x8xf32>
    %116 = arith.subf %112, %115 : vector<8x8xf32>
    %117 = math.exp %116 : vector<8x8xf32>
    %cst_60 = arith.constant dense<0.000000e+00> : vector<8xf32>
    %118 = vector.multi_reduction <add>, %117, %cst_60 [1] : vector<8x8xf32> to vector<8xf32>
    %119 = vector.shape_cast %118 : vector<8xf32> to vector<8x1xf32>
    %120 = tpu.reciprocal %119 {approx = true} : vector<8x1xf32> -> vector<8x1xf32>
    %121 = vector.broadcast %120 : vector<8x1xf32> to vector<8x8xf32>
    %122 = arith.mulf %117, %121 : vector<8x8xf32>
    %123 = arith.truncf %122 : vector<8x8xf32> to vector<8x8xbf16>
    %cst_61 = arith.constant dense<0.000000e+00> : vector<8x64xf32>
    %124 = tpu.matmul %123, %110, %cst_61 {dimension_numbers = #tpu.dot_dimension_numbers<[1], [0], [0], [1], [0, 0, 1, 1], [], []>} : vector<8x8xbf16>, vector<8x64xbf16>, vector<8x64xf32> -> vector<8x64xf32>
    %125 = arith.truncf %124 : vector<8x64xf32> to vector<8x64xbf16>
    %126 = vector.extract_strided_slice %35 {offsets = [0, 0], sizes = [64, 128], strides = [1, 1]} : vector<128x128xbf16> to vector<64x128xbf16>
    %cst_62 = arith.constant dense<0.000000e+00> : vector<8x128xf32>
    %127 = tpu.matmul %125, %126, %cst_62 {dimension_numbers = #tpu.dot_dimension_numbers<[1], [0], [0], [1], [0, 0, 1, 1], [], []>} : vector<8x64xbf16>, vector<64x128xbf16>, vector<8x128xf32> -> vector<8x128xf32>
    %128 = vector.extract_strided_slice %57 {offsets = [8, 64], sizes = [8, 64], strides = [1, 1]} : vector<16x384xf32> to vector<8x64xf32>
    %129 = arith.truncf %128 : vector<8x64xf32> to vector<8x64xbf16>
    %130 = vector.extract_strided_slice %57 {offsets = [8, 192], sizes = [8, 64], strides = [1, 1]} : vector<16x384xf32> to vector<8x64xf32>
    %131 = arith.truncf %130 : vector<8x64xf32> to vector<8x64xbf16>
    %132 = vector.extract_strided_slice %57 {offsets = [8, 320], sizes = [8, 64], strides = [1, 1]} : vector<16x384xf32> to vector<8x64xf32>
    %133 = arith.truncf %132 : vector<8x64xf32> to vector<8x64xbf16>
    %cst_63 = arith.constant dense<0.000000e+00> : vector<8x8xf32>
    %134 = tpu.matmul %129, %131, %cst_63 {dimension_numbers = #tpu.dot_dimension_numbers<[1], [1], [0], [0], [0, 0, 1, 0], [], []>} : vector<8x64xbf16>, vector<8x64xbf16>, vector<8x8xf32> -> vector<8x8xf32>
    %135 = arith.addf %134, %29 : vector<8x8xf32>
    %cst_64 = arith.constant dense<0xFF800000> : vector<8xf32>
    %136 = vector.multi_reduction <maximumf>, %135, %cst_64 [1] : vector<8x8xf32> to vector<8xf32>
    %137 = vector.shape_cast %136 : vector<8xf32> to vector<8x1xf32>
    %138 = vector.broadcast %137 : vector<8x1xf32> to vector<8x8xf32>
    %139 = arith.subf %135, %138 : vector<8x8xf32>
    %140 = math.exp %139 : vector<8x8xf32>
    %cst_65 = arith.constant dense<0.000000e+00> : vector<8xf32>
    %141 = vector.multi_reduction <add>, %140, %cst_65 [1] : vector<8x8xf32> to vector<8xf32>
    %142 = vector.shape_cast %141 : vector<8xf32> to vector<8x1xf32>
    %143 = tpu.reciprocal %142 {approx = true} : vector<8x1xf32> -> vector<8x1xf32>
    %144 = vector.broadcast %143 : vector<8x1xf32> to vector<8x8xf32>
    %145 = arith.mulf %140, %144 : vector<8x8xf32>
    %146 = arith.truncf %145 : vector<8x8xf32> to vector<8x8xbf16>
    %cst_66 = arith.constant dense<0.000000e+00> : vector<8x64xf32>
    %147 = tpu.matmul %146, %133, %cst_66 {dimension_numbers = #tpu.dot_dimension_numbers<[1], [0], [0], [1], [0, 0, 1, 1], [], []>} : vector<8x8xbf16>, vector<8x64xbf16>, vector<8x64xf32> -> vector<8x64xf32>
    %148 = arith.truncf %147 : vector<8x64xf32> to vector<8x64xbf16>
    %149 = vector.extract_strided_slice %35 {offsets = [64, 0], sizes = [64, 128], strides = [1, 1]} : vector<128x128xbf16> to vector<64x128xbf16>
    %cst_67 = arith.constant dense<0.000000e+00> : vector<8x128xf32>
    %150 = tpu.matmul %148, %149, %cst_67 {dimension_numbers = #tpu.dot_dimension_numbers<[1], [0], [0], [1], [0, 0, 1, 1], [], []>} : vector<8x64xbf16>, vector<64x128xbf16>, vector<8x128xf32> -> vector<8x128xf32>
    %151 = arith.addf %127, %150 : vector<8x128xf32>
    %152 = tpu.concatenate %104, %151 in 0 : vector<8x128xf32>, vector<8x128xf32> -> vector<16x128xf32>
    %153 = vector.broadcast %37 : vector<1x128xf32> to vector<16x128xf32>
    %154 = arith.addf %152, %153 : vector<16x128xf32>
    %155 = arith.addf %154, %22 : vector<16x128xf32>
    %cst_68 = arith.constant dense<0.000000e+00> : vector<16xf32>
    %156 = vector.multi_reduction <add>, %155, %cst_68 [1] : vector<16x128xf32> to vector<16xf32>
    %157 = vector.shape_cast %156 : vector<16xf32> to vector<16x1xf32>
    %cst_69 = arith.constant 1.280000e+02 : f32
    %158 = vector.broadcast %cst_69 : f32 to vector<16x1xf32>
    %159 = arith.divf %157, %158 : vector<16x1xf32>
    %160 = vector.broadcast %159 : vector<16x1xf32> to vector<16x128xf32>
    %161 = arith.subf %155, %160 : vector<16x128xf32>
    %162 = arith.mulf %161, %161 : vector<16x128xf32>
    %cst_70 = arith.constant dense<0.000000e+00> : vector<16xf32>
    %163 = vector.multi_reduction <add>, %162, %cst_70 [1] : vector<16x128xf32> to vector<16xf32>
    %164 = vector.shape_cast %163 : vector<16xf32> to vector<16x1xf32>
    %cst_71 = arith.constant 1.280000e+02 : f32
    %165 = vector.broadcast %cst_71 : f32 to vector<16x1xf32>
    %166 = arith.divf %164, %165 : vector<16x1xf32>
    %cst_72 = arith.constant 9.99999996E-13 : f32
    %167 = vector.broadcast %cst_72 : f32 to vector<16x1xf32>
    %168 = arith.addf %166, %167 : vector<16x1xf32>
    %169 = math.rsqrt %168 : vector<16x1xf32>
    %170 = vector.broadcast %169 : vector<16x1xf32> to vector<16x128xf32>
    %171 = arith.mulf %161, %170 : vector<16x128xf32>
    %172 = vector.broadcast %39 : vector<1x128xf32> to vector<16x128xf32>
    %173 = arith.mulf %171, %172 : vector<16x128xf32>
    %174 = vector.broadcast %41 : vector<1x128xf32> to vector<16x128xf32>
    %175 = arith.addf %173, %174 : vector<16x128xf32>
    %176 = arith.truncf %175 : vector<16x128xf32> to vector<16x128xbf16>
    %cst_73 = arith.constant dense<0.000000e+00> : vector<16x256xf32>
    %177 = tpu.matmul %176, %43, %cst_73 {dimension_numbers = #tpu.dot_dimension_numbers<[1], [0], [0], [1], [0, 0, 1, 1], [], []>} : vector<16x128xbf16>, vector<128x256xbf16>, vector<16x256xf32> -> vector<16x256xf32>
    %178 = vector.broadcast %45 : vector<1x256xf32> to vector<16x256xf32>
    %179 = arith.addf %177, %178 : vector<16x256xf32>
    %cst_74 = arith.constant 5.000000e-01 : f32
    %180 = vector.broadcast %cst_74 : f32 to vector<16x256xf32>
    %181 = arith.mulf %180, %179 : vector<16x256xf32>
    %cst_75 = arith.constant 4.471500e-02 : f32
    %182 = vector.broadcast %cst_75 : f32 to vector<16x256xf32>
    %183 = arith.mulf %182, %179 : vector<16x256xf32>
    %184 = arith.mulf %183, %179 : vector<16x256xf32>
    %185 = arith.mulf %184, %179 : vector<16x256xf32>
    %186 = arith.addf %179, %185 : vector<16x256xf32>
    %cst_76 = arith.constant 0.797884583 : f32
    %187 = vector.broadcast %cst_76 : f32 to vector<16x256xf32>
    %188 = arith.mulf %187, %186 : vector<16x256xf32>
    %189 = math.tanh %188 : vector<16x256xf32>
    %cst_77 = arith.constant 1.000000e+00 : f32
    %190 = vector.broadcast %cst_77 : f32 to vector<16x256xf32>
    %191 = arith.addf %190, %189 : vector<16x256xf32>
    %192 = arith.mulf %181, %191 : vector<16x256xf32>
    %193 = arith.truncf %192 : vector<16x256xf32> to vector<16x256xbf16>
    %cst_78 = arith.constant dense<0.000000e+00> : vector<16x128xf32>
    %194 = tpu.matmul %193, %47, %cst_78 {dimension_numbers = #tpu.dot_dimension_numbers<[1], [0], [0], [1], [0, 0, 1, 1], [], []>} : vector<16x256xbf16>, vector<256x128xbf16>, vector<16x128xf32> -> vector<16x128xf32>
    %195 = vector.broadcast %49 : vector<1x128xf32> to vector<16x128xf32>
    %196 = arith.addf %194, %195 : vector<16x128xf32>
    %197 = arith.addf %196, %175 : vector<16x128xf32>
    %cst_79 = arith.constant dense<0.000000e+00> : vector<16xf32>
    %198 = vector.multi_reduction <add>, %197, %cst_79 [1] : vector<16x128xf32> to vector<16xf32>
    %199 = vector.shape_cast %198 : vector<16xf32> to vector<16x1xf32>
    %cst_80 = arith.constant 1.280000e+02 : f32
    %200 = vector.broadcast %cst_80 : f32 to vector<16x1xf32>
    %201 = arith.divf %199, %200 : vector<16x1xf32>
    %202 = vector.broadcast %201 : vector<16x1xf32> to vector<16x128xf32>
    %203 = arith.subf %197, %202 : vector<16x128xf32>
    %204 = arith.mulf %203, %203 : vector<16x128xf32>
    %cst_81 = arith.constant dense<0.000000e+00> : vector<16xf32>
    %205 = vector.multi_reduction <add>, %204, %cst_81 [1] : vector<16x128xf32> to vector<16xf32>
    %206 = vector.shape_cast %205 : vector<16xf32> to vector<16x1xf32>
    %cst_82 = arith.constant 1.280000e+02 : f32
    %207 = vector.broadcast %cst_82 : f32 to vector<16x1xf32>
    %208 = arith.divf %206, %207 : vector<16x1xf32>
    %cst_83 = arith.constant 9.99999996E-13 : f32
    %209 = vector.broadcast %cst_83 : f32 to vector<16x1xf32>
    %210 = arith.addf %208, %209 : vector<16x1xf32>
    %211 = math.rsqrt %210 : vector<16x1xf32>
    %212 = vector.broadcast %211 : vector<16x1xf32> to vector<16x128xf32>
    %213 = arith.mulf %203, %212 : vector<16x128xf32>
    %214 = vector.broadcast %51 : vector<1x128xf32> to vector<16x128xf32>
    %215 = arith.mulf %213, %214 : vector<16x128xf32>
    %216 = vector.broadcast %53 : vector<1x128xf32> to vector<16x128xf32>
    %217 = arith.addf %215, %216 : vector<16x128xf32>
    %c1 = arith.constant 1 : index
    %c0_84 = arith.constant 0 : index
    %c0_85 = arith.constant 0 : index
    %218 = vector.load %arg5[%c1, %c0_84, %c0_85] : memref<2x128x384xbf16, #tpu.memory_space<vmem>>, vector<1x128x384xbf16>
    %219 = vector.shape_cast %218 : vector<1x128x384xbf16> to vector<128x384xbf16>
    %c1_86 = arith.constant 1 : index
    %c0_87 = arith.constant 0 : index
    %c0_88 = arith.constant 0 : index
    %220 = vector.load %arg6[%c1_86, %c0_87, %c0_88] : memref<2x1x384xf32, #tpu.memory_space<vmem>>, vector<1x1x384xf32>
    %221 = vector.shape_cast %220 : vector<1x1x384xf32> to vector<1x384xf32>
    %c1_89 = arith.constant 1 : index
    %c0_90 = arith.constant 0 : index
    %c0_91 = arith.constant 0 : index
    %222 = vector.load %arg7[%c1_89, %c0_90, %c0_91] : memref<2x128x128xbf16, #tpu.memory_space<vmem>>, vector<1x128x128xbf16>
    %223 = vector.shape_cast %222 : vector<1x128x128xbf16> to vector<128x128xbf16>
    %c1_92 = arith.constant 1 : index
    %c0_93 = arith.constant 0 : index
    %c0_94 = arith.constant 0 : index
    %224 = vector.load %arg8[%c1_92, %c0_93, %c0_94] : memref<2x1x128xf32, #tpu.memory_space<vmem>>, vector<1x1x128xf32>
    %225 = vector.shape_cast %224 : vector<1x1x128xf32> to vector<1x128xf32>
    %c1_95 = arith.constant 1 : index
    %c0_96 = arith.constant 0 : index
    %c0_97 = arith.constant 0 : index
    %226 = vector.load %arg9[%c1_95, %c0_96, %c0_97] : memref<2x1x128xf32, #tpu.memory_space<vmem>>, vector<1x1x128xf32>
    %227 = vector.shape_cast %226 : vector<1x1x128xf32> to vector<1x128xf32>
    %c1_98 = arith.constant 1 : index
    %c0_99 = arith.constant 0 : index
    %c0_100 = arith.constant 0 : index
    %228 = vector.load %arg10[%c1_98, %c0_99, %c0_100] : memref<2x1x128xf32, #tpu.memory_space<vmem>>, vector<1x1x128xf32>
    %229 = vector.shape_cast %228 : vector<1x1x128xf32> to vector<1x128xf32>
    %c1_101 = arith.constant 1 : index
    %c0_102 = arith.constant 0 : index
    %c0_103 = arith.constant 0 : index
    %230 = vector.load %arg11[%c1_101, %c0_102, %c0_103] : memref<2x128x256xbf16, #tpu.memory_space<vmem>>, vector<1x128x256xbf16>
    %231 = vector.shape_cast %230 : vector<1x128x256xbf16> to vector<128x256xbf16>
    %c1_104 = arith.constant 1 : index
    %c0_105 = arith.constant 0 : index
    %c0_106 = arith.constant 0 : index
    %232 = vector.load %arg12[%c1_104, %c0_105, %c0_106] : memref<2x1x256xf32, #tpu.memory_space<vmem>>, vector<1x1x256xf32>
    %233 = vector.shape_cast %232 : vector<1x1x256xf32> to vector<1x256xf32>
    %c1_107 = arith.constant 1 : index
    %c0_108 = arith.constant 0 : index
    %c0_109 = arith.constant 0 : index
    %234 = vector.load %arg13[%c1_107, %c0_108, %c0_109] : memref<2x256x128xbf16, #tpu.memory_space<vmem>>, vector<1x256x128xbf16>
    %235 = vector.shape_cast %234 : vector<1x256x128xbf16> to vector<256x128xbf16>
    %c1_110 = arith.constant 1 : index
    %c0_111 = arith.constant 0 : index
    %c0_112 = arith.constant 0 : index
    %236 = vector.load %arg14[%c1_110, %c0_111, %c0_112] : memref<2x1x128xf32, #tpu.memory_space<vmem>>, vector<1x1x128xf32>
    %237 = vector.shape_cast %236 : vector<1x1x128xf32> to vector<1x128xf32>
    %c1_113 = arith.constant 1 : index
    %c0_114 = arith.constant 0 : index
    %c0_115 = arith.constant 0 : index
    %238 = vector.load %arg15[%c1_113, %c0_114, %c0_115] : memref<2x1x128xf32, #tpu.memory_space<vmem>>, vector<1x1x128xf32>
    %239 = vector.shape_cast %238 : vector<1x1x128xf32> to vector<1x128xf32>
    %c1_116 = arith.constant 1 : index
    %c0_117 = arith.constant 0 : index
    %c0_118 = arith.constant 0 : index
    %240 = vector.load %arg16[%c1_116, %c0_117, %c0_118] : memref<2x1x128xf32, #tpu.memory_space<vmem>>, vector<1x1x128xf32>
    %241 = vector.shape_cast %240 : vector<1x1x128xf32> to vector<1x128xf32>
    %242 = arith.truncf %217 : vector<16x128xf32> to vector<16x128xbf16>
    %cst_119 = arith.constant dense<0.000000e+00> : vector<16x384xf32>
    %243 = tpu.matmul %242, %219, %cst_119 {dimension_numbers = #tpu.dot_dimension_numbers<[1], [0], [0], [1], [0, 0, 1, 1], [], []>} : vector<16x128xbf16>, vector<128x384xbf16>, vector<16x384xf32> -> vector<16x384xf32>
    %244 = vector.broadcast %221 : vector<1x384xf32> to vector<16x384xf32>
    %245 = arith.addf %243, %244 : vector<16x384xf32>
    %246 = vector.extract_strided_slice %245 {offsets = [0, 0], sizes = [8, 64], strides = [1, 1]} : vector<16x384xf32> to vector<8x64xf32>
    %247 = arith.truncf %246 : vector<8x64xf32> to vector<8x64xbf16>
    %248 = vector.extract_strided_slice %245 {offsets = [0, 128], sizes = [8, 64], strides = [1, 1]} : vector<16x384xf32> to vector<8x64xf32>
    %249 = arith.truncf %248 : vector<8x64xf32> to vector<8x64xbf16>
    %250 = vector.extract_strided_slice %245 {offsets = [0, 256], sizes = [8, 64], strides = [1, 1]} : vector<16x384xf32> to vector<8x64xf32>
    %251 = arith.truncf %250 : vector<8x64xf32> to vector<8x64xbf16>
    %cst_120 = arith.constant dense<0.000000e+00> : vector<8x8xf32>
    %252 = tpu.matmul %247, %249, %cst_120 {dimension_numbers = #tpu.dot_dimension_numbers<[1], [1], [0], [0], [0, 0, 1, 0], [], []>} : vector<8x64xbf16>, vector<8x64xbf16>, vector<8x8xf32> -> vector<8x8xf32>
    %253 = arith.addf %252, %26 : vector<8x8xf32>
    %cst_121 = arith.constant dense<0xFF800000> : vector<8xf32>
    %254 = vector.multi_reduction <maximumf>, %253, %cst_121 [1] : vector<8x8xf32> to vector<8xf32>
    %255 = vector.shape_cast %254 : vector<8xf32> to vector<8x1xf32>
    %256 = vector.broadcast %255 : vector<8x1xf32> to vector<8x8xf32>
    %257 = arith.subf %253, %256 : vector<8x8xf32>
    %258 = math.exp %257 : vector<8x8xf32>
    %cst_122 = arith.constant dense<0.000000e+00> : vector<8xf32>
    %259 = vector.multi_reduction <add>, %258, %cst_122 [1] : vector<8x8xf32> to vector<8xf32>
    %260 = vector.shape_cast %259 : vector<8xf32> to vector<8x1xf32>
    %261 = tpu.reciprocal %260 {approx = true} : vector<8x1xf32> -> vector<8x1xf32>
    %262 = vector.broadcast %261 : vector<8x1xf32> to vector<8x8xf32>
    %263 = arith.mulf %258, %262 : vector<8x8xf32>
    %264 = arith.truncf %263 : vector<8x8xf32> to vector<8x8xbf16>
    %cst_123 = arith.constant dense<0.000000e+00> : vector<8x64xf32>
    %265 = tpu.matmul %264, %251, %cst_123 {dimension_numbers = #tpu.dot_dimension_numbers<[1], [0], [0], [1], [0, 0, 1, 1], [], []>} : vector<8x8xbf16>, vector<8x64xbf16>, vector<8x64xf32> -> vector<8x64xf32>
    %266 = arith.truncf %265 : vector<8x64xf32> to vector<8x64xbf16>
    %267 = vector.extract_strided_slice %223 {offsets = [0, 0], sizes = [64, 128], strides = [1, 1]} : vector<128x128xbf16> to vector<64x128xbf16>
    %cst_124 = arith.constant dense<0.000000e+00> : vector<8x128xf32>
    %268 = tpu.matmul %266, %267, %cst_124 {dimension_numbers = #tpu.dot_dimension_numbers<[1], [0], [0], [1], [0, 0, 1, 1], [], []>} : vector<8x64xbf16>, vector<64x128xbf16>, vector<8x128xf32> -> vector<8x128xf32>
    %269 = vector.extract_strided_slice %245 {offsets = [0, 64], sizes = [8, 64], strides = [1, 1]} : vector<16x384xf32> to vector<8x64xf32>
    %270 = arith.truncf %269 : vector<8x64xf32> to vector<8x64xbf16>
    %271 = vector.extract_strided_slice %245 {offsets = [0, 192], sizes = [8, 64], strides = [1, 1]} : vector<16x384xf32> to vector<8x64xf32>
    %272 = arith.truncf %271 : vector<8x64xf32> to vector<8x64xbf16>
    %273 = vector.extract_strided_slice %245 {offsets = [0, 320], sizes = [8, 64], strides = [1, 1]} : vector<16x384xf32> to vector<8x64xf32>
    %274 = arith.truncf %273 : vector<8x64xf32> to vector<8x64xbf16>
    %cst_125 = arith.constant dense<0.000000e+00> : vector<8x8xf32>
    %275 = tpu.matmul %270, %272, %cst_125 {dimension_numbers = #tpu.dot_dimension_numbers<[1], [1], [0], [0], [0, 0, 1, 0], [], []>} : vector<8x64xbf16>, vector<8x64xbf16>, vector<8x8xf32> -> vector<8x8xf32>
    %276 = arith.addf %275, %26 : vector<8x8xf32>
    %cst_126 = arith.constant dense<0xFF800000> : vector<8xf32>
    %277 = vector.multi_reduction <maximumf>, %276, %cst_126 [1] : vector<8x8xf32> to vector<8xf32>
    %278 = vector.shape_cast %277 : vector<8xf32> to vector<8x1xf32>
    %279 = vector.broadcast %278 : vector<8x1xf32> to vector<8x8xf32>
    %280 = arith.subf %276, %279 : vector<8x8xf32>
    %281 = math.exp %280 : vector<8x8xf32>
    %cst_127 = arith.constant dense<0.000000e+00> : vector<8xf32>
    %282 = vector.multi_reduction <add>, %281, %cst_127 [1] : vector<8x8xf32> to vector<8xf32>
    %283 = vector.shape_cast %282 : vector<8xf32> to vector<8x1xf32>
    %284 = tpu.reciprocal %283 {approx = true} : vector<8x1xf32> -> vector<8x1xf32>
    %285 = vector.broadcast %284 : vector<8x1xf32> to vector<8x8xf32>
    %286 = arith.mulf %281, %285 : vector<8x8xf32>
    %287 = arith.truncf %286 : vector<8x8xf32> to vector<8x8xbf16>
    %cst_128 = arith.constant dense<0.000000e+00> : vector<8x64xf32>
    %288 = tpu.matmul %287, %274, %cst_128 {dimension_numbers = #tpu.dot_dimension_numbers<[1], [0], [0], [1], [0, 0, 1, 1], [], []>} : vector<8x8xbf16>, vector<8x64xbf16>, vector<8x64xf32> -> vector<8x64xf32>
    %289 = arith.truncf %288 : vector<8x64xf32> to vector<8x64xbf16>
    %290 = vector.extract_strided_slice %223 {offsets = [64, 0], sizes = [64, 128], strides = [1, 1]} : vector<128x128xbf16> to vector<64x128xbf16>
    %cst_129 = arith.constant dense<0.000000e+00> : vector<8x128xf32>
    %291 = tpu.matmul %289, %290, %cst_129 {dimension_numbers = #tpu.dot_dimension_numbers<[1], [0], [0], [1], [0, 0, 1, 1], [], []>} : vector<8x64xbf16>, vector<64x128xbf16>, vector<8x128xf32> -> vector<8x128xf32>
    %292 = arith.addf %268, %291 : vector<8x128xf32>
    %293 = vector.extract_strided_slice %245 {offsets = [8, 0], sizes = [8, 64], strides = [1, 1]} : vector<16x384xf32> to vector<8x64xf32>
    %294 = arith.truncf %293 : vector<8x64xf32> to vector<8x64xbf16>
    %295 = vector.extract_strided_slice %245 {offsets = [8, 128], sizes = [8, 64], strides = [1, 1]} : vector<16x384xf32> to vector<8x64xf32>
    %296 = arith.truncf %295 : vector<8x64xf32> to vector<8x64xbf16>
    %297 = vector.extract_strided_slice %245 {offsets = [8, 256], sizes = [8, 64], strides = [1, 1]} : vector<16x384xf32> to vector<8x64xf32>
    %298 = arith.truncf %297 : vector<8x64xf32> to vector<8x64xbf16>
    %cst_130 = arith.constant dense<0.000000e+00> : vector<8x8xf32>
    %299 = tpu.matmul %294, %296, %cst_130 {dimension_numbers = #tpu.dot_dimension_numbers<[1], [1], [0], [0], [0, 0, 1, 0], [], []>} : vector<8x64xbf16>, vector<8x64xbf16>, vector<8x8xf32> -> vector<8x8xf32>
    %300 = arith.addf %299, %29 : vector<8x8xf32>
    %cst_131 = arith.constant dense<0xFF800000> : vector<8xf32>
    %301 = vector.multi_reduction <maximumf>, %300, %cst_131 [1] : vector<8x8xf32> to vector<8xf32>
    %302 = vector.shape_cast %301 : vector<8xf32> to vector<8x1xf32>
    %303 = vector.broadcast %302 : vector<8x1xf32> to vector<8x8xf32>
    %304 = arith.subf %300, %303 : vector<8x8xf32>
    %305 = math.exp %304 : vector<8x8xf32>
    %cst_132 = arith.constant dense<0.000000e+00> : vector<8xf32>
    %306 = vector.multi_reduction <add>, %305, %cst_132 [1] : vector<8x8xf32> to vector<8xf32>
    %307 = vector.shape_cast %306 : vector<8xf32> to vector<8x1xf32>
    %308 = tpu.reciprocal %307 {approx = true} : vector<8x1xf32> -> vector<8x1xf32>
    %309 = vector.broadcast %308 : vector<8x1xf32> to vector<8x8xf32>
    %310 = arith.mulf %305, %309 : vector<8x8xf32>
    %311 = arith.truncf %310 : vector<8x8xf32> to vector<8x8xbf16>
    %cst_133 = arith.constant dense<0.000000e+00> : vector<8x64xf32>
    %312 = tpu.matmul %311, %298, %cst_133 {dimension_numbers = #tpu.dot_dimension_numbers<[1], [0], [0], [1], [0, 0, 1, 1], [], []>} : vector<8x8xbf16>, vector<8x64xbf16>, vector<8x64xf32> -> vector<8x64xf32>
    %313 = arith.truncf %312 : vector<8x64xf32> to vector<8x64xbf16>
    %314 = vector.extract_strided_slice %223 {offsets = [0, 0], sizes = [64, 128], strides = [1, 1]} : vector<128x128xbf16> to vector<64x128xbf16>
    %cst_134 = arith.constant dense<0.000000e+00> : vector<8x128xf32>
    %315 = tpu.matmul %313, %314, %cst_134 {dimension_numbers = #tpu.dot_dimension_numbers<[1], [0], [0], [1], [0, 0, 1, 1], [], []>} : vector<8x64xbf16>, vector<64x128xbf16>, vector<8x128xf32> -> vector<8x128xf32>
    %316 = vector.extract_strided_slice %245 {offsets = [8, 64], sizes = [8, 64], strides = [1, 1]} : vector<16x384xf32> to vector<8x64xf32>
    %317 = arith.truncf %316 : vector<8x64xf32> to vector<8x64xbf16>
    %318 = vector.extract_strided_slice %245 {offsets = [8, 192], sizes = [8, 64], strides = [1, 1]} : vector<16x384xf32> to vector<8x64xf32>
    %319 = arith.truncf %318 : vector<8x64xf32> to vector<8x64xbf16>
    %320 = vector.extract_strided_slice %245 {offsets = [8, 320], sizes = [8, 64], strides = [1, 1]} : vector<16x384xf32> to vector<8x64xf32>
    %321 = arith.truncf %320 : vector<8x64xf32> to vector<8x64xbf16>
    %cst_135 = arith.constant dense<0.000000e+00> : vector<8x8xf32>
    %322 = tpu.matmul %317, %319, %cst_135 {dimension_numbers = #tpu.dot_dimension_numbers<[1], [1], [0], [0], [0, 0, 1, 0], [], []>} : vector<8x64xbf16>, vector<8x64xbf16>, vector<8x8xf32> -> vector<8x8xf32>
    %323 = arith.addf %322, %29 : vector<8x8xf32>
    %cst_136 = arith.constant dense<0xFF800000> : vector<8xf32>
    %324 = vector.multi_reduction <maximumf>, %323, %cst_136 [1] : vector<8x8xf32> to vector<8xf32>
    %325 = vector.shape_cast %324 : vector<8xf32> to vector<8x1xf32>
    %326 = vector.broadcast %325 : vector<8x1xf32> to vector<8x8xf32>
    %327 = arith.subf %323, %326 : vector<8x8xf32>
    %328 = math.exp %327 : vector<8x8xf32>
    %cst_137 = arith.constant dense<0.000000e+00> : vector<8xf32>
    %329 = vector.multi_reduction <add>, %328, %cst_137 [1] : vector<8x8xf32> to vector<8xf32>
    %330 = vector.shape_cast %329 : vector<8xf32> to vector<8x1xf32>
    %331 = tpu.reciprocal %330 {approx = true} : vector<8x1xf32> -> vector<8x1xf32>
    %332 = vector.broadcast %331 : vector<8x1xf32> to vector<8x8xf32>
    %333 = arith.mulf %328, %332 : vector<8x8xf32>
    %334 = arith.truncf %333 : vector<8x8xf32> to vector<8x8xbf16>
    %cst_138 = arith.constant dense<0.000000e+00> : vector<8x64xf32>
    %335 = tpu.matmul %334, %321, %cst_138 {dimension_numbers = #tpu.dot_dimension_numbers<[1], [0], [0], [1], [0, 0, 1, 1], [], []>} : vector<8x8xbf16>, vector<8x64xbf16>, vector<8x64xf32> -> vector<8x64xf32>
    %336 = arith.truncf %335 : vector<8x64xf32> to vector<8x64xbf16>
    %337 = vector.extract_strided_slice %223 {offsets = [64, 0], sizes = [64, 128], strides = [1, 1]} : vector<128x128xbf16> to vector<64x128xbf16>
    %cst_139 = arith.constant dense<0.000000e+00> : vector<8x128xf32>
    %338 = tpu.matmul %336, %337, %cst_139 {dimension_numbers = #tpu.dot_dimension_numbers<[1], [0], [0], [1], [0, 0, 1, 1], [], []>} : vector<8x64xbf16>, vector<64x128xbf16>, vector<8x128xf32> -> vector<8x128xf32>
    %339 = arith.addf %315, %338 : vector<8x128xf32>
    %340 = tpu.concatenate %292, %339 in 0 : vector<8x128xf32>, vector<8x128xf32> -> vector<16x128xf32>
    %341 = vector.broadcast %225 : vector<1x128xf32> to vector<16x128xf32>
    %342 = arith.addf %340, %341 : vector<16x128xf32>
    %343 = arith.addf %342, %217 : vector<16x128xf32>
    %cst_140 = arith.constant dense<0.000000e+00> : vector<16xf32>
    %344 = vector.multi_reduction <add>, %343, %cst_140 [1] : vector<16x128xf32> to vector<16xf32>
    %345 = vector.shape_cast %344 : vector<16xf32> to vector<16x1xf32>
    %cst_141 = arith.constant 1.280000e+02 : f32
    %346 = vector.broadcast %cst_141 : f32 to vector<16x1xf32>
    %347 = arith.divf %345, %346 : vector<16x1xf32>
    %348 = vector.broadcast %347 : vector<16x1xf32> to vector<16x128xf32>
    %349 = arith.subf %343, %348 : vector<16x128xf32>
    %350 = arith.mulf %349, %349 : vector<16x128xf32>
    %cst_142 = arith.constant dense<0.000000e+00> : vector<16xf32>
    %351 = vector.multi_reduction <add>, %350, %cst_142 [1] : vector<16x128xf32> to vector<16xf32>
    %352 = vector.shape_cast %351 : vector<16xf32> to vector<16x1xf32>
    %cst_143 = arith.constant 1.280000e+02 : f32
    %353 = vector.broadcast %cst_143 : f32 to vector<16x1xf32>
    %354 = arith.divf %352, %353 : vector<16x1xf32>
    %cst_144 = arith.constant 9.99999996E-13 : f32
    %355 = vector.broadcast %cst_144 : f32 to vector<16x1xf32>
    %356 = arith.addf %354, %355 : vector<16x1xf32>
    %357 = math.rsqrt %356 : vector<16x1xf32>
    %358 = vector.broadcast %357 : vector<16x1xf32> to vector<16x128xf32>
    %359 = arith.mulf %349, %358 : vector<16x128xf32>
    %360 = vector.broadcast %227 : vector<1x128xf32> to vector<16x128xf32>
    %361 = arith.mulf %359, %360 : vector<16x128xf32>
    %362 = vector.broadcast %229 : vector<1x128xf32> to vector<16x128xf32>
    %363 = arith.addf %361, %362 : vector<16x128xf32>
    %364 = arith.truncf %363 : vector<16x128xf32> to vector<16x128xbf16>
    %cst_145 = arith.constant dense<0.000000e+00> : vector<16x256xf32>
    %365 = tpu.matmul %364, %231, %cst_145 {dimension_numbers = #tpu.dot_dimension_numbers<[1], [0], [0], [1], [0, 0, 1, 1], [], []>} : vector<16x128xbf16>, vector<128x256xbf16>, vector<16x256xf32> -> vector<16x256xf32>
    %366 = vector.broadcast %233 : vector<1x256xf32> to vector<16x256xf32>
    %367 = arith.addf %365, %366 : vector<16x256xf32>
    %cst_146 = arith.constant 5.000000e-01 : f32
    %368 = vector.broadcast %cst_146 : f32 to vector<16x256xf32>
    %369 = arith.mulf %368, %367 : vector<16x256xf32>
    %cst_147 = arith.constant 4.471500e-02 : f32
    %370 = vector.broadcast %cst_147 : f32 to vector<16x256xf32>
    %371 = arith.mulf %370, %367 : vector<16x256xf32>
    %372 = arith.mulf %371, %367 : vector<16x256xf32>
    %373 = arith.mulf %372, %367 : vector<16x256xf32>
    %374 = arith.addf %367, %373 : vector<16x256xf32>
    %cst_148 = arith.constant 0.797884583 : f32
    %375 = vector.broadcast %cst_148 : f32 to vector<16x256xf32>
    %376 = arith.mulf %375, %374 : vector<16x256xf32>
    %377 = math.tanh %376 : vector<16x256xf32>
    %cst_149 = arith.constant 1.000000e+00 : f32
    %378 = vector.broadcast %cst_149 : f32 to vector<16x256xf32>
    %379 = arith.addf %378, %377 : vector<16x256xf32>
    %380 = arith.mulf %369, %379 : vector<16x256xf32>
    %381 = arith.truncf %380 : vector<16x256xf32> to vector<16x256xbf16>
    %cst_150 = arith.constant dense<0.000000e+00> : vector<16x128xf32>
    %382 = tpu.matmul %381, %235, %cst_150 {dimension_numbers = #tpu.dot_dimension_numbers<[1], [0], [0], [1], [0, 0, 1, 1], [], []>} : vector<16x256xbf16>, vector<256x128xbf16>, vector<16x128xf32> -> vector<16x128xf32>
    %383 = vector.broadcast %237 : vector<1x128xf32> to vector<16x128xf32>
    %384 = arith.addf %382, %383 : vector<16x128xf32>
    %385 = arith.addf %384, %363 : vector<16x128xf32>
    %cst_151 = arith.constant dense<0.000000e+00> : vector<16xf32>
    %386 = vector.multi_reduction <add>, %385, %cst_151 [1] : vector<16x128xf32> to vector<16xf32>
    %387 = vector.shape_cast %386 : vector<16xf32> to vector<16x1xf32>
    %cst_152 = arith.constant 1.280000e+02 : f32
    %388 = vector.broadcast %cst_152 : f32 to vector<16x1xf32>
    %389 = arith.divf %387, %388 : vector<16x1xf32>
    %390 = vector.broadcast %389 : vector<16x1xf32> to vector<16x128xf32>
    %391 = arith.subf %385, %390 : vector<16x128xf32>
    %392 = arith.mulf %391, %391 : vector<16x128xf32>
    %cst_153 = arith.constant dense<0.000000e+00> : vector<16xf32>
    %393 = vector.multi_reduction <add>, %392, %cst_153 [1] : vector<16x128xf32> to vector<16xf32>
    %394 = vector.shape_cast %393 : vector<16xf32> to vector<16x1xf32>
    %cst_154 = arith.constant 1.280000e+02 : f32
    %395 = vector.broadcast %cst_154 : f32 to vector<16x1xf32>
    %396 = arith.divf %394, %395 : vector<16x1xf32>
    %cst_155 = arith.constant 9.99999996E-13 : f32
    %397 = vector.broadcast %cst_155 : f32 to vector<16x1xf32>
    %398 = arith.addf %396, %397 : vector<16x1xf32>
    %399 = math.rsqrt %398 : vector<16x1xf32>
    %400 = vector.broadcast %399 : vector<16x1xf32> to vector<16x128xf32>
    %401 = arith.mulf %391, %400 : vector<16x128xf32>
    %402 = vector.broadcast %239 : vector<1x128xf32> to vector<16x128xf32>
    %403 = arith.mulf %401, %402 : vector<16x128xf32>
    %404 = vector.broadcast %241 : vector<1x128xf32> to vector<16x128xf32>
    %405 = arith.addf %403, %404 : vector<16x128xf32>
    %406 = vector.extract_strided_slice %405 {offsets = [0, 0], sizes = [1, 128], strides = [1, 1]} : vector<16x128xf32> to vector<1x128xf32>
    %407 = vector.extract_strided_slice %405 {offsets = [8, 0], sizes = [1, 128], strides = [1, 1]} : vector<16x128xf32> to vector<1x128xf32>
    %408 = tpu.concatenate %406, %407 in 0 : vector<1x128xf32>, vector<1x128xf32> -> vector<2x128xf32>
    %409 = arith.truncf %408 : vector<2x128xf32> to vector<2x128xbf16>
    %c0_156 = arith.constant 0 : index
    %c0_157 = arith.constant 0 : index
    %410 = vector.load %arg17[%c0_156, %c0_157] : memref<128x128xbf16, #tpu.memory_space<vmem>>, vector<128x128xbf16>
    %cst_158 = arith.constant dense<0.000000e+00> : vector<2x128xf32>
    %411 = tpu.matmul %409, %410, %cst_158 {dimension_numbers = #tpu.dot_dimension_numbers<[1], [0], [0], [1], [0, 0, 1, 1], [], []>} : vector<2x128xbf16>, vector<128x128xbf16>, vector<2x128xf32> -> vector<2x128xf32>
    %c0_159 = arith.constant 0 : index
    %c0_160 = arith.constant 0 : index
    %412 = vector.load %arg18[%c0_159, %c0_160] : memref<1x128xf32, #tpu.memory_space<vmem>>, vector<1x128xf32>
    %413 = vector.broadcast %412 : vector<1x128xf32> to vector<2x128xf32>
    %414 = arith.addf %411, %413 : vector<2x128xf32>
    %415 = math.tanh %414 : vector<2x128xf32>
    %416 = arith.truncf %415 : vector<2x128xf32> to vector<2x128xbf16>
    %c0_161 = arith.constant 0 : index
    %c0_162 = arith.constant 0 : index
    %417 = vector.load %arg19[%c0_161, %c0_162] : memref<128x128xbf16, #tpu.memory_space<vmem>>, vector<128x128xbf16>
    %cst_163 = arith.constant dense<0.000000e+00> : vector<2x128xf32>
    %418 = tpu.matmul %416, %417, %cst_163 {dimension_numbers = #tpu.dot_dimension_numbers<[1], [0], [0], [1], [0, 0, 1, 1], [], []>} : vector<2x128xbf16>, vector<128x128xbf16>, vector<2x128xf32> -> vector<2x128xf32>
    %c0_164 = arith.constant 0 : index
    %c0_165 = arith.constant 0 : index
    %419 = vector.load %arg20[%c0_164, %c0_165] : memref<1x128xf32, #tpu.memory_space<vmem>>, vector<1x128xf32>
    %420 = vector.broadcast %419 : vector<1x128xf32> to vector<2x128xf32>
    %421 = arith.addf %418, %420 : vector<2x128xf32>
    %cst_166 = arith.constant 0.000000e+00 : f32
    %422 = vector.broadcast %cst_166 : f32 to vector<2x128xf32>
    %423 = arith.maximumf %421, %422 : vector<2x128xf32>
    %c0_167 = arith.constant 0 : index
    %c0_168 = arith.constant 0 : index
    %424 = vector.load %arg21[%c0_167, %c0_168] : memref<2x128xf32, #tpu.memory_space<vmem>>, vector<2x128xf32>
    tpu.vector_store %arg21[%c0_167, %c0_168], %423 {strides = array<i32>} : memref<2x128xf32, #tpu.memory_space<vmem>>, vector<2x128xf32>,
    return
  }
  func.func @transform_0(%arg0: i32) -> (i32, i32) {
    %c0_i32 = arith.constant 0 : i32
    %c0_i32_0 = arith.constant 0 : i32
    %c0_i32_1 = arith.constant 0 : i32
    return %c0_i32, %c0_i32_0 : i32, i32
  }
  func.func @transform_1(%arg0: i32) -> (i32, i32) {
    %c0_i32 = arith.constant 0 : i32
    %c0_i32_0 = arith.constant 0 : i32
    %c0_i32_1 = arith.constant 0 : i32
    return %c0_i32, %c0_i32_0 : i32, i32
  }
  func.func @transform_2(%arg0: i32) -> (i32, i32) {
    %c0_i32 = arith.constant 0 : i32
    %c0_i32_0 = arith.constant 0 : i32
    %c0_i32_1 = arith.constant 0 : i32
    return %c0_i32, %c0_i32_0 : i32, i32
  }
  func.func @transform_3(%arg0: i32) -> (i32, i32) {
    %c0_i32 = arith.constant 0 : i32
    %c0_i32_0 = arith.constant 0 : i32
    %c0_i32_1 = arith.constant 0 : i32
    return %c0_i32, %c0_i32_0 : i32, i32
  }
  func.func @transform_4(%arg0: i32) -> (i32, i32, i32) {
    %c0_i32 = arith.constant 0 : i32
    %c0_i32_0 = arith.constant 0 : i32
    %c0_i32_1 = arith.constant 0 : i32
    %c0_i32_2 = arith.constant 0 : i32
    return %c0_i32, %c0_i32_0, %c0_i32_1 : i32, i32, i32
  }
  func.func @transform_5(%arg0: i32) -> (i32, i32, i32) {
    %c0_i32 = arith.constant 0 : i32
    %c0_i32_0 = arith.constant 0 : i32
    %c0_i32_1 = arith.constant 0 : i32
    %c0_i32_2 = arith.constant 0 : i32
    return %c0_i32, %c0_i32_0, %c0_i32_1 : i32, i32, i32
  }
  func.func @transform_6(%arg0: i32) -> (i32, i32, i32) {
    %c0_i32 = arith.constant 0 : i32
    %c0_i32_0 = arith.constant 0 : i32
    %c0_i32_1 = arith.constant 0 : i32
    %c0_i32_2 = arith.constant 0 : i32
    return %c0_i32, %c0_i32_0, %c0_i32_1 : i32, i32, i32
  }
  func.func @transform_7(%arg0: i32) -> (i32, i32, i32) {
    %c0_i32 = arith.constant 0 : i32
    %c0_i32_0 = arith.constant 0 : i32
    %c0_i32_1 = arith.constant 0 : i32
    %c0_i32_2 = arith.constant 0 : i32
    return %c0_i32, %c0_i32_0, %c0_i32_1 : i32, i32, i32
  }
  func.func @transform_8(%arg0: i32) -> (i32, i32, i32) {
    %c0_i32 = arith.constant 0 : i32
    %c0_i32_0 = arith.constant 0 : i32
    %c0_i32_1 = arith.constant 0 : i32
    %c0_i32_2 = arith.constant 0 : i32
    return %c0_i32, %c0_i32_0, %c0_i32_1 : i32, i32, i32
  }
  func.func @transform_9(%arg0: i32) -> (i32, i32, i32) {
    %c0_i32 = arith.constant 0 : i32
    %c0_i32_0 = arith.constant 0 : i32
    %c0_i32_1 = arith.constant 0 : i32
    %c0_i32_2 = arith.constant 0 : i32
    return %c0_i32, %c0_i32_0, %c0_i32_1 : i32, i32, i32
  }
  func.func @transform_10(%arg0: i32) -> (i32, i32, i32) {
    %c0_i32 = arith.constant 0 : i32
    %c0_i32_0 = arith.constant 0 : i32
    %c0_i32_1 = arith.constant 0 : i32
    %c0_i32_2 = arith.constant 0 : i32
    return %c0_i32, %c0_i32_0, %c0_i32_1 : i32, i32, i32
  }
  func.func @transform_11(%arg0: i32) -> (i32, i32, i32) {
    %c0_i32 = arith.constant 0 : i32
    %c0_i32_0 = arith.constant 0 : i32
    %c0_i32_1 = arith.constant 0 : i32
    %c0_i32_2 = arith.constant 0 : i32
    return %c0_i32, %c0_i32_0, %c0_i32_1 : i32, i32, i32
  }
  func.func @transform_12(%arg0: i32) -> (i32, i32, i32) {
    %c0_i32 = arith.constant 0 : i32
    %c0_i32_0 = arith.constant 0 : i32
    %c0_i32_1 = arith.constant 0 : i32
    %c0_i32_2 = arith.constant 0 : i32
    return %c0_i32, %c0_i32_0, %c0_i32_1 : i32, i32, i32
  }
  func.func @transform_13(%arg0: i32) -> (i32, i32, i32) {
    %c0_i32 = arith.constant 0 : i32
    %c0_i32_0 = arith.constant 0 : i32
    %c0_i32_1 = arith.constant 0 : i32
    %c0_i32_2 = arith.constant 0 : i32
    return %c0_i32, %c0_i32_0, %c0_i32_1 : i32, i32, i32
  }
  func.func @transform_14(%arg0: i32) -> (i32, i32, i32) {
    %c0_i32 = arith.constant 0 : i32
    %c0_i32_0 = arith.constant 0 : i32
    %c0_i32_1 = arith.constant 0 : i32
    %c0_i32_2 = arith.constant 0 : i32
    return %c0_i32, %c0_i32_0, %c0_i32_1 : i32, i32, i32
  }
  func.func @transform_15(%arg0: i32) -> (i32, i32, i32) {
    %c0_i32 = arith.constant 0 : i32
    %c0_i32_0 = arith.constant 0 : i32
    %c0_i32_1 = arith.constant 0 : i32
    %c0_i32_2 = arith.constant 0 : i32
    return %c0_i32, %c0_i32_0, %c0_i32_1 : i32, i32, i32
  }
  func.func @transform_16(%arg0: i32) -> (i32, i32) {
    %c0_i32 = arith.constant 0 : i32
    %c0_i32_0 = arith.constant 0 : i32
    %c0_i32_1 = arith.constant 0 : i32
    return %c0_i32, %c0_i32_0 : i32, i32
  }
  func.func @transform_17(%arg0: i32) -> (i32, i32) {
    %c0_i32 = arith.constant 0 : i32
    %c0_i32_0 = arith.constant 0 : i32
    %c0_i32_1 = arith.constant 0 : i32
    return %c0_i32, %c0_i32_0 : i32, i32
  }
  func.func @transform_18(%arg0: i32) -> (i32, i32) {
    %c0_i32 = arith.constant 0 : i32
    %c0_i32_0 = arith.constant 0 : i32
    %c0_i32_1 = arith.constant 0 : i32
    return %c0_i32, %c0_i32_0 : i32, i32
  }
  func.func @transform_19(%arg0: i32) -> (i32, i32) {
    %c0_i32 = arith.constant 0 : i32
    %c0_i32_0 = arith.constant 0 : i32
    %c0_i32_1 = arith.constant 0 : i32
    return %c0_i32, %c0_i32_0 : i32, i32
  }
  func.func @transform_20(%arg0: i32) -> (i32, i32) {
    %c0_i32 = arith.constant 0 : i32
    %c0_i32_0 = arith.constant 0 : i32
    %c0_i32_1 = arith.constant 0 : i32
    return %c0_i32, %c0_i32_0 : i32, i32
  }
}

</mosaic_0001>

<llo_original>
// kernel: bert_classifier_forward.1
$region0: #{bert_classifier_forward.1}
  #allocation0 [shape = 'u32[]', space=smem, size = 0x4, offset = 0x4, fixed_abs, tag = 'smem constant byte address 0x4 - core index']
  #allocation1 [shape = 'u32[72,128]{1,0:T(1,128)}', space=vmem, size = 0x9000, scoped, tag = 'internal scratch']
  %s0 = inlined_call_operand.vmem [shape: f32[16,128], index: 0, kind: input, shape index: {}]
  %s1 = inlined_call_operand.vmem [shape: f32[2,8], index: 1, kind: input, shape index: {}]
  %s2 = inlined_call_operand.vmem [shape: f32[1,128], index: 2, kind: input, shape index: {}]
  %s3 = inlined_call_operand.vmem [shape: f32[1,128], index: 3, kind: input, shape index: {}]
  %s4 = inlined_call_operand.hbm [shape: bf16[2,128,384], index: 4, kind: input, shape index: {}]
  %s5 = inlined_call_operand.vmem [shape: f32[2,1,384], index: 5, kind: input, shape index: {}]
  %s6 = inlined_call_operand.vmem [shape: bf16[2,128,128], index: 6, kind: input, shape index: {}]
  %s7 = inlined_call_operand.vmem [shape: f32[2,1,128], index: 7, kind: input, shape index: {}]
  %s8 = inlined_call_operand.vmem [shape: f32[2,1,128], index: 8, kind: input, shape index: {}]
  %s9 = inlined_call_operand.vmem [shape: f32[2,1,128], index: 9, kind: input, shape index: {}]
  %s10 = inlined_call_operand.hbm [shape: bf16[2,128,256], index: 10, kind: input, shape index: {}]
  %s11 = inlined_call_operand.vmem [shape: f32[2,1,256], index: 11, kind: input, shape index: {}]
  %s12 = inlined_call_operand.hbm [shape: bf16[2,256,128], index: 12, kind: input, shape index: {}]
  %s13 = inlined_call_operand.vmem [shape: f32[2,1,128], index: 13, kind: input, shape index: {}]
  %s14 = inlined_call_operand.vmem [shape: f32[2,1,128], index: 14, kind: input, shape index: {}]
  %s15 = inlined_call_operand.vmem [shape: f32[2,1,128], index: 15, kind: input, shape index: {}]
  %s16 = inlined_call_operand.hbm [shape: bf16[128,128], index: 16, kind: input, shape index: {}]
  %s17 = inlined_call_operand.vmem [shape: f32[1,128], index: 17, kind: input, shape index: {}]
  %s18 = inlined_call_operand.hbm [shape: bf16[128,128], index: 18, kind: input, shape index: {}]
  %s19 = inlined_call_operand.vmem [shape: f32[1,128], index: 19, kind: input, shape index: {}]
  %s20 = inlined_call_operand.hbm [shape: f32[2,128], index: 20, kind: output, shape index: {}]
  %s21 = sld [smem:[#allocation0]]
  $region110: #{bert_classifier_forward.1} parent=0
    _
  %s23 = ssub.s32 1, %s21
  %s24 = scalar_select 0, %s23, %s21
  $region1: #{bert_classifier_forward.1} parent=0
    #allocation2 [shape = 'u8[196608]{0}', space=vmem, size = 0x30000, scoped, tag = 'input window, operand 4, single buffered']
    #allocation3 [shape = 's32[1]{0}', space=sflag, size = 0x4, scoped, tag = 'scoped memory for bert_classifier_forward.1']
    #allocation4 [shape = 's32[1]{0}', space=sflag, size = 0x4, scoped, tag = 'scoped memory for bert_classifier_forward.1']
    #allocation5 [shape = 'u8[131072]{0}', space=vmem, size = 0x20000, scoped, tag = 'input window, operand 10, single buffered']
    #allocation6 [shape = 's32[1]{0}', space=sflag, size = 0x4, scoped, tag = 'scoped memory for bert_classifier_forward.1']
    #allocation7 [shape = 'u8[131072]{0}', space=vmem, size = 0x20000, scoped, tag = 'input window, operand 12, single buffered']
    #allocation8 [shape = 'u8[32768]{0}', space=vmem, size = 0x8000, scoped, tag = 'input window, operand 16, single buffered']
    #allocation9 [shape = 's32[1]{0}', space=sflag, size = 0x4, scoped, tag = 'scoped memory for bert_classifier_forward.1']
    #allocation10 [shape = 'u8[32768]{0}', space=vmem, size = 0x8000, scoped, tag = 'input window, operand 18, single buffered']
    #allocation11 [shape = 'u8[1024]{0}', space=vmem, size = 0x400, scoped, tag = 'output window, operand 0, single buffered']
    %25 = vsyncpa [#allocation3], 0
    %26 = vsyncpa [#allocation6], 0
    %27 = vsyncpa [#allocation9], 0
    %28 = vsyncpa [#allocation4], 0
    // Predicated region
    $region2: #{bert_classifier_forward.1} parent=1 // pred_check
      _
    $region3: #{bert_classifier_forward.1} parent=1 // pred_check_branch
      %30 = sbr.rel (0) target = $region5
    $region4: #{bert_classifier_forward.1} parent=1 // pred_region
      _
    $region5: #{bert_classifier_forward.1} parent=1 // pred_fallthru
      _
    // Predicated region
    $region6: #{bert_classifier_forward.1} parent=1 // pred_check
      _
    $region7: #{bert_classifier_forward.1} parent=1 // pred_check_branch
      %32 = sbr.rel (0) target = $region9
    $region8: #{bert_classifier_forward.1} parent=1 // pred_region
      _
    $region9: #{bert_classifier_forward.1} parent=1 // pred_fallthru
      _
    // Predicated region
    $region10: #{bert_classifier_forward.1} parent=1 // pred_check
      _
    $region11: #{bert_classifier_forward.1} parent=1 // pred_check_branch
      %34 = sbr.rel (0) target = $region13
    $region12: #{bert_classifier_forward.1} parent=1 // pred_region
      _
    $region13: #{bert_classifier_forward.1} parent=1 // pred_fallthru
      _
    // Predicated region
    $region14: #{bert_classifier_forward.1} parent=1 // pred_check
      _
    $region15: #{bert_classifier_forward.1} parent=1 // pred_check_branch
      %36 = sbr.rel (0) target = $region17
    $region16: #{bert_classifier_forward.1} parent=1 // pred_region
      _
    $region17: #{bert_classifier_forward.1} parent=1 // pred_fallthru
      _
    // Predicated region
    $region18: #{bert_classifier_forward.1} parent=1 // pred_check
      _
    $region19: #{bert_classifier_forward.1} parent=1 // pred_check_branch
      %38 = sbr.rel (0) target = $region21
    $region20: #{bert_classifier_forward.1} parent=1 // pred_region
      %40 = vsyncadd [#allocation3], 0
      %s41 = sshll.u32 %s4, 4
      %s42 = int_to_ptr.hbm [resolvable:$true] %s41
      %s43 = sshll.u32 [#allocation2], 4
      %s44 = int_to_ptr.vmem [resolvable:$true] %s43
      %49 = dma.hbm_to_vmem [thread:$0]  %s42, 6144, %s44, [#allocation3], 192, 192, 12
    $region21: #{bert_classifier_forward.1} parent=1 // pred_fallthru
      _
    // Predicated region
    $region22: #{bert_classifier_forward.1} parent=1 // pred_check
      _
    $region23: #{bert_classifier_forward.1} parent=1 // pred_check_branch
      %51 = sbr.rel (0) target = $region25
    $region24: #{bert_classifier_forward.1} parent=1 // pred_region
      _
    $region25: #{bert_classifier_forward.1} parent=1 // pred_fallthru
      _
    // Predicated region
    $region26: #{bert_classifier_forward.1} parent=1 // pred_check
      _
    $region27: #{bert_classifier_forward.1} parent=1 // pred_check_branch
      %53 = sbr.rel (0) target = $region29
    $region28: #{bert_classifier_forward.1} parent=1 // pred_region
      _
    $region29: #{bert_classifier_forward.1} parent=1 // pred_fallthru
      _
    // Predicated region
    $region30: #{bert_classifier_forward.1} parent=1 // pred_check
      _
    $region31: #{bert_classifier_forward.1} parent=1 // pred_check_branch
      %55 = sbr.rel (0) target = $region33
    $region32: #{bert_classifier_forward.1} parent=1 // pred_region
      _
    $region33: #{bert_classifier_forward.1} parent=1 // pred_fallthru
      _
    // Predicated region
    $region34: #{bert_classifier_forward.1} parent=1 // pred_check
      _
    $region35: #{bert_classifier_forward.1} parent=1 // pred_check_branch
      %57 = sbr.rel (0) target = $region37
    $region36: #{bert_classifier_forward.1} parent=1 // pred_region
      _
    $region37: #{bert_classifier_forward.1} parent=1 // pred_fallthru
      _
    // Predicated region
    $region38: #{bert_classifier_forward.1} parent=1 // pred_check
      _
    $region39: #{bert_classifier_forward.1} parent=1 // pred_check_branch
      %59 = sbr.rel (0) target = $region41
    $region40: #{bert_classifier_forward.1} parent=1 // pred_region
      _
    $region41: #{bert_classifier_forward.1} parent=1 // pred_fallthru
      _
    // Predicated region
    $region42: #{bert_classifier_forward.1} parent=1 // pred_check
      _
    $region43: #{bert_classifier_forward.1} parent=1 // pred_check_branch
      %61 = sbr.rel (0) target = $region45
    $region44: #{bert_classifier_forward.1} parent=1 // pred_region
      %63 = vsyncadd [#allocation6], 0
      %s64 = sshll.u32 %s10, 4
      %s65 = int_to_ptr.hbm [resolvable:$true] %s64
      %s66 = sshll.u32 [#allocation5], 4
      %s67 = int_to_ptr.vmem [resolvable:$true] %s66
      %72 = dma.hbm_to_vmem [thread:$0]  %s65, 4096, %s67, [#allocation6], 128, 128, 8
    $region45: #{bert_classifier_forward.1} parent=1 // pred_fallthru
      _
    // Predicated region
    $region46: #{bert_classifier_forward.1} parent=1 // pred_check
      _
    $region47: #{bert_classifier_forward.1} parent=1 // pred_check_branch
      %74 = sbr.rel (0) target = $region49
    $region48: #{bert_classifier_forward.1} parent=1 // pred_region
      _
    $region49: #{bert_classifier_forward.1} parent=1 // pred_fallthru
      _
    // Predicated region
    $region50: #{bert_classifier_forward.1} parent=1 // pred_check
      _
    $region51: #{bert_classifier_forward.1} parent=1 // pred_check_branch
      %76 = sbr.rel (0) target = $region53
    $region52: #{bert_classifier_forward.1} parent=1 // pred_region
      %78 = vsyncadd [#allocation6], 0
      %s79 = sshll.u32 %s12, 4
      %s80 = int_to_ptr.hbm [resolvable:$true] %s79
      %s81 = sshll.u32 [#allocation7], 4
      %s82 = int_to_ptr.vmem [resolvable:$true] %s81
      %87 = dma.hbm_to_vmem [thread:$0]  %s80, 4096, %s82, [#allocation6], 64, 64, 4
    $region53: #{bert_classifier_forward.1} parent=1 // pred_fallthru
      _
    // Predicated region
    $region54: #{bert_classifier_forward.1} parent=1 // pred_check
      _
    $region55: #{bert_classifier_forward.1} parent=1 // pred_check_branch
      %89 = sbr.rel (0) target = $region57
    $region56: #{bert_classifier_forward.1} parent=1 // pred_region
      _
    $region57: #{bert_classifier_forward.1} parent=1 // pred_fallthru
      _
    // Predicated region
    $region58: #{bert_classifier_forward.1} parent=1 // pred_check
      _
    $region59: #{bert_classifier_forward.1} parent=1 // pred_check_branch
      %91 = sbr.rel (0) target = $region61
    $region60: #{bert_classifier_forward.1} parent=1 // pred_region
      _
    $region61: #{bert_classifier_forward.1} parent=1 // pred_fallthru
      _
    // Predicated region
    $region62: #{bert_classifier_forward.1} parent=1 // pred_check
      _
    $region63: #{bert_classifier_forward.1} parent=1 // pred_check_branch
      %93 = sbr.rel (0) target = $region65
    $region64: #{bert_classifier_forward.1} parent=1 // pred_region
      _
    $region65: #{bert_classifier_forward.1} parent=1 // pred_fallthru
      _
    // Predicated region
    $region66: #{bert_classifier_forward.1} parent=1 // pred_check
      _
    $region67: #{bert_classifier_forward.1} parent=1 // pred_check_branch
      %95 = sbr.rel (0) target = $region69
    $region68: #{bert_classifier_forward.1} parent=1 // pred_region
      %97 = vsyncadd [#allocation9], 0
      %s98 = sshll.u32 %s16, 4
      %s99 = int_to_ptr.hbm [resolvable:$true] %s98
      %s100 = sshll.u32 [#allocation8], 4
      %s101 = int_to_ptr.vmem [resolvable:$true] %s100
      %106 = dma.hbm_to_vmem [thread:$0]  %s99, 1024, %s101, [#allocation9], 64, 64, 4
    $region69: #{bert_classifier_forward.1} parent=1 // pred_fallthru
      _
    // Predicated region
    $region70: #{bert_classifier_forward.1} parent=1 // pred_check
      _
    $region71: #{bert_classifier_forward.1} parent=1 // pred_check_branch
      %108 = sbr.rel (0) target = $region73
    $region72: #{bert_classifier_forward.1} parent=1 // pred_region
      _
    $region73: #{bert_classifier_forward.1} parent=1 // pred_fallthru
      _
    // Predicated region
    $region74: #{bert_classifier_forward.1} parent=1 // pred_check
      _
    $region75: #{bert_classifier_forward.1} parent=1 // pred_check_branch
      %110 = sbr.rel (0) target = $region77
    $region76: #{bert_classifier_forward.1} parent=1 // pred_region
      %112 = vsyncadd [#allocation9], 0
      %s113 = sshll.u32 %s18, 4
      %s114 = int_to_ptr.hbm [resolvable:$true] %s113
      %s115 = sshll.u32 [#allocation10], 4
      %s116 = int_to_ptr.vmem [resolvable:$true] %s115
      %121 = dma.hbm_to_vmem [thread:$0]  %s114, 1024, %s116, [#allocation9], 64, 64, 4
    $region77: #{bert_classifier_forward.1} parent=1 // pred_fallthru
      _
    // Predicated region
    $region78: #{bert_classifier_forward.1} parent=1 // pred_check
      _
    $region79: #{bert_classifier_forward.1} parent=1 // pred_check_branch
      %123 = sbr.rel (0) target = $region81
    $region80: #{bert_classifier_forward.1} parent=1 // pred_region
      _
    $region81: #{bert_classifier_forward.1} parent=1 // pred_fallthru
      _
    // Predicated region
    $region82: #{bert_classifier_forward.1} parent=1 // pred_check
      _
    $region83: #{bert_classifier_forward.1} parent=1 // pred_check_branch
      %125 = sbr.rel (0) target = $region85
    $region84: #{bert_classifier_forward.1} parent=1 // pred_region
      %127 = dma.done [#allocation3], 6144
    $region85: #{bert_classifier_forward.1} parent=1 // pred_fallthru
      _
    // Predicated region
    $region86: #{bert_classifier_forward.1} parent=1 // pred_check
      _
    $region87: #{bert_classifier_forward.1} parent=1 // pred_check_branch
      %129 = sbr.rel (0) target = $region89
    $region88: #{bert_classifier_forward.1} parent=1 // pred_region
      %131 = dma.done [#allocation6], 4096
    $region89: #{bert_classifier_forward.1} parent=1 // pred_fallthru
      _
    // Predicated region
    $region90: #{bert_classifier_forward.1} parent=1 // pred_check
      _
    $region91: #{bert_classifier_forward.1} parent=1 // pred_check_branch
      %133 = sbr.rel (0) target = $region93
    $region92: #{bert_classifier_forward.1} parent=1 // pred_region
      %135 = dma.done [#allocation6], 4096
    $region93: #{bert_classifier_forward.1} parent=1 // pred_fallthru
      _
    // Predicated region
    $region94: #{bert_classifier_forward.1} parent=1 // pred_check
      _
    $region95: #{bert_classifier_forward.1} parent=1 // pred_check_branch
      %137 = sbr.rel (0) target = $region97
    $region96: #{bert_classifier_forward.1} parent=1 // pred_region
      %139 = dma.done [#allocation9], 1024
    $region97: #{bert_classifier_forward.1} parent=1 // pred_fallthru
      _
    // Predicated region
    $region98: #{bert_classifier_forward.1} parent=1 // pred_check
      _
    $region99: #{bert_classifier_forward.1} parent=1 // pred_check_branch
      %141 = sbr.rel (0) target = $region101
    $region100: #{bert_classifier_forward.1} parent=1 // pred_region
      %143 = dma.done [#allocation9], 1024
    $region101: #{bert_classifier_forward.1} parent=1 // pred_fallthru
      _
    %v145 = vld [vmem:[%s0] sm:$0xff]
    %v146 = vld [vmem:[%s0 + $0x8] sm:$0xff]
    %v147 = vld [vmem:[%s2] sm:$0x1]
    %v148 = vld [vmem:[%s3] sm:$0x1]
    %149 = vadd.xlane.f32.xlu0 %v145
    %v150 = vpop.xlane.xlu0 %149
    %151 = vadd.xlane.f32.xlu0 %v146
    %v152 = vpop.xlane.xlu0 %151
    %v153 = vrcp.pop 128.0
    %v154 = vmul.f32 128.0, %v153
    %v155 = vsub.f32 1.0, %v154
    %v156 = vmul.f32 %v153, %v155
    %v157 = vadd.f32 %v153, %v156
    %vm158 = vweird.f32 %v153
    %v159 = vsel %vm158, %v153, %v157
    %v160 = vmul.f32 %v150, %v159
    %v161 = vmul.f32 %v152, %v159
    %v162 = vsub.f32 %v145, %v160
    %v163 = vsub.f32 %v146, %v161
    %v164 = vmul.f32 %v162, %v162
    %v165 = vmul.f32 %v163, %v163
    %166 = vadd.xlane.f32.xlu0 %v164
    %v167 = vpop.xlane.xlu0 %166
    %168 = vadd.xlane.f32.xlu0 %v165
    %v169 = vpop.xlane.xlu0 %168
    %v170 = vmul.f32 %v167, %v159
    %v171 = vmul.f32 %v169, %v159
    %v172 = vadd.f32 %v170, 1e-12
    %v173 = vadd.f32 %v171, 1e-12
    %v174 = vrsqrt.pop %v172
    %v175 = vmul.f32 %v174, %v172
    %v176 = vmul.f32 %v175, %v174
    %v177 = vmul.f32 0.5, %v176
    %v178 = vsub.f32 1.5, %v177
    %v179 = vmul.f32 %v174, %v178
    %vm180 = vweird.f32 %v172
    %vm181 = vweird.f32 %v174
    %vm182 = vmor %vm180, %vm181
    %v183 = vsel %vm182, %v174, %v179
    %v184 = vrsqrt.pop %v173
    %v185 = vmul.f32 %v184, %v173
    %v186 = vmul.f32 %v185, %v184
    %v187 = vmul.f32 0.5, %v186
    %v188 = vsub.f32 1.5, %v187
    %v189 = vmul.f32 %v184, %v188
    %vm190 = vweird.f32 %v173
    %vm191 = vweird.f32 %v184
    %vm192 = vmor %vm190, %vm191
    %v193 = vsel %vm192, %v184, %v189
    %v194 = vmul.f32 %v162, %v183
    %v195 = vmul.f32 %v163, %v193
    %v197 = vperm.slane %v147, 0
    %v199 = vmul.f32 %v194, %v197
    %v200 = vmul.f32 %v195, %v197
    %v202 = vperm.slane %v148, 0
    %v204 = vadd.f32 %v199, %v202
    %v205 = vadd.f32 %v200, %v202
    %v206 = vld [vmem:[%s1] sm:$0x3]
    %v207 = vperm.slane %v206, 0
    %v208 = vperm.slane %v206, 1
    %v209 = vld [vmem:[#allocation2] sm:$0xff]
    %v210 = vld [vmem:[#allocation2 + $0x8] sm:$0xf]
    %v211 = vld [vmem:[#allocation2 + $0xc] sm:$0xff]
    %v212 = vld [vmem:[#allocation2 + $0x14] sm:$0xf]
    %v213 = vld [vmem:[#allocation2 + $0x18] sm:$0xff]
    %v214 = vld [vmem:[#allocation2 + $0x20] sm:$0xf]
    %v215 = vld [vmem:[#allocation2 + $0x24] sm:$0xff]
    %v216 = vld [vmem:[#allocation2 + $0x2c] sm:$0xf]
    %v217 = vld [vmem:[#allocation2 + $0x30] sm:$0xff]
    %v218 = vld [vmem:[#allocation2 + $0x38] sm:$0xf]
    %v219 = vld [vmem:[#allocation2 + $0x3c] sm:$0xff]
    %v220 = vld [vmem:[#allocation2 + $0x44] sm:$0xf]
    %v221 = vld [vmem:[#allocation2 + $0x48] sm:$0xff]
    %v222 = vld [vmem:[#allocation2 + $0x50] sm:$0xf]
    %v223 = vld [vmem:[#allocation2 + $0x54] sm:$0xff]
    %v224 = vld [vmem:[#allocation2 + $0x5c] sm:$0xf]
    %v225 = vld [vmem:[#allocation2 + $0x60] sm:$0xff]
    %v226 = vld [vmem:[#allocation2 + $0x68] sm:$0xf]
    %v227 = vld [vmem:[#allocation2 + $0x6c] sm:$0xff]
    %v228 = vld [vmem:[#allocation2 + $0x74] sm:$0xf]
    %v229 = vld [vmem:[#allocation2 + $0x78] sm:$0xff]
    %v230 = vld [vmem:[#allocation2 + $0x80] sm:$0xf]
    %v231 = vld [vmem:[#allocation2 + $0x84] sm:$0xff]
    %v232 = vld [vmem:[#allocation2 + $0x8c] sm:$0xf]
    %v233 = vld [vmem:[#allocation2 + $0x90] sm:$0xff]
    %v234 = vld [vmem:[#allocation2 + $0x98] sm:$0xf]
    %v235 = vld [vmem:[#allocation2 + $0x9c] sm:$0xff]
    %v236 = vld [vmem:[#allocation2 + $0xa4] sm:$0xf]
    %v237 = vld [vmem:[#allocation2 + $0xa8] sm:$0xff]
    %v238 = vld [vmem:[#allocation2 + $0xb0] sm:$0xf]
    %v239 = vld [vmem:[#allocation2 + $0xb4] sm:$0xff]
    %v240 = vld [vmem:[#allocation2 + $0xbc] sm:$0xf]
    %v241 = vld [vmem:[%s5] sm:$0x7]
    %v242 = vld [vmem:[%s6] sm:$0xf]
    %v243 = vld [vmem:[%s6 + $0x4] sm:$0xf]
    %v244 = vld [vmem:[%s6 + $0x8] sm:$0xf]
    %v245 = vld [vmem:[%s6 + $0xc] sm:$0xf]
    %v246 = vld [vmem:[%s6 + $0x10] sm:$0xf]
    %v247 = vld [vmem:[%s6 + $0x14] sm:$0xf]
    %v248 = vld [vmem:[%s6 + $0x18] sm:$0xf]
    %v249 = vld [vmem:[%s6 + $0x1c] sm:$0xf]
    %v250 = vld [vmem:[%s6 + $0x20] sm:$0xf]
    %v251 = vld [vmem:[%s6 + $0x24] sm:$0xf]
    %v252 = vld [vmem:[%s6 + $0x28] sm:$0xf]
    %v253 = vld [vmem:[%s6 + $0x2c] sm:$0xf]
    %v254 = vld [vmem:[%s6 + $0x30] sm:$0xf]
    %v255 = vld [vmem:[%s6 + $0x34] sm:$0xf]
    %v256 = vld [vmem:[%s6 + $0x38] sm:$0xf]
    %v257 = vld [vmem:[%s6 + $0x3c] sm:$0xf]
    %v258 = vld [vmem:[%s7] sm:$0x1]
    %v259 = vld [vmem:[%s8] sm:$0x1]
    %v260 = vld [vmem:[%s9] sm:$0x1]
    %v261 = vld [vmem:[#allocation5] sm:$0xff]
    %v262 = vld [vmem:[#allocation5 + $0x8] sm:$0xff]
    %v263 = vld [vmem:[#allocation5 + $0x10] sm:$0xff]
    %v264 = vld [vmem:[#allocation5 + $0x18] sm:$0xff]
    %v265 = vld [vmem:[#allocation5 + $0x20] sm:$0xff]
    %v266 = vld [vmem:[#allocation5 + $0x28] sm:$0xff]
    %v267 = vld [vmem:[#allocation5 + $0x30] sm:$0xff]
    %v268 = vld [vmem:[#allocation5 + $0x38] sm:$0xff]
    %v269 = vld [vmem:[#allocation5 + $0x40] sm:$0xff]
    %v270 = vld [vmem:[#allocation5 + $0x48] sm:$0xff]
    %v271 = vld [vmem:[#allocation5 + $0x50] sm:$0xff]
    %v272 = vld [vmem:[#allocation5 + $0x58] sm:$0xff]
    %v273 = vld [vmem:[#allocation5 + $0x60] sm:$0xff]
    %v274 = vld [vmem:[#allocation5 + $0x68] sm:$0xff]
    %v275 = vld [vmem:[#allocation5 + $0x70] sm:$0xff]
    %v276 = vld [vmem:[#allocation5 + $0x78] sm:$0xff]
    %v277 = vld [vmem:[%s11] sm:$0x3]
    %v278 = vld [vmem:[#allocation7] sm:$0xf]
    %v279 = vld [vmem:[#allocation7 + $0x4] sm:$0xf]
    %v280 = vld [vmem:[#allocation7 + $0x8] sm:$0xf]
    %v281 = vld [vmem:[#allocation7 + $0xc] sm:$0xf]
    %v282 = vld [vmem:[#allocation7 + $0x10] sm:$0xf]
    %v283 = vld [vmem:[#allocation7 + $0x14] sm:$0xf]
    %v284 = vld [vmem:[#allocation7 + $0x18] sm:$0xf]
    %v285 = vld [vmem:[#allocation7 + $0x1c] sm:$0xf]
    %v286 = vld [vmem:[#allocation7 + $0x20] sm:$0xf]
    %v287 = vld [vmem:[#allocation7 + $0x24] sm:$0xf]
    %v288 = vld [vmem:[#allocation7 + $0x28] sm:$0xf]
    %v289 = vld [vmem:[#allocation7 + $0x2c] sm:$0xf]
    %v290 = vld [vmem:[#allocation7 + $0x30] sm:$0xf]
    %v291 = vld [vmem:[#allocation7 + $0x34] sm:$0xf]
    %v292 = vld [vmem:[#allocation7 + $0x38] sm:$0xf]
    %v293 = vld [vmem:[#allocation7 + $0x3c] sm:$0xf]
    %v294 = vld [vmem:[#allocation7 + $0x40] sm:$0xf]
    %v295 = vld [vmem:[#allocation7 + $0x44] sm:$0xf]
    %v296 = vld [vmem:[#allocation7 + $0x48] sm:$0xf]
    %v297 = vld [vmem:[#allocation7 + $0x4c] sm:$0xf]
    %v298 = vld [vmem:[#allocation7 + $0x50] sm:$0xf]
    %v299 = vld [vmem:[#allocation7 + $0x54] sm:$0xf]
    %v300 = vld [vmem:[#allocation7 + $0x58] sm:$0xf]
    %v301 = vld [vmem:[#allocation7 + $0x5c] sm:$0xf]
    %v302 = vld [vmem:[#allocation7 + $0x60] sm:$0xf]
    %v303 = vld [vmem:[#allocation7 + $0x64] sm:$0xf]
    %v304 = vld [vmem:[#allocation7 + $0x68] sm:$0xf]
    %v305 = vld [vmem:[#allocation7 + $0x6c] sm:$0xf]
    %v306 = vld [vmem:[#allocation7 + $0x70] sm:$0xf]
    %v307 = vld [vmem:[#allocation7 + $0x74] sm:$0xf]
    %v308 = vld [vmem:[#allocation7 + $0x78] sm:$0xf]
    %v309 = vld [vmem:[#allocation7 + $0x7c] sm:$0xf]
    %v310 = vld [vmem:[%s13] sm:$0x1]
    %v311 = vld [vmem:[%s14] sm:$0x1]
    %v312 = vld [vmem:[%s15] sm:$0x1]
    %v313 = vpack.c.bf16 %v205, %v204
    %v315 = vperm.slane %v241, 0
    %v316 = vperm.slane %v241, 1
    %v317 = vperm.slane %v241, 2
    %v353 = vunpack.c.l.b16 %v209
    %v354 = vunpack.c.h.b16 %v209
    %v355 = vunpack.c.l.b16 %v210
    %v356 = vunpack.c.l.b16 %v211
    %v357 = vunpack.c.h.b16 %v211
    %v358 = vunpack.c.l.b16 %v212
    %v359 = vunpack.c.l.b16 %v213
    %v360 = vunpack.c.h.b16 %v213
    %v361 = vunpack.c.l.b16 %v214
    %v362 = vunpack.c.l.b16 %v215
    %v363 = vunpack.c.h.b16 %v215
    %v364 = vunpack.c.l.b16 %v216
    %v365 = vunpack.c.l.b16 %v217
    %v366 = vunpack.c.h.b16 %v217
    %v367 = vunpack.c.l.b16 %v218
    %v368 = vunpack.c.l.b16 %v219
    %v369 = vunpack.c.h.b16 %v219
    %v370 = vunpack.c.l.b16 %v220
    %v371 = vunpack.c.l.b16 %v221
    %v372 = vunpack.c.h.b16 %v221
    %v373 = vunpack.c.l.b16 %v222
    %v374 = vunpack.c.l.b16 %v223
    %v375 = vunpack.c.h.b16 %v223
    %v376 = vunpack.c.l.b16 %v224
    %v377 = vunpack.c.l.b16 %v225
    %v378 = vunpack.c.h.b16 %v225
    %v379 = vunpack.c.l.b16 %v226
    %v380 = vunpack.c.l.b16 %v227
    %v381 = vunpack.c.h.b16 %v227
    %v382 = vunpack.c.l.b16 %v228
    %v383 = vunpack.c.l.b16 %v229
    %v384 = vunpack.c.h.b16 %v229
    %v385 = vunpack.c.l.b16 %v230
    %v386 = vunpack.c.l.b16 %v231
    %v387 = vunpack.c.h.b16 %v231
    %v388 = vunpack.c.l.b16 %v232
    %v389 = vunpack.c.l.b16 %v233
    %v390 = vunpack.c.h.b16 %v233
    %v391 = vunpack.c.l.b16 %v234
    %v392 = vunpack.c.l.b16 %v235
    %v393 = vunpack.c.h.b16 %v235
    %v394 = vunpack.c.l.b16 %v236
    %v395 = vunpack.c.l.b16 %v237
    %v396 = vunpack.c.h.b16 %v237
    %v397 = vunpack.c.l.b16 %v238
    %v398 = vunpack.c.l.b16 %v239
    %v399 = vunpack.c.h.b16 %v239
    %v400 = vunpack.c.l.b16 %v240
    %v401 = vpack.c.b16 %v356, %v353
    %v402 = vpack.c.b16 %v357, %v354
    %v403 = vpack.c.b16 %v358, %v355
    %v404 = vpack.c.b16 %v362, %v359
    %v405 = vpack.c.b16 %v363, %v360
    %v406 = vpack.c.b16 %v364, %v361
    %v407 = vpack.c.b16 %v368, %v365
    %v408 = vpack.c.b16 %v369, %v366
    %v409 = vpack.c.b16 %v370, %v367
    %v410 = vpack.c.b16 %v374, %v371
    %v411 = vpack.c.b16 %v375, %v372
    %v412 = vpack.c.b16 %v376, %v373
    %v413 = vpack.c.b16 %v380, %v377
    %v414 = vpack.c.b16 %v381, %v378
    %v415 = vpack.c.b16 %v382, %v379
    %v416 = vpack.c.b16 %v386, %v383
    %v417 = vpack.c.b16 %v387, %v384
    %v418 = vpack.c.b16 %v388, %v385
    %v419 = vpack.c.b16 %v392, %v389
    %v420 = vpack.c.b16 %v393, %v390
    %v421 = vpack.c.b16 %v394, %v391
    %v422 = vpack.c.b16 %v398, %v395
    %v423 = vpack.c.b16 %v399, %v396
    %v424 = vpack.c.b16 %v400, %v397
    %449 = vmatpush.bf16.msra.mxu0 %v422
    %450 = vmatpush.bf16.msra.mxu0 %v419
    %451 = vmatpush.bf16.msra.mxu0 %v416
    %452 = vmatpush.bf16.msra.mxu0 %v413
    %453 = vmatpush.bf16.msra.mxu0 %v410
    %454 = vmatpush.bf16.msra.mxu0 %v407
    %455 = vmatpush.bf16.msra.mxu0 %v404
    %456 = vmatpush.bf16.msra.mxu0 %v401
    %457 = vmatmul.bf16.gmra.mxu0 %v313
    %v458 = vpop.f32.mrf.mxu0
    %v459 = vadd.f32 %v315, %v458
    %v460 = vpop.f32.mrf.mxu0
    %v461 = vadd.f32 %v315, %v460
    %462 = vdwg.mxu0
    %463 = vmatpush.bf16.msra.mxu0 %v423
    %464 = vmatpush.bf16.msra.mxu0 %v420
    %465 = vmatpush.bf16.msra.mxu0 %v417
    %466 = vmatpush.bf16.msra.mxu0 %v414
    %467 = vmatpush.bf16.msra.mxu0 %v411
    %468 = vmatpush.bf16.msra.mxu0 %v408
    %469 = vmatpush.bf16.msra.mxu0 %v405
    %470 = vmatpush.bf16.msra.mxu0 %v402
    %471 = vmatmul.bf16.gmra.mxu0 %v313
    %v472 = vpop.f32.mrf.mxu0
    %v473 = vadd.f32 %v316, %v472
    %v474 = vpop.f32.mrf.mxu0
    %v475 = vadd.f32 %v316, %v474
    %476 = vdwg.mxu0
    %477 = vmatpush.bf16.msra.mxu0 %v424
    %478 = vmatpush.bf16.msra.mxu0 %v421
    %479 = vmatpush.bf16.msra.mxu0 %v418
    %480 = vmatpush.bf16.msra.mxu0 %v415
    %481 = vmatpush.bf16.msra.mxu0 %v412
    %482 = vmatpush.bf16.msra.mxu0 %v409
    %483 = vmatpush.bf16.msra.mxu0 %v406
    %484 = vmatpush.bf16.msra.mxu0 %v403
    %485 = vmatmul.bf16.gmra.mxu0 %v313
    %v486 = vpop.f32.mrf.mxu0
    %v487 = vadd.f32 %v317, %v486
    %v488 = vpop.f32.mrf.mxu0
    %v489 = vadd.f32 %v317, %v488
    %490 = vdwg.mxu0
    %v491 = vpack.c.bf16 %v459, %v459
    %v492 = vpack.c.bf16 %v473, %v473
    %v493 = vpack.c.bf16 %v487, %v487
    %vm494 = vcmask 523264
    %v496 = vsel %vm494, %v491, 0
    %v499 = vsel %vm494, %v492, 0
    %501 = vmatpush.bf16.xpose.msra.mxu0 0
    %502 = vmatpush.bf16.xpose.msra.mxu0 0
    %503 = vmatpush.bf16.xpose.msra.mxu0 0
    %504 = vmatpush.bf16.xpose.msra.mxu0 0
    %505 = vmatpush.bf16.xpose.msra.mxu0 0
    %506 = vmatpush.bf16.xpose.msra.mxu0 0
    %507 = vmatpush.bf16.xpose.msra.mxu0 0
    %508 = vmatpush.bf16.xpose.msra.mxu0 %v499
    %509 = vmatmul.bf16.gmra.mxu0 %v496
    %v510 = vpop.f32.mrf.mxu0
    %v511 = vadd.f32 %v207, %v510
    %v512 = vpop.f32.mrf.mxu0
    %513 = vdwg.mxu0
    %vm514 = vcmask 64512
    %v515 = vsel %vm514, %v511, -inf
    %516 = vmax.xlane.f32.xlu0 %v515
    %v517 = vpop.xlane.xlu0 %516
    %v518 = vsub.f32 %v511, %v517
    %v519 = vmul.f32 %v518, 1.442695
    %v520 = vpow.pop %v519
    %v521 = vsel %vm514, %v520, 0.0
    %522 = vadd.xlane.f32.xlu0 %v521
    %v523 = vpop.xlane.xlu0 %522
    %v524 = vrcp.pop %v523
    %v525 = vmul.f32 %v520, %v524
    %v526 = vpack.c.bf16 %v525, %v525
    %v528 = vsel %vm514, %v526, 0
    %vm530 = vcmask 1043456
    %v532 = vsel %vm530, %v493, 0
    %534 = vmatpush.bf16.msra.mxu0 0
    %535 = vmatpush.bf16.msra.mxu0 0
    %536 = vmatpush.bf16.msra.mxu0 0
    %537 = vmatpush.bf16.msra.mxu0 0
    %538 = vmatpush.bf16.msra.mxu0 0
    %539 = vmatpush.bf16.msra.mxu0 0
    %540 = vmatpush.bf16.msra.mxu0 0
    %541 = vmatpush.bf16.msra.mxu0 %v532
    %542 = vmatmul.bf16.gmra.mxu0 %v528
    %v543 = vpop.f32.mrf.mxu0
    %v544 = vadd.f32 0.0, %v543
    %v545 = vpop.f32.mrf.mxu0
    %546 = vdwg.mxu0
    %v547 = vpack.c.bf16 %v544, %v544
    %549 = vrot.lane.b32.xlu0 %v491, 64
    %v550 = vpop.permute.xlu0 %549
    %552 = vrot.lane.b32.xlu0 %v492, 64
    %v553 = vpop.permute.xlu0 %552
    %v555 = vsel %vm494, %v550, 0
    %v558 = vsel %vm494, %v553, 0
    %560 = vmatpush.bf16.xpose.msra.mxu0 0
    %561 = vmatpush.bf16.xpose.msra.mxu0 0
    %562 = vmatpush.bf16.xpose.msra.mxu0 0
    %563 = vmatpush.bf16.xpose.msra.mxu0 0
    %564 = vmatpush.bf16.xpose.msra.mxu0 0
    %565 = vmatpush.bf16.xpose.msra.mxu0 0
    %566 = vmatpush.bf16.xpose.msra.mxu0 0
    %567 = vmatpush.bf16.xpose.msra.mxu0 %v558
    %568 = vmatmul.bf16.gmra.mxu0 %v555
    %v569 = vpop.f32.mrf.mxu0
    %v570 = vadd.f32 %v207, %v569
    %v571 = vpop.f32.mrf.mxu0
    %572 = vdwg.mxu0
    %v573 = vsel %vm514, %v570, -inf
    %574 = vmax.xlane.f32.xlu0 %v573
    %v575 = vpop.xlane.xlu0 %574
    %v576 = vsub.f32 %v570, %v575
    %v577 = vmul.f32 %v576, 1.442695
    %v578 = vpow.pop %v577
    %v579 = vsel %vm514, %v578, 0.0
    %580 = vadd.xlane.f32.xlu0 %v579
    %v581 = vpop.xlane.xlu0 %580
    %v582 = vrcp.pop %v581
    %v583 = vmul.f32 %v578, %v582
    %v584 = vpack.c.bf16 %v583, %v583
    %586 = vrot.lane.b32.xlu0 %v493, 64
    %v587 = vpop.permute.xlu0 %586
    %v589 = vsel %vm514, %v584, 0
    %v592 = vsel %vm530, %v587, 0
    %594 = vmatpush.bf16.msra.mxu0 0
    %595 = vmatpush.bf16.msra.mxu0 0
    %596 = vmatpush.bf16.msra.mxu0 0
    %597 = vmatpush.bf16.msra.mxu0 0
    %598 = vmatpush.bf16.msra.mxu0 0
    %599 = vmatpush.bf16.msra.mxu0 0
    %600 = vmatpush.bf16.msra.mxu0 0
    %601 = vmatpush.bf16.msra.mxu0 %v592
    %602 = vmatmul.bf16.gmra.mxu0 %v589
    %v603 = vpop.f32.mrf.mxu0
    %v604 = vadd.f32 0.0, %v603
    %v605 = vpop.f32.mrf.mxu0
    %606 = vdwg.mxu0
    %v607 = vpack.c.bf16 %v604, %v604
    %v616 = vunpack.c.l.b16 %v250
    %v617 = vunpack.c.l.b16 %v251
    %v618 = vunpack.c.l.b16 %v252
    %v619 = vunpack.c.l.b16 %v253
    %v620 = vunpack.c.l.b16 %v254
    %v621 = vunpack.c.l.b16 %v255
    %v622 = vunpack.c.l.b16 %v256
    %v623 = vunpack.c.l.b16 %v257
    %v624 = vpack.c.b16 %v617, %v616
    %v625 = vpack.c.b16 %v619, %v618
    %v626 = vpack.c.b16 %v621, %v620
    %v627 = vpack.c.b16 %v623, %v622
    %v633 = vsel %vm494, %v607, 0
    %635 = vmatpush.bf16.msra.mxu0 0
    %636 = vmatpush.bf16.msra.mxu0 0
    %637 = vmatpush.bf16.msra.mxu0 0
    %638 = vmatpush.bf16.msra.mxu0 0
    %639 = vmatpush.bf16.msra.mxu0 %v627
    %640 = vmatpush.bf16.msra.mxu0 %v626
    %641 = vmatpush.bf16.msra.mxu0 %v625
    %642 = vmatpush.bf16.msra.mxu0 %v624
    %643 = vmatmul.bf16.gmra.mxu0 %v633
    %v644 = vpop.f32.mrf.mxu0
    %v645 = vadd.f32 0.0, %v644
    %v646 = vpop.f32.mrf.mxu0
    %647 = vdwg.mxu0
    %v656 = vunpack.c.l.b16 %v242
    %v657 = vunpack.c.l.b16 %v243
    %v658 = vunpack.c.l.b16 %v244
    %v659 = vunpack.c.l.b16 %v245
    %v660 = vunpack.c.l.b16 %v246
    %v661 = vunpack.c.l.b16 %v247
    %v662 = vunpack.c.l.b16 %v248
    %v663 = vunpack.c.l.b16 %v249
    %v664 = vpack.c.b16 %v657, %v656
    %v665 = vpack.c.b16 %v659, %v658
    %v666 = vpack.c.b16 %v661, %v660
    %v667 = vpack.c.b16 %v663, %v662
    %v673 = vsel %vm494, %v547, 0
    %675 = vmatpush.bf16.msra.mxu0 0
    %676 = vmatpush.bf16.msra.mxu0 0
    %677 = vmatpush.bf16.msra.mxu0 0
    %678 = vmatpush.bf16.msra.mxu0 0
    %679 = vmatpush.bf16.msra.mxu0 %v667
    %680 = vmatpush.bf16.msra.mxu0 %v666
    %681 = vmatpush.bf16.msra.mxu0 %v665
    %682 = vmatpush.bf16.msra.mxu0 %v664
    %683 = vmatmul.bf16.gmra.mxu0 %v673
    %v684 = vpop.f32.mrf.mxu0
    %v685 = vadd.f32 %v645, %v684
    %v686 = vpop.f32.mrf.mxu0
    %687 = vdwg.mxu0
    %v688 = vpack.c.bf16 %v461, %v461
    %v689 = vpack.c.bf16 %v475, %v475
    %v690 = vpack.c.bf16 %v489, %v489
    %v692 = vsel %vm494, %v688, 0
    %v695 = vsel %vm494, %v689, 0
    %697 = vmatpush.bf16.xpose.msra.mxu0 0
    %698 = vmatpush.bf16.xpose.msra.mxu0 0
    %699 = vmatpush.bf16.xpose.msra.mxu0 0
    %700 = vmatpush.bf16.xpose.msra.mxu0 0
    %701 = vmatpush.bf16.xpose.msra.mxu0 0
    %702 = vmatpush.bf16.xpose.msra.mxu0 0
    %703 = vmatpush.bf16.xpose.msra.mxu0 0
    %704 = vmatpush.bf16.xpose.msra.mxu0 %v695
    %705 = vmatmul.bf16.gmra.mxu0 %v692
    %v706 = vpop.f32.mrf.mxu0
    %v707 = vadd.f32 %v208, %v706
    %v708 = vpop.f32.mrf.mxu0
    %709 = vdwg.mxu0
    %v710 = vsel %vm514, %v707, -inf
    %711 = vmax.xlane.f32.xlu0 %v710
    %v712 = vpop.xlane.xlu0 %711
    %v713 = vsub.f32 %v707, %v712
    %v714 = vmul.f32 %v713, 1.442695
    %v715 = vpow.pop %v714
    %v716 = vsel %vm514, %v715, 0.0
    %717 = vadd.xlane.f32.xlu0 %v716
    %v718 = vpop.xlane.xlu0 %717
    %v719 = vrcp.pop %v718
    %v720 = vmul.f32 %v715, %v719
    %v721 = vpack.c.bf16 %v720, %v720
    %v723 = vsel %vm514, %v721, 0
    %v726 = vsel %vm530, %v690, 0
    %728 = vmatpush.bf16.msra.mxu0 0
    %729 = vmatpush.bf16.msra.mxu0 0
    %730 = vmatpush.bf16.msra.mxu0 0
    %731 = vmatpush.bf16.msra.mxu0 0
    %732 = vmatpush.bf16.msra.mxu0 0
    %733 = vmatpush.bf16.msra.mxu0 0
    %734 = vmatpush.bf16.msra.mxu0 0
    %735 = vmatpush.bf16.msra.mxu0 %v726
    %736 = vmatmul.bf16.gmra.mxu0 %v723
    %v737 = vpop.f32.mrf.mxu0
    %v738 = vadd.f32 0.0, %v737
    %v739 = vpop.f32.mrf.mxu0
    %740 = vdwg.mxu0
    %v741 = vpack.c.bf16 %v738, %v738
    %743 = vrot.lane.b32.xlu0 %v688, 64
    %v744 = vpop.permute.xlu0 %743
    %746 = vrot.lane.b32.xlu0 %v689, 64
    %v747 = vpop.permute.xlu0 %746
    %v749 = vsel %vm494, %v744, 0
    %v752 = vsel %vm494, %v747, 0
    %754 = vmatpush.bf16.xpose.msra.mxu0 0
    %755 = vmatpush.bf16.xpose.msra.mxu0 0
    %756 = vmatpush.bf16.xpose.msra.mxu0 0
    %757 = vmatpush.bf16.xpose.msra.mxu0 0
    %758 = vmatpush.bf16.xpose.msra.mxu0 0
    %759 = vmatpush.bf16.xpose.msra.mxu0 0
    %760 = vmatpush.bf16.xpose.msra.mxu0 0
    %761 = vmatpush.bf16.xpose.msra.mxu0 %v752
    %762 = vmatmul.bf16.gmra.mxu0 %v749
    %v763 = vpop.f32.mrf.mxu0
    %v764 = vadd.f32 %v208, %v763
    %v765 = vpop.f32.mrf.mxu0
    %766 = vdwg.mxu0
    %v767 = vsel %vm514, %v764, -inf
    %768 = vmax.xlane.f32.xlu0 %v767
    %v769 = vpop.xlane.xlu0 %768
    %v770 = vsub.f32 %v764, %v769
    %v771 = vmul.f32 %v770, 1.442695
    %v772 = vpow.pop %v771
    %v773 = vsel %vm514, %v772, 0.0
    %774 = vadd.xlane.f32.xlu0 %v773
    %v775 = vpop.xlane.xlu0 %774
    %v776 = vrcp.pop %v775
    %v777 = vmul.f32 %v772, %v776
    %v778 = vpack.c.bf16 %v777, %v777
    %780 = vrot.lane.b32.xlu0 %v690, 64
    %v781 = vpop.permute.xlu0 %780
    %v783 = vsel %vm514, %v778, 0
    %v786 = vsel %vm530, %v781, 0
    %788 = vmatpush.bf16.msra.mxu0 0
    %789 = vmatpush.bf16.msra.mxu0 0
    %790 = vmatpush.bf16.msra.mxu0 0
    %791 = vmatpush.bf16.msra.mxu0 0
    %792 = vmatpush.bf16.msra.mxu0 0
    %793 = vmatpush.bf16.msra.mxu0 0
    %794 = vmatpush.bf16.msra.mxu0 0
    %795 = vmatpush.bf16.msra.mxu0 %v786
    %796 = vmatmul.bf16.gmra.mxu0 %v783
    %v797 = vpop.f32.mrf.mxu0
    %v798 = vadd.f32 0.0, %v797
    %v799 = vpop.f32.mrf.mxu0
    %800 = vdwg.mxu0
    %v801 = vpack.c.bf16 %v798, %v798
    %v803 = vsel %vm494, %v801, 0
    %805 = vmatpush.bf16.msra.mxu0 0
    %806 = vmatpush.bf16.msra.mxu0 0
    %807 = vmatpush.bf16.msra.mxu0 0
    %808 = vmatpush.bf16.msra.mxu0 0
    %809 = vmatpush.bf16.msra.mxu0 %v627
    %810 = vmatpush.bf16.msra.mxu0 %v626
    %811 = vmatpush.bf16.msra.mxu0 %v625
    %812 = vmatpush.bf16.msra.mxu0 %v624
    %813 = vmatmul.bf16.gmra.mxu0 %v803
    %v814 = vpop.f32.mrf.mxu0
    %v815 = vadd.f32 0.0, %v814
    %v816 = vpop.f32.mrf.mxu0
    %817 = vdwg.mxu0
    %v819 = vsel %vm494, %v741, 0
    %821 = vmatpush.bf16.msra.mxu0 0
    %822 = vmatpush.bf16.msra.mxu0 0
    %823 = vmatpush.bf16.msra.mxu0 0
    %824 = vmatpush.bf16.msra.mxu0 0
    %825 = vmatpush.bf16.msra.mxu0 %v667
    %826 = vmatpush.bf16.msra.mxu0 %v666
    %827 = vmatpush.bf16.msra.mxu0 %v665
    %828 = vmatpush.bf16.msra.mxu0 %v664
    %829 = vmatmul.bf16.gmra.mxu0 %v819
    %v830 = vpop.f32.mrf.mxu0
    %v831 = vadd.f32 %v815, %v830
    %v832 = vpop.f32.mrf.mxu0
    %833 = vdwg.mxu0
    %v835 = vperm.slane %v258, 0
    %v837 = vadd.f32 %v685, %v835
    %v838 = vadd.f32 %v831, %v835
    %v839 = vadd.f32 %v837, %v204
    %v840 = vadd.f32 %v838, %v205
    %841 = vadd.xlane.f32.xlu0 %v839
    %v842 = vpop.xlane.xlu0 %841
    %843 = vadd.xlane.f32.xlu0 %v840
    %v844 = vpop.xlane.xlu0 %843
    %v845 = vmul.f32 %v842, %v159
    %v846 = vmul.f32 %v844, %v159
    %v847 = vsub.f32 %v839, %v845
    %v848 = vsub.f32 %v840, %v846
    %v849 = vmul.f32 %v847, %v847
    %v850 = vmul.f32 %v848, %v848
    %851 = vadd.xlane.f32.xlu0 %v849
    %v852 = vpop.xlane.xlu0 %851
    %853 = vadd.xlane.f32.xlu0 %v850
    %v854 = vpop.xlane.xlu0 %853
    %v855 = vmul.f32 %v852, %v159
    %v856 = vmul.f32 %v854, %v159
    %v857 = vadd.f32 %v855, 1e-12
    %v858 = vadd.f32 %v856, 1e-12
    %v859 = vrsqrt.pop %v857
    %v860 = vmul.f32 %v859, %v857
    %v861 = vmul.f32 %v860, %v859
    %v862 = vmul.f32 0.5, %v861
    %v863 = vsub.f32 1.5, %v862
    %v864 = vmul.f32 %v859, %v863
    %vm865 = vweird.f32 %v857
    %vm866 = vweird.f32 %v859
    %vm867 = vmor %vm865, %vm866
    %v868 = vsel %vm867, %v859, %v864
    %v869 = vrsqrt.pop %v858
    %v870 = vmul.f32 %v869, %v858
    %v871 = vmul.f32 %v870, %v869
    %v872 = vmul.f32 0.5, %v871
    %v873 = vsub.f32 1.5, %v872
    %v874 = vmul.f32 %v869, %v873
    %vm875 = vweird.f32 %v858
    %vm876 = vweird.f32 %v869
    %vm877 = vmor %vm875, %vm876
    %v878 = vsel %vm877, %v869, %v874
    %v879 = vmul.f32 %v847, %v868
    %v880 = vmul.f32 %v848, %v878
    %v882 = vperm.slane %v259, 0
    %v884 = vmul.f32 %v879, %v882
    %v885 = vmul.f32 %v880, %v882
    %v887 = vperm.slane %v260, 0
    %v889 = vadd.f32 %v884, %v887
    %v890 = vadd.f32 %v885, %v887
    %v891 = vpack.c.bf16 %v890, %v889
    %v893 = vperm.slane %v277, 0
    %v894 = vperm.slane %v277, 1
    %v913 = vunpack.c.l.b16 %v261
    %v914 = vunpack.c.h.b16 %v261
    %v915 = vunpack.c.l.b16 %v262
    %v916 = vunpack.c.h.b16 %v262
    %v917 = vunpack.c.l.b16 %v263
    %v918 = vunpack.c.h.b16 %v263
    %v919 = vunpack.c.l.b16 %v264
    %v920 = vunpack.c.h.b16 %v264
    %v921 = vunpack.c.l.b16 %v265
    %v922 = vunpack.c.h.b16 %v265
    %v923 = vunpack.c.l.b16 %v266
    %v924 = vunpack.c.h.b16 %v266
    %v925 = vunpack.c.l.b16 %v267
    %v926 = vunpack.c.h.b16 %v267
    %v927 = vunpack.c.l.b16 %v268
    %v928 = vunpack.c.h.b16 %v268
    %v929 = vunpack.c.l.b16 %v269
    %v930 = vunpack.c.h.b16 %v269
    %v931 = vunpack.c.l.b16 %v270
    %v932 = vunpack.c.h.b16 %v270
    %v933 = vunpack.c.l.b16 %v271
    %v934 = vunpack.c.h.b16 %v271
    %v935 = vunpack.c.l.b16 %v272
    %v936 = vunpack.c.h.b16 %v272
    %v937 = vunpack.c.l.b16 %v273
    %v938 = vunpack.c.h.b16 %v273
    %v939 = vunpack.c.l.b16 %v274
    %v940 = vunpack.c.h.b16 %v274
    %v941 = vunpack.c.l.b16 %v275
    %v942 = vunpack.c.h.b16 %v275
    %v943 = vunpack.c.l.b16 %v276
    %v944 = vunpack.c.h.b16 %v276
    %v945 = vpack.c.b16 %v915, %v913
    %v946 = vpack.c.b16 %v916, %v914
    %v947 = vpack.c.b16 %v919, %v917
    %v948 = vpack.c.b16 %v920, %v918
    %v949 = vpack.c.b16 %v923, %v921
    %v950 = vpack.c.b16 %v924, %v922
    %v951 = vpack.c.b16 %v927, %v925
    %v952 = vpack.c.b16 %v928, %v926
    %v953 = vpack.c.b16 %v931, %v929
    %v954 = vpack.c.b16 %v932, %v930
    %v955 = vpack.c.b16 %v935, %v933
    %v956 = vpack.c.b16 %v936, %v934
    %v957 = vpack.c.b16 %v939, %v937
    %v958 = vpack.c.b16 %v940, %v938
    %v959 = vpack.c.b16 %v943, %v941
    %v960 = vpack.c.b16 %v944, %v942
    %977 = vmatpush.bf16.msra.mxu0 %v959
    %978 = vmatpush.bf16.msra.mxu0 %v957
    %979 = vmatpush.bf16.msra.mxu0 %v955
    %980 = vmatpush.bf16.msra.mxu0 %v953
    %981 = vmatpush.bf16.msra.mxu0 %v951
    %982 = vmatpush.bf16.msra.mxu0 %v949
    %983 = vmatpush.bf16.msra.mxu0 %v947
    %984 = vmatpush.bf16.msra.mxu0 %v945
    %985 = vmatmul.bf16.gmra.mxu0 %v891
    %v986 = vpop.f32.mrf.mxu0
    %v987 = vadd.f32 %v893, %v986
    %v988 = vpop.f32.mrf.mxu0
    %v989 = vadd.f32 %v893, %v988
    %990 = vdwg.mxu0
    %991 = vmatpush.bf16.msra.mxu0 %v960
    %992 = vmatpush.bf16.msra.mxu0 %v958
    %993 = vmatpush.bf16.msra.mxu0 %v956
    %994 = vmatpush.bf16.msra.mxu0 %v954
    %995 = vmatpush.bf16.msra.mxu0 %v952
    %996 = vmatpush.bf16.msra.mxu0 %v950
    %997 = vmatpush.bf16.msra.mxu0 %v948
    %998 = vmatpush.bf16.msra.mxu0 %v946
    %999 = vmatmul.bf16.gmra.mxu0 %v891
    %v1000 = vpop.f32.mrf.mxu0
    %v1001 = vadd.f32 %v894, %v1000
    %v1002 = vpop.f32.mrf.mxu0
    %v1003 = vadd.f32 %v894, %v1002
    %1004 = vdwg.mxu0
    %v1005 = vmul.f32 %v987, 0.5
    %v1006 = vmul.f32 %v1001, 0.5
    %v1007 = vmul.f32 %v989, 0.5
    %v1008 = vmul.f32 %v1003, 0.5
    %v1009 = vmul.f32 %v987, 0.044715
    %v1010 = vmul.f32 %v1001, 0.044715
    %v1011 = vmul.f32 %v989, 0.044715
    %v1012 = vmul.f32 %v1003, 0.044715
    %v1013 = vmul.f32 %v1009, %v987
    %v1014 = vmul.f32 %v1010, %v1001
    %v1015 = vmul.f32 %v1011, %v989
    %v1016 = vmul.f32 %v1012, %v1003
    %v1017 = vmul.f32 %v1013, %v987
    %v1018 = vmul.f32 %v1014, %v1001
    %v1019 = vmul.f32 %v1015, %v989
    %v1020 = vmul.f32 %v1016, %v1003
    %v1021 = vadd.f32 %v987, %v1017
    %v1022 = vadd.f32 %v1001, %v1018
    %v1023 = vadd.f32 %v989, %v1019
    %v1024 = vadd.f32 %v1003, %v1020
    %v1025 = vmul.f32 %v1021, 0.7978846
    %v1026 = vmul.f32 %v1022, 0.7978846
    %v1027 = vmul.f32 %v1023, 0.7978846
    %v1028 = vmul.f32 %v1024, 0.7978846
    %v1029 = vtanh.pop %v1025
    %v1030 = vtanh.pop %v1026
    %v1031 = vtanh.pop %v1027
    %v1032 = vtanh.pop %v1028
    %v1033 = vadd.f32 %v1029, 1.0
    %v1034 = vadd.f32 %v1030, 1.0
    %v1035 = vadd.f32 %v1031, 1.0
    %v1036 = vadd.f32 %v1032, 1.0
    %v1037 = vmul.f32 %v1005, %v1033
    %v1038 = vmul.f32 %v1006, %v1034
    %v1039 = vmul.f32 %v1007, %v1035
    %v1040 = vmul.f32 %v1008, %v1036
    %v1041 = vpack.c.bf16 %v1039, %v1037
    %v1042 = vpack.c.bf16 %v1040, %v1038
    %v1044 = vperm.slane %v310, 0
    %v1078 = vunpack.c.l.b16 %v278
    %v1079 = vunpack.c.l.b16 %v279
    %v1080 = vunpack.c.l.b16 %v280
    %v1081 = vunpack.c.l.b16 %v281
    %v1082 = vunpack.c.l.b16 %v282
    %v1083 = vunpack.c.l.b16 %v283
    %v1084 = vunpack.c.l.b16 %v284
    %v1085 = vunpack.c.l.b16 %v285
    %v1086 = vunpack.c.l.b16 %v286
    %v1087 = vunpack.c.l.b16 %v287
    %v1088 = vunpack.c.l.b16 %v288
    %v1089 = vunpack.c.l.b16 %v289
    %v1090 = vunpack.c.l.b16 %v290
    %v1091 = vunpack.c.l.b16 %v291
    %v1092 = vunpack.c.l.b16 %v292
    %v1093 = vunpack.c.l.b16 %v293
    %v1094 = vunpack.c.l.b16 %v294
    %v1095 = vunpack.c.l.b16 %v295
    %v1096 = vunpack.c.l.b16 %v296
    %v1097 = vunpack.c.l.b16 %v297
    %v1098 = vunpack.c.l.b16 %v298
    %v1099 = vunpack.c.l.b16 %v299
    %v1100 = vunpack.c.l.b16 %v300
    %v1101 = vunpack.c.l.b16 %v301
    %v1102 = vunpack.c.l.b16 %v302
    %v1103 = vunpack.c.l.b16 %v303
    %v1104 = vunpack.c.l.b16 %v304
    %v1105 = vunpack.c.l.b16 %v305
    %v1106 = vunpack.c.l.b16 %v306
    %v1107 = vunpack.c.l.b16 %v307
    %v1108 = vunpack.c.l.b16 %v308
    %v1109 = vunpack.c.l.b16 %v309
    %v1110 = vpack.c.b16 %v1079, %v1078
    %v1111 = vpack.c.b16 %v1081, %v1080
    %v1112 = vpack.c.b16 %v1083, %v1082
    %v1113 = vpack.c.b16 %v1085, %v1084
    %v1114 = vpack.c.b16 %v1087, %v1086
    %v1115 = vpack.c.b16 %v1089, %v1088
    %v1116 = vpack.c.b16 %v1091, %v1090
    %v1117 = vpack.c.b16 %v1093, %v1092
    %v1118 = vpack.c.b16 %v1095, %v1094
    %v1119 = vpack.c.b16 %v1097, %v1096
    %v1120 = vpack.c.b16 %v1099, %v1098
    %v1121 = vpack.c.b16 %v1101, %v1100
    %v1122 = vpack.c.b16 %v1103, %v1102
    %v1123 = vpack.c.b16 %v1105, %v1104
    %v1124 = vpack.c.b16 %v1107, %v1106
    %v1125 = vpack.c.b16 %v1109, %v1108
    %1142 = vmatpush.bf16.msra.mxu0 %v1117
    %1143 = vmatpush.bf16.msra.mxu0 %v1116
    %1144 = vmatpush.bf16.msra.mxu0 %v1115
    %1145 = vmatpush.bf16.msra.mxu0 %v1114
    %1146 = vmatpush.bf16.msra.mxu0 %v1113
    %1147 = vmatpush.bf16.msra.mxu0 %v1112
    %1148 = vmatpush.bf16.msra.mxu0 %v1111
    %1149 = vmatpush.bf16.msra.mxu0 %v1110
    %1150 = vmatmul.bf16.gmra.mxu0 %v1041
    %v1151 = vpop.f32.mrf.mxu0
    %v1152 = vadd.f32 %v1044, %v1151
    %v1153 = vpop.f32.mrf.mxu0
    %v1154 = vadd.f32 %v1044, %v1153
    %1155 = vdwg.mxu0
    %1156 = vmatpush.bf16.msra.mxu0 %v1125
    %1157 = vmatpush.bf16.msra.mxu0 %v1124
    %1158 = vmatpush.bf16.msra.mxu0 %v1123
    %1159 = vmatpush.bf16.msra.mxu0 %v1122
    %1160 = vmatpush.bf16.msra.mxu0 %v1121
    %1161 = vmatpush.bf16.msra.mxu0 %v1120
    %1162 = vmatpush.bf16.msra.mxu0 %v1119
    %1163 = vmatpush.bf16.msra.mxu0 %v1118
    %1164 = vmatmul.bf16.gmra.mxu0 %v1042
    %v1165 = vpop.f32.mrf.mxu0
    %v1166 = vadd.f32 %v1152, %v1165
    %v1167 = vpop.f32.mrf.mxu0
    %v1168 = vadd.f32 %v1154, %v1167
    %1169 = vdwg.mxu0
    %v1170 = vadd.f32 %v1166, %v889
    %v1171 = vadd.f32 %v1168, %v890
    %1172 = vadd.xlane.f32.xlu0 %v1170
    %v1173 = vpop.xlane.xlu0 %1172
    %1174 = vadd.xlane.f32.xlu0 %v1171
    %v1175 = vpop.xlane.xlu0 %1174
    %v1176 = vmul.f32 %v1173, %v159
    %v1177 = vmul.f32 %v1175, %v159
    %v1178 = vsub.f32 %v1170, %v1176
    %v1179 = vsub.f32 %v1171, %v1177
    %v1180 = vmul.f32 %v1178, %v1178
    %v1181 = vmul.f32 %v1179, %v1179
    %1182 = vadd.xlane.f32.xlu0 %v1180
    %v1183 = vpop.xlane.xlu0 %1182
    %1184 = vadd.xlane.f32.xlu0 %v1181
    %v1185 = vpop.xlane.xlu0 %1184
    %v1186 = vmul.f32 %v1183, %v159
    %v1187 = vmul.f32 %v1185, %v159
    %v1188 = vadd.f32 %v1186, 1e-12
    %v1189 = vadd.f32 %v1187, 1e-12
    %v1190 = vrsqrt.pop %v1188
    %v1191 = vmul.f32 %v1190, %v1188
    %v1192 = vmul.f32 %v1191, %v1190
    %v1193 = vmul.f32 0.5, %v1192
    %v1194 = vsub.f32 1.5, %v1193
    %v1195 = vmul.f32 %v1190, %v1194
    %vm1196 = vweird.f32 %v1188
    %vm1197 = vweird.f32 %v1190
    %vm1198 = vmor %vm1196, %vm1197
    %v1199 = vsel %vm1198, %v1190, %v1195
    %v1200 = vrsqrt.pop %v1189
    %v1201 = vmul.f32 %v1200, %v1189
    %v1202 = vmul.f32 %v1201, %v1200
    %v1203 = vmul.f32 0.5, %v1202
    %v1204 = vsub.f32 1.5, %v1203
    %v1205 = vmul.f32 %v1200, %v1204
    %vm1206 = vweird.f32 %v1189
    %vm1207 = vweird.f32 %v1200
    %vm1208 = vmor %vm1206, %vm1207
    %v1209 = vsel %vm1208, %v1200, %v1205
    %v1210 = vmul.f32 %v1178, %v1199
    %v1211 = vmul.f32 %v1179, %v1209
    %v1213 = vperm.slane %v311, 0
    %v1215 = vmul.f32 %v1210, %v1213
    %v1216 = vmul.f32 %v1211, %v1213
    %v1218 = vperm.slane %v312, 0
    %v1220 = vadd.f32 %v1215, %v1218
    %v1221 = vadd.f32 %v1216, %v1218
    %s1222 = scalar_lea.vmem [#allocation2], 192
    %v1223 = vld [vmem:[%s1222] sm:$0xff]
    %v1224 = vld [vmem:[%s1222 + $0x8] sm:$0xf]
    %v1225 = vld [vmem:[%s1222 + $0xc] sm:$0xff]
    %v1226 = vld [vmem:[%s1222 + $0x14] sm:$0xf]
    %v1227 = vld [vmem:[%s1222 + $0x18] sm:$0xff]
    %v1228 = vld [vmem:[%s1222 + $0x20] sm:$0xf]
    %v1229 = vld [vmem:[%s1222 + $0x24] sm:$0xff]
    %v1230 = vld [vmem:[%s1222 + $0x2c] sm:$0xf]
    %v1231 = vld [vmem:[%s1222 + $0x30] sm:$0xff]
    %v1232 = vld [vmem:[%s1222 + $0x38] sm:$0xf]
    %v1233 = vld [vmem:[%s1222 + $0x3c] sm:$0xff]
    %v1234 = vld [vmem:[%s1222 + $0x44] sm:$0xf]
    %v1235 = vld [vmem:[%s1222 + $0x48] sm:$0xff]
    %v1236 = vld [vmem:[%s1222 + $0x50] sm:$0xf]
    %v1237 = vld [vmem:[%s1222 + $0x54] sm:$0xff]
    %v1238 = vld [vmem:[%s1222 + $0x5c] sm:$0xf]
    %v1239 = vld [vmem:[%s1222 + $0x60] sm:$0xff]
    %v1240 = vld [vmem:[%s1222 + $0x68] sm:$0xf]
    %v1241 = vld [vmem:[%s1222 + $0x6c] sm:$0xff]
    %v1242 = vld [vmem:[%s1222 + $0x74] sm:$0xf]
    %v1243 = vld [vmem:[%s1222 + $0x78] sm:$0xff]
    %v1244 = vld [vmem:[%s1222 + $0x80] sm:$0xf]
    %v1245 = vld [vmem:[%s1222 + $0x84] sm:$0xff]
    %v1246 = vld [vmem:[%s1222 + $0x8c] sm:$0xf]
    %v1247 = vld [vmem:[%s1222 + $0x90] sm:$0xff]
    %v1248 = vld [vmem:[%s1222 + $0x98] sm:$0xf]
    %v1249 = vld [vmem:[%s1222 + $0x9c] sm:$0xff]
    %v1250 = vld [vmem:[%s1222 + $0xa4] sm:$0xf]
    %v1251 = vld [vmem:[%s1222 + $0xa8] sm:$0xff]
    %v1252 = vld [vmem:[%s1222 + $0xb0] sm:$0xf]
    %v1253 = vld [vmem:[%s1222 + $0xb4] sm:$0xff]
    %v1254 = vld [vmem:[%s1222 + $0xbc] sm:$0xf]
    %s1255 = scalar_lea.vmem %s5, 3
    %v1256 = vld [vmem:[%s1255] sm:$0x7]
    %s1257 = scalar_lea.vmem %s6, 64
    %v1258 = vld [vmem:[%s1257] sm:$0xf]
    %v1259 = vld [vmem:[%s1257 + $0x4] sm:$0xf]
    %v1260 = vld [vmem:[%s1257 + $0x8] sm:$0xf]
    %v1261 = vld [vmem:[%s1257 + $0xc] sm:$0xf]
    %v1262 = vld [vmem:[%s1257 + $0x10] sm:$0xf]
    %v1263 = vld [vmem:[%s1257 + $0x14] sm:$0xf]
    %v1264 = vld [vmem:[%s1257 + $0x18] sm:$0xf]
    %v1265 = vld [vmem:[%s1257 + $0x1c] sm:$0xf]
    %v1266 = vld [vmem:[%s1257 + $0x20] sm:$0xf]
    %v1267 = vld [vmem:[%s1257 + $0x24] sm:$0xf]
    %v1268 = vld [vmem:[%s1257 + $0x28] sm:$0xf]
    %v1269 = vld [vmem:[%s1257 + $0x2c] sm:$0xf]
    %v1270 = vld [vmem:[%s1257 + $0x30] sm:$0xf]
    %v1271 = vld [vmem:[%s1257 + $0x34] sm:$0xf]
    %v1272 = vld [vmem:[%s1257 + $0x38] sm:$0xf]
    %v1273 = vld [vmem:[%s1257 + $0x3c] sm:$0xf]
    %s1274 = scalar_lea.vmem %s7, 1
    %v1275 = vld [vmem:[%s1274] sm:$0x1]
    %s1276 = scalar_lea.vmem %s8, 1
    %v1277 = vld [vmem:[%s1276] sm:$0x1]
    %s1278 = scalar_lea.vmem %s9, 1
    %v1279 = vld [vmem:[%s1278] sm:$0x1]
    %s1280 = scalar_lea.vmem [#allocation5], 128
    %v1281 = vld [vmem:[%s1280] sm:$0xff]
    %v1282 = vld [vmem:[%s1280 + $0x8] sm:$0xff]
    %v1283 = vld [vmem:[%s1280 + $0x10] sm:$0xff]
    %v1284 = vld [vmem:[%s1280 + $0x18] sm:$0xff]
    %v1285 = vld [vmem:[%s1280 + $0x20] sm:$0xff]
    %v1286 = vld [vmem:[%s1280 + $0x28] sm:$0xff]
    %v1287 = vld [vmem:[%s1280 + $0x30] sm:$0xff]
    %v1288 = vld [vmem:[%s1280 + $0x38] sm:$0xff]
    %v1289 = vld [vmem:[%s1280 + $0x40] sm:$0xff]
    %v1290 = vld [vmem:[%s1280 + $0x48] sm:$0xff]
    %v1291 = vld [vmem:[%s1280 + $0x50] sm:$0xff]
    %v1292 = vld [vmem:[%s1280 + $0x58] sm:$0xff]
    %v1293 = vld [vmem:[%s1280 + $0x60] sm:$0xff]
    %v1294 = vld [vmem:[%s1280 + $0x68] sm:$0xff]
    %v1295 = vld [vmem:[%s1280 + $0x70] sm:$0xff]
    %v1296 = vld [vmem:[%s1280 + $0x78] sm:$0xff]
    %s1297 = scalar_lea.vmem %s11, 2
    %v1298 = vld [vmem:[%s1297] sm:$0x3]
    %s1299 = scalar_lea.vmem [#allocation7], 128
    %v1300 = vld [vmem:[%s1299] sm:$0xf]
    %v1301 = vld [vmem:[%s1299 + $0x4] sm:$0xf]
    %v1302 = vld [vmem:[%s1299 + $0x8] sm:$0xf]
    %v1303 = vld [vmem:[%s1299 + $0xc] sm:$0xf]
    %v1304 = vld [vmem:[%s1299 + $0x10] sm:$0xf]
    %v1305 = vld [vmem:[%s1299 + $0x14] sm:$0xf]
    %v1306 = vld [vmem:[%s1299 + $0x18] sm:$0xf]
    %v1307 = vld [vmem:[%s1299 + $0x1c] sm:$0xf]
    %v1308 = vld [vmem:[%s1299 + $0x20] sm:$0xf]
    %v1309 = vld [vmem:[%s1299 + $0x24] sm:$0xf]
    %v1310 = vld [vmem:[%s1299 + $0x28] sm:$0xf]
    %v1311 = vld [vmem:[%s1299 + $0x2c] sm:$0xf]
    %v1312 = vld [vmem:[%s1299 + $0x30] sm:$0xf]
    %v1313 = vld [vmem:[%s1299 + $0x34] sm:$0xf]
    %v1314 = vld [vmem:[%s1299 + $0x38] sm:$0xf]
    %v1315 = vld [vmem:[%s1299 + $0x3c] sm:$0xf]
    %v1316 = vld [vmem:[%s1299 + $0x40] sm:$0xf]
    %v1317 = vld [vmem:[%s1299 + $0x44] sm:$0xf]
    %v1318 = vld [vmem:[%s1299 + $0x48] sm:$0xf]
    %v1319 = vld [vmem:[%s1299 + $0x4c] sm:$0xf]
    %v1320 = vld [vmem:[%s1299 + $0x50] sm:$0xf]
    %v1321 = vld [vmem:[%s1299 + $0x54] sm:$0xf]
    %v1322 = vld [vmem:[%s1299 + $0x58] sm:$0xf]
    %v1323 = vld [vmem:[%s1299 + $0x5c] sm:$0xf]
    %v1324 = vld [vmem:[%s1299 + $0x60] sm:$0xf]
    %v1325 = vld [vmem:[%s1299 + $0x64] sm:$0xf]
    %v1326 = vld [vmem:[%s1299 + $0x68] sm:$0xf]
    %v1327 = vld [vmem:[%s1299 + $0x6c] sm:$0xf]
    %v1328 = vld [vmem:[%s1299 + $0x70] sm:$0xf]
    %v1329 = vld [vmem:[%s1299 + $0x74] sm:$0xf]
    %v1330 = vld [vmem:[%s1299 + $0x78] sm:$0xf]
    %v1331 = vld [vmem:[%s1299 + $0x7c] sm:$0xf]
    %s1332 = scalar_lea.vmem %s13, 1
    %v1333 = vld [vmem:[%s1332] sm:$0x1]
    %s1334 = scalar_lea.vmem %s14, 1
    %v1335 = vld [vmem:[%s1334] sm:$0x1]
    %s1336 = scalar_lea.vmem %s15, 1
    %v1337 = vld [vmem:[%s1336] sm:$0x1]
    %v1338 = vpack.c.bf16 %v1221, %v1220
    %v1340 = vperm.slane %v1256, 0
    %v1341 = vperm.slane %v1256, 1
    %v1342 = vperm.slane %v1256, 2
    %v1378 = vunpack.c.l.b16 %v1223
    %v1379 = vunpack.c.h.b16 %v1223
    %v1380 = vunpack.c.l.b16 %v1224
    %v1381 = vunpack.c.l.b16 %v1225
    %v1382 = vunpack.c.h.b16 %v1225
    %v1383 = vunpack.c.l.b16 %v1226
    %v1384 = vunpack.c.l.b16 %v1227
    %v1385 = vunpack.c.h.b16 %v1227
    %v1386 = vunpack.c.l.b16 %v1228
    %v1387 = vunpack.c.l.b16 %v1229
    %v1388 = vunpack.c.h.b16 %v1229
    %v1389 = vunpack.c.l.b16 %v1230
    %v1390 = vunpack.c.l.b16 %v1231
    %v1391 = vunpack.c.h.b16 %v1231
    %v1392 = vunpack.c.l.b16 %v1232
    %v1393 = vunpack.c.l.b16 %v1233
    %v1394 = vunpack.c.h.b16 %v1233
    %v1395 = vunpack.c.l.b16 %v1234
    %v1396 = vunpack.c.l.b16 %v1235
    %v1397 = vunpack.c.h.b16 %v1235
    %v1398 = vunpack.c.l.b16 %v1236
    %v1399 = vunpack.c.l.b16 %v1237
    %v1400 = vunpack.c.h.b16 %v1237
    %v1401 = vunpack.c.l.b16 %v1238
    %v1402 = vunpack.c.l.b16 %v1239
    %v1403 = vunpack.c.h.b16 %v1239
    %v1404 = vunpack.c.l.b16 %v1240
    %v1405 = vunpack.c.l.b16 %v1241
    %v1406 = vunpack.c.h.b16 %v1241
    %v1407 = vunpack.c.l.b16 %v1242
    %v1408 = vunpack.c.l.b16 %v1243
    %v1409 = vunpack.c.h.b16 %v1243
    %v1410 = vunpack.c.l.b16 %v1244
    %v1411 = vunpack.c.l.b16 %v1245
    %v1412 = vunpack.c.h.b16 %v1245
    %v1413 = vunpack.c.l.b16 %v1246
    %v1414 = vunpack.c.l.b16 %v1247
    %v1415 = vunpack.c.h.b16 %v1247
    %v1416 = vunpack.c.l.b16 %v1248
    %v1417 = vunpack.c.l.b16 %v1249
    %v1418 = vunpack.c.h.b16 %v1249
    %v1419 = vunpack.c.l.b16 %v1250
    %v1420 = vunpack.c.l.b16 %v1251
    %v1421 = vunpack.c.h.b16 %v1251
    %v1422 = vunpack.c.l.b16 %v1252
    %v1423 = vunpack.c.l.b16 %v1253
    %v1424 = vunpack.c.h.b16 %v1253
    %v1425 = vunpack.c.l.b16 %v1254
    %v1426 = vpack.c.b16 %v1381, %v1378
    %v1427 = vpack.c.b16 %v1382, %v1379
    %v1428 = vpack.c.b16 %v1383, %v1380
    %v1429 = vpack.c.b16 %v1387, %v1384
    %v1430 = vpack.c.b16 %v1388, %v1385
    %v1431 = vpack.c.b16 %v1389, %v1386
    %v1432 = vpack.c.b16 %v1393, %v1390
    %v1433 = vpack.c.b16 %v1394, %v1391
    %v1434 = vpack.c.b16 %v1395, %v1392
    %v1435 = vpack.c.b16 %v1399, %v1396
    %v1436 = vpack.c.b16 %v1400, %v1397
    %v1437 = vpack.c.b16 %v1401, %v1398
    %v1438 = vpack.c.b16 %v1405, %v1402
    %v1439 = vpack.c.b16 %v1406, %v1403
    %v1440 = vpack.c.b16 %v1407, %v1404
    %v1441 = vpack.c.b16 %v1411, %v1408
    %v1442 = vpack.c.b16 %v1412, %v1409
    %v1443 = vpack.c.b16 %v1413, %v1410
    %v1444 = vpack.c.b16 %v1417, %v1414
    %v1445 = vpack.c.b16 %v1418, %v1415
    %v1446 = vpack.c.b16 %v1419, %v1416
    %v1447 = vpack.c.b16 %v1423, %v1420
    %v1448 = vpack.c.b16 %v1424, %v1421
    %v1449 = vpack.c.b16 %v1425, %v1422
    %1474 = vmatpush.bf16.msra.mxu0 %v1447
    %1475 = vmatpush.bf16.msra.mxu0 %v1444
    %1476 = vmatpush.bf16.msra.mxu0 %v1441
    %1477 = vmatpush.bf16.msra.mxu0 %v1438
    %1478 = vmatpush.bf16.msra.mxu0 %v1435
    %1479 = vmatpush.bf16.msra.mxu0 %v1432
    %1480 = vmatpush.bf16.msra.mxu0 %v1429
    %1481 = vmatpush.bf16.msra.mxu0 %v1426
    %1482 = vmatmul.bf16.gmra.mxu0 %v1338
    %v1483 = vpop.f32.mrf.mxu0
    %v1484 = vadd.f32 %v1340, %v1483
    %v1485 = vpop.f32.mrf.mxu0
    %v1486 = vadd.f32 %v1340, %v1485
    %1487 = vdwg.mxu0
    %1488 = vmatpush.bf16.msra.mxu0 %v1448
    %1489 = vmatpush.bf16.msra.mxu0 %v1445
    %1490 = vmatpush.bf16.msra.mxu0 %v1442
    %1491 = vmatpush.bf16.msra.mxu0 %v1439
    %1492 = vmatpush.bf16.msra.mxu0 %v1436
    %1493 = vmatpush.bf16.msra.mxu0 %v1433
    %1494 = vmatpush.bf16.msra.mxu0 %v1430
    %1495 = vmatpush.bf16.msra.mxu0 %v1427
    %1496 = vmatmul.bf16.gmra.mxu0 %v1338
    %v1497 = vpop.f32.mrf.mxu0
    %v1498 = vadd.f32 %v1341, %v1497
    %v1499 = vpop.f32.mrf.mxu0
    %v1500 = vadd.f32 %v1341, %v1499
    %1501 = vdwg.mxu0
    %1502 = vmatpush.bf16.msra.mxu0 %v1449
    %1503 = vmatpush.bf16.msra.mxu0 %v1446
    %1504 = vmatpush.bf16.msra.mxu0 %v1443
    %1505 = vmatpush.bf16.msra.mxu0 %v1440
    %1506 = vmatpush.bf16.msra.mxu0 %v1437
    %1507 = vmatpush.bf16.msra.mxu0 %v1434
    %1508 = vmatpush.bf16.msra.mxu0 %v1431
    %1509 = vmatpush.bf16.msra.mxu0 %v1428
    %1510 = vmatmul.bf16.gmra.mxu0 %v1338
    %v1511 = vpop.f32.mrf.mxu0
    %v1512 = vadd.f32 %v1342, %v1511
    %v1513 = vpop.f32.mrf.mxu0
    %v1514 = vadd.f32 %v1342, %v1513
    %1515 = vdwg.mxu0
    %v1516 = vpack.c.bf16 %v1484, %v1484
    %v1517 = vpack.c.bf16 %v1498, %v1498
    %v1518 = vpack.c.bf16 %v1512, %v1512
    %v1520 = vsel %vm494, %v1516, 0
    %v1523 = vsel %vm494, %v1517, 0
    %1525 = vmatpush.bf16.xpose.msra.mxu0 0
    %1526 = vmatpush.bf16.xpose.msra.mxu0 0
    %1527 = vmatpush.bf16.xpose.msra.mxu0 0
    %1528 = vmatpush.bf16.xpose.msra.mxu0 0
    %1529 = vmatpush.bf16.xpose.msra.mxu0 0
    %1530 = vmatpush.bf16.xpose.msra.mxu0 0
    %1531 = vmatpush.bf16.xpose.msra.mxu0 0
    %1532 = vmatpush.bf16.xpose.msra.mxu0 %v1523
    %1533 = vmatmul.bf16.gmra.mxu0 %v1520
    %v1534 = vpop.f32.mrf.mxu0
    %v1535 = vadd.f32 %v207, %v1534
    %v1536 = vpop.f32.mrf.mxu0
    %1537 = vdwg.mxu0
    %v1538 = vsel %vm514, %v1535, -inf
    %1539 = vmax.xlane.f32.xlu0 %v1538
    %v1540 = vpop.xlane.xlu0 %1539
    %v1541 = vsub.f32 %v1535, %v1540
    %v1542 = vmul.f32 %v1541, 1.442695
    %v1543 = vpow.pop %v1542
    %v1544 = vsel %vm514, %v1543, 0.0
    %1545 = vadd.xlane.f32.xlu0 %v1544
    %v1546 = vpop.xlane.xlu0 %1545
    %v1547 = vrcp.pop %v1546
    %v1548 = vmul.f32 %v1543, %v1547
    %v1549 = vpack.c.bf16 %v1548, %v1548
    %v1551 = vsel %vm514, %v1549, 0
    %v1554 = vsel %vm530, %v1518, 0
    %1556 = vmatpush.bf16.msra.mxu0 0
    %1557 = vmatpush.bf16.msra.mxu0 0
    %1558 = vmatpush.bf16.msra.mxu0 0
    %1559 = vmatpush.bf16.msra.mxu0 0
    %1560 = vmatpush.bf16.msra.mxu0 0
    %1561 = vmatpush.bf16.msra.mxu0 0
    %1562 = vmatpush.bf16.msra.mxu0 0
    %1563 = vmatpush.bf16.msra.mxu0 %v1554
    %1564 = vmatmul.bf16.gmra.mxu0 %v1551
    %v1565 = vpop.f32.mrf.mxu0
    %v1566 = vadd.f32 0.0, %v1565
    %v1567 = vpop.f32.mrf.mxu0
    %1568 = vdwg.mxu0
    %v1569 = vpack.c.bf16 %v1566, %v1566
    %1571 = vrot.lane.b32.xlu0 %v1516, 64
    %v1572 = vpop.permute.xlu0 %1571
    %1574 = vrot.lane.b32.xlu0 %v1517, 64
    %v1575 = vpop.permute.xlu0 %1574
    %v1577 = vsel %vm494, %v1572, 0
    %v1580 = vsel %vm494, %v1575, 0
    %1582 = vmatpush.bf16.xpose.msra.mxu0 0
    %1583 = vmatpush.bf16.xpose.msra.mxu0 0
    %1584 = vmatpush.bf16.xpose.msra.mxu0 0
    %1585 = vmatpush.bf16.xpose.msra.mxu0 0
    %1586 = vmatpush.bf16.xpose.msra.mxu0 0
    %1587 = vmatpush.bf16.xpose.msra.mxu0 0
    %1588 = vmatpush.bf16.xpose.msra.mxu0 0
    %1589 = vmatpush.bf16.xpose.msra.mxu0 %v1580
    %1590 = vmatmul.bf16.gmra.mxu0 %v1577
    %v1591 = vpop.f32.mrf.mxu0
    %v1592 = vadd.f32 %v207, %v1591
    %v1593 = vpop.f32.mrf.mxu0
    %1594 = vdwg.mxu0
    %v1595 = vsel %vm514, %v1592, -inf
    %1596 = vmax.xlane.f32.xlu0 %v1595
    %v1597 = vpop.xlane.xlu0 %1596
    %v1598 = vsub.f32 %v1592, %v1597
    %v1599 = vmul.f32 %v1598, 1.442695
    %v1600 = vpow.pop %v1599
    %v1601 = vsel %vm514, %v1600, 0.0
    %1602 = vadd.xlane.f32.xlu0 %v1601
    %v1603 = vpop.xlane.xlu0 %1602
    %v1604 = vrcp.pop %v1603
    %v1605 = vmul.f32 %v1600, %v1604
    %v1606 = vpack.c.bf16 %v1605, %v1605
    %1608 = vrot.lane.b32.xlu0 %v1518, 64
    %v1609 = vpop.permute.xlu0 %1608
    %v1611 = vsel %vm514, %v1606, 0
    %v1614 = vsel %vm530, %v1609, 0
    %1616 = vmatpush.bf16.msra.mxu0 0
    %1617 = vmatpush.bf16.msra.mxu0 0
    %1618 = vmatpush.bf16.msra.mxu0 0
    %1619 = vmatpush.bf16.msra.mxu0 0
    %1620 = vmatpush.bf16.msra.mxu0 0
    %1621 = vmatpush.bf16.msra.mxu0 0
    %1622 = vmatpush.bf16.msra.mxu0 0
    %1623 = vmatpush.bf16.msra.mxu0 %v1614
    %1624 = vmatmul.bf16.gmra.mxu0 %v1611
    %v1625 = vpop.f32.mrf.mxu0
    %v1626 = vadd.f32 0.0, %v1625
    %v1627 = vpop.f32.mrf.mxu0
    %1628 = vdwg.mxu0
    %v1629 = vpack.c.bf16 %v1626, %v1626
    %v1638 = vunpack.c.l.b16 %v1266
    %v1639 = vunpack.c.l.b16 %v1267
    %v1640 = vunpack.c.l.b16 %v1268
    %v1641 = vunpack.c.l.b16 %v1269
    %v1642 = vunpack.c.l.b16 %v1270
    %v1643 = vunpack.c.l.b16 %v1271
    %v1644 = vunpack.c.l.b16 %v1272
    %v1645 = vunpack.c.l.b16 %v1273
    %v1646 = vpack.c.b16 %v1639, %v1638
    %v1647 = vpack.c.b16 %v1641, %v1640
    %v1648 = vpack.c.b16 %v1643, %v1642
    %v1649 = vpack.c.b16 %v1645, %v1644
    %v1655 = vsel %vm494, %v1629, 0
    %1657 = vmatpush.bf16.msra.mxu0 0
    %1658 = vmatpush.bf16.msra.mxu0 0
    %1659 = vmatpush.bf16.msra.mxu0 0
    %1660 = vmatpush.bf16.msra.mxu0 0
    %1661 = vmatpush.bf16.msra.mxu0 %v1649
    %1662 = vmatpush.bf16.msra.mxu0 %v1648
    %1663 = vmatpush.bf16.msra.mxu0 %v1647
    %1664 = vmatpush.bf16.msra.mxu0 %v1646
    %1665 = vmatmul.bf16.gmra.mxu0 %v1655
    %v1666 = vpop.f32.mrf.mxu0
    %v1667 = vadd.f32 0.0, %v1666
    %v1668 = vpop.f32.mrf.mxu0
    %1669 = vdwg.mxu0
    %v1678 = vunpack.c.l.b16 %v1258
    %v1679 = vunpack.c.l.b16 %v1259
    %v1680 = vunpack.c.l.b16 %v1260
    %v1681 = vunpack.c.l.b16 %v1261
    %v1682 = vunpack.c.l.b16 %v1262
    %v1683 = vunpack.c.l.b16 %v1263
    %v1684 = vunpack.c.l.b16 %v1264
    %v1685 = vunpack.c.l.b16 %v1265
    %v1686 = vpack.c.b16 %v1679, %v1678
    %v1687 = vpack.c.b16 %v1681, %v1680
    %v1688 = vpack.c.b16 %v1683, %v1682
    %v1689 = vpack.c.b16 %v1685, %v1684
    %v1695 = vsel %vm494, %v1569, 0
    %1697 = vmatpush.bf16.msra.mxu0 0
    %1698 = vmatpush.bf16.msra.mxu0 0
    %1699 = vmatpush.bf16.msra.mxu0 0
    %1700 = vmatpush.bf16.msra.mxu0 0
    %1701 = vmatpush.bf16.msra.mxu0 %v1689
    %1702 = vmatpush.bf16.msra.mxu0 %v1688
    %1703 = vmatpush.bf16.msra.mxu0 %v1687
    %1704 = vmatpush.bf16.msra.mxu0 %v1686
    %1705 = vmatmul.bf16.gmra.mxu0 %v1695
    %v1706 = vpop.f32.mrf.mxu0
    %v1707 = vadd.f32 %v1667, %v1706
    %v1708 = vpop.f32.mrf.mxu0
    %1709 = vdwg.mxu0
    %v1710 = vpack.c.bf16 %v1486, %v1486
    %v1711 = vpack.c.bf16 %v1500, %v1500
    %v1712 = vpack.c.bf16 %v1514, %v1514
    %v1714 = vsel %vm494, %v1710, 0
    %v1717 = vsel %vm494, %v1711, 0
    %1719 = vmatpush.bf16.xpose.msra.mxu0 0
    %1720 = vmatpush.bf16.xpose.msra.mxu0 0
    %1721 = vmatpush.bf16.xpose.msra.mxu0 0
    %1722 = vmatpush.bf16.xpose.msra.mxu0 0
    %1723 = vmatpush.bf16.xpose.msra.mxu0 0
    %1724 = vmatpush.bf16.xpose.msra.mxu0 0
    %1725 = vmatpush.bf16.xpose.msra.mxu0 0
    %1726 = vmatpush.bf16.xpose.msra.mxu0 %v1717
    %1727 = vmatmul.bf16.gmra.mxu0 %v1714
    %v1728 = vpop.f32.mrf.mxu0
    %v1729 = vadd.f32 %v208, %v1728
    %v1730 = vpop.f32.mrf.mxu0
    %1731 = vdwg.mxu0
    %v1732 = vsel %vm514, %v1729, -inf
    %1733 = vmax.xlane.f32.xlu0 %v1732
    %v1734 = vpop.xlane.xlu0 %1733
    %v1735 = vsub.f32 %v1729, %v1734
    %v1736 = vmul.f32 %v1735, 1.442695
    %v1737 = vpow.pop %v1736
    %v1738 = vsel %vm514, %v1737, 0.0
    %1739 = vadd.xlane.f32.xlu0 %v1738
    %v1740 = vpop.xlane.xlu0 %1739
    %v1741 = vrcp.pop %v1740
    %v1742 = vmul.f32 %v1737, %v1741
    %v1743 = vpack.c.bf16 %v1742, %v1742
    %v1745 = vsel %vm514, %v1743, 0
    %v1748 = vsel %vm530, %v1712, 0
    %1750 = vmatpush.bf16.msra.mxu0 0
    %1751 = vmatpush.bf16.msra.mxu0 0
    %1752 = vmatpush.bf16.msra.mxu0 0
    %1753 = vmatpush.bf16.msra.mxu0 0
    %1754 = vmatpush.bf16.msra.mxu0 0
    %1755 = vmatpush.bf16.msra.mxu0 0
    %1756 = vmatpush.bf16.msra.mxu0 0
    %1757 = vmatpush.bf16.msra.mxu0 %v1748
    %1758 = vmatmul.bf16.gmra.mxu0 %v1745
    %v1759 = vpop.f32.mrf.mxu0
    %v1760 = vadd.f32 0.0, %v1759
    %v1761 = vpop.f32.mrf.mxu0
    %1762 = vdwg.mxu0
    %v1763 = vpack.c.bf16 %v1760, %v1760
    %1765 = vrot.lane.b32.xlu0 %v1710, 64
    %v1766 = vpop.permute.xlu0 %1765
    %1768 = vrot.lane.b32.xlu0 %v1711, 64
    %v1769 = vpop.permute.xlu0 %1768
    %v1771 = vsel %vm494, %v1766, 0
    %v1774 = vsel %vm494, %v1769, 0
    %1776 = vmatpush.bf16.xpose.msra.mxu0 0
    %1777 = vmatpush.bf16.xpose.msra.mxu0 0
    %1778 = vmatpush.bf16.xpose.msra.mxu0 0
    %1779 = vmatpush.bf16.xpose.msra.mxu0 0
    %1780 = vmatpush.bf16.xpose.msra.mxu0 0
    %1781 = vmatpush.bf16.xpose.msra.mxu0 0
    %1782 = vmatpush.bf16.xpose.msra.mxu0 0
    %1783 = vmatpush.bf16.xpose.msra.mxu0 %v1774
    %1784 = vmatmul.bf16.gmra.mxu0 %v1771
    %v1785 = vpop.f32.mrf.mxu0
    %v1786 = vadd.f32 %v208, %v1785
    %v1787 = vpop.f32.mrf.mxu0
    %1788 = vdwg.mxu0
    %v1789 = vsel %vm514, %v1786, -inf
    %1790 = vmax.xlane.f32.xlu0 %v1789
    %v1791 = vpop.xlane.xlu0 %1790
    %v1792 = vsub.f32 %v1786, %v1791
    %v1793 = vmul.f32 %v1792, 1.442695
    %v1794 = vpow.pop %v1793
    %v1795 = vsel %vm514, %v1794, 0.0
    %1796 = vadd.xlane.f32.xlu0 %v1795
    %v1797 = vpop.xlane.xlu0 %1796
    %v1798 = vrcp.pop %v1797
    %v1799 = vmul.f32 %v1794, %v1798
    %v1800 = vpack.c.bf16 %v1799, %v1799
    %1802 = vrot.lane.b32.xlu0 %v1712, 64
    %v1803 = vpop.permute.xlu0 %1802
    %v1805 = vsel %vm514, %v1800, 0
    %v1808 = vsel %vm530, %v1803, 0
    %1810 = vmatpush.bf16.msra.mxu0 0
    %1811 = vmatpush.bf16.msra.mxu0 0
    %1812 = vmatpush.bf16.msra.mxu0 0
    %1813 = vmatpush.bf16.msra.mxu0 0
    %1814 = vmatpush.bf16.msra.mxu0 0
    %1815 = vmatpush.bf16.msra.mxu0 0
    %1816 = vmatpush.bf16.msra.mxu0 0
    %1817 = vmatpush.bf16.msra.mxu0 %v1808
    %1818 = vmatmul.bf16.gmra.mxu0 %v1805
    %v1819 = vpop.f32.mrf.mxu0
    %v1820 = vadd.f32 0.0, %v1819
    %v1821 = vpop.f32.mrf.mxu0
    %1822 = vdwg.mxu0
    %v1823 = vpack.c.bf16 %v1820, %v1820
    %v1825 = vsel %vm494, %v1823, 0
    %1827 = vmatpush.bf16.msra.mxu0 0
    %1828 = vmatpush.bf16.msra.mxu0 0
    %1829 = vmatpush.bf16.msra.mxu0 0
    %1830 = vmatpush.bf16.msra.mxu0 0
    %1831 = vmatpush.bf16.msra.mxu0 %v1649
    %1832 = vmatpush.bf16.msra.mxu0 %v1648
    %1833 = vmatpush.bf16.msra.mxu0 %v1647
    %1834 = vmatpush.bf16.msra.mxu0 %v1646
    %1835 = vmatmul.bf16.gmra.mxu0 %v1825
    %v1836 = vpop.f32.mrf.mxu0
    %v1837 = vadd.f32 0.0, %v1836
    %v1838 = vpop.f32.mrf.mxu0
    %1839 = vdwg.mxu0
    %v1841 = vsel %vm494, %v1763, 0
    %1843 = vmatpush.bf16.msra.mxu0 0
    %1844 = vmatpush.bf16.msra.mxu0 0
    %1845 = vmatpush.bf16.msra.mxu0 0
    %1846 = vmatpush.bf16.msra.mxu0 0
    %1847 = vmatpush.bf16.msra.mxu0 %v1689
    %1848 = vmatpush.bf16.msra.mxu0 %v1688
    %1849 = vmatpush.bf16.msra.mxu0 %v1687
    %1850 = vmatpush.bf16.msra.mxu0 %v1686
    %1851 = vmatmul.bf16.gmra.mxu0 %v1841
    %v1852 = vpop.f32.mrf.mxu0
    %v1853 = vadd.f32 %v1837, %v1852
    %v1854 = vpop.f32.mrf.mxu0
    %1855 = vdwg.mxu0
    %v1857 = vperm.slane %v1275, 0
    %v1859 = vadd.f32 %v1707, %v1857
    %v1860 = vadd.f32 %v1853, %v1857
    %v1861 = vadd.f32 %v1859, %v1220
    %v1862 = vadd.f32 %v1860, %v1221
    %1863 = vadd.xlane.f32.xlu0 %v1861
    %v1864 = vpop.xlane.xlu0 %1863
    %1865 = vadd.xlane.f32.xlu0 %v1862
    %v1866 = vpop.xlane.xlu0 %1865
    %v1867 = vmul.f32 %v1864, %v159
    %v1868 = vmul.f32 %v1866, %v159
    %v1869 = vsub.f32 %v1861, %v1867
    %v1870 = vsub.f32 %v1862, %v1868
    %v1871 = vmul.f32 %v1869, %v1869
    %v1872 = vmul.f32 %v1870, %v1870
    %1873 = vadd.xlane.f32.xlu0 %v1871
    %v1874 = vpop.xlane.xlu0 %1873
    %1875 = vadd.xlane.f32.xlu0 %v1872
    %v1876 = vpop.xlane.xlu0 %1875
    %v1877 = vmul.f32 %v1874, %v159
    %v1878 = vmul.f32 %v1876, %v159
    %v1879 = vadd.f32 %v1877, 1e-12
    %v1880 = vadd.f32 %v1878, 1e-12
    %v1881 = vrsqrt.pop %v1879
    %v1882 = vmul.f32 %v1881, %v1879
    %v1883 = vmul.f32 %v1882, %v1881
    %v1884 = vmul.f32 0.5, %v1883
    %v1885 = vsub.f32 1.5, %v1884
    %v1886 = vmul.f32 %v1881, %v1885
    %vm1887 = vweird.f32 %v1879
    %vm1888 = vweird.f32 %v1881
    %vm1889 = vmor %vm1887, %vm1888
    %v1890 = vsel %vm1889, %v1881, %v1886
    %v1891 = vrsqrt.pop %v1880
    %v1892 = vmul.f32 %v1891, %v1880
    %v1893 = vmul.f32 %v1892, %v1891
    %v1894 = vmul.f32 0.5, %v1893
    %v1895 = vsub.f32 1.5, %v1894
    %v1896 = vmul.f32 %v1891, %v1895
    %vm1897 = vweird.f32 %v1880
    %vm1898 = vweird.f32 %v1891
    %vm1899 = vmor %vm1897, %vm1898
    %v1900 = vsel %vm1899, %v1891, %v1896
    %v1901 = vmul.f32 %v1869, %v1890
    %v1902 = vmul.f32 %v1870, %v1900
    %v1904 = vperm.slane %v1277, 0
    %v1906 = vmul.f32 %v1901, %v1904
    %v1907 = vmul.f32 %v1902, %v1904
    %v1909 = vperm.slane %v1279, 0
    %v1911 = vadd.f32 %v1906, %v1909
    %v1912 = vadd.f32 %v1907, %v1909
    %v1913 = vpack.c.bf16 %v1912, %v1911
    %v1915 = vperm.slane %v1298, 0
    %v1916 = vperm.slane %v1298, 1
    %v1935 = vunpack.c.l.b16 %v1281
    %v1936 = vunpack.c.h.b16 %v1281
    %v1937 = vunpack.c.l.b16 %v1282
    %v1938 = vunpack.c.h.b16 %v1282
    %v1939 = vunpack.c.l.b16 %v1283
    %v1940 = vunpack.c.h.b16 %v1283
    %v1941 = vunpack.c.l.b16 %v1284
    %v1942 = vunpack.c.h.b16 %v1284
    %v1943 = vunpack.c.l.b16 %v1285
    %v1944 = vunpack.c.h.b16 %v1285
    %v1945 = vunpack.c.l.b16 %v1286
    %v1946 = vunpack.c.h.b16 %v1286
    %v1947 = vunpack.c.l.b16 %v1287
    %v1948 = vunpack.c.h.b16 %v1287
    %v1949 = vunpack.c.l.b16 %v1288
    %v1950 = vunpack.c.h.b16 %v1288
    %v1951 = vunpack.c.l.b16 %v1289
    %v1952 = vunpack.c.h.b16 %v1289
    %v1953 = vunpack.c.l.b16 %v1290
    %v1954 = vunpack.c.h.b16 %v1290
    %v1955 = vunpack.c.l.b16 %v1291
    %v1956 = vunpack.c.h.b16 %v1291
    %v1957 = vunpack.c.l.b16 %v1292
    %v1958 = vunpack.c.h.b16 %v1292
    %v1959 = vunpack.c.l.b16 %v1293
    %v1960 = vunpack.c.h.b16 %v1293
    %v1961 = vunpack.c.l.b16 %v1294
    %v1962 = vunpack.c.h.b16 %v1294
    %v1963 = vunpack.c.l.b16 %v1295
    %v1964 = vunpack.c.h.b16 %v1295
    %v1965 = vunpack.c.l.b16 %v1296
    %v1966 = vunpack.c.h.b16 %v1296
    %v1967 = vpack.c.b16 %v1937, %v1935
    %v1968 = vpack.c.b16 %v1938, %v1936
    %v1969 = vpack.c.b16 %v1941, %v1939
    %v1970 = vpack.c.b16 %v1942, %v1940
    %v1971 = vpack.c.b16 %v1945, %v1943
    %v1972 = vpack.c.b16 %v1946, %v1944
    %v1973 = vpack.c.b16 %v1949, %v1947
    %v1974 = vpack.c.b16 %v1950, %v1948
    %v1975 = vpack.c.b16 %v1953, %v1951
    %v1976 = vpack.c.b16 %v1954, %v1952
    %v1977 = vpack.c.b16 %v1957, %v1955
    %v1978 = vpack.c.b16 %v1958, %v1956
    %v1979 = vpack.c.b16 %v1961, %v1959
    %v1980 = vpack.c.b16 %v1962, %v1960
    %v1981 = vpack.c.b16 %v1965, %v1963
    %v1982 = vpack.c.b16 %v1966, %v1964
    %1999 = vmatpush.bf16.msra.mxu0 %v1981
    %2000 = vmatpush.bf16.msra.mxu0 %v1979
    %2001 = vmatpush.bf16.msra.mxu0 %v1977
    %2002 = vmatpush.bf16.msra.mxu0 %v1975
    %2003 = vmatpush.bf16.msra.mxu0 %v1973
    %2004 = vmatpush.bf16.msra.mxu0 %v1971
    %2005 = vmatpush.bf16.msra.mxu0 %v1969
    %2006 = vmatpush.bf16.msra.mxu0 %v1967
    %2007 = vmatmul.bf16.gmra.mxu0 %v1913
    %v2008 = vpop.f32.mrf.mxu0
    %v2009 = vadd.f32 %v1915, %v2008
    %v2010 = vpop.f32.mrf.mxu0
    %v2011 = vadd.f32 %v1915, %v2010
    %2012 = vdwg.mxu0
    %2013 = vmatpush.bf16.msra.mxu0 %v1982
    %2014 = vmatpush.bf16.msra.mxu0 %v1980
    %2015 = vmatpush.bf16.msra.mxu0 %v1978
    %2016 = vmatpush.bf16.msra.mxu0 %v1976
    %2017 = vmatpush.bf16.msra.mxu0 %v1974
    %2018 = vmatpush.bf16.msra.mxu0 %v1972
    %2019 = vmatpush.bf16.msra.mxu0 %v1970
    %2020 = vmatpush.bf16.msra.mxu0 %v1968
    %2021 = vmatmul.bf16.gmra.mxu0 %v1913
    %v2022 = vpop.f32.mrf.mxu0
    %v2023 = vadd.f32 %v1916, %v2022
    %v2024 = vpop.f32.mrf.mxu0
    %v2025 = vadd.f32 %v1916, %v2024
    %2026 = vdwg.mxu0
    %v2027 = vmul.f32 %v2009, 0.5
    %v2028 = vmul.f32 %v2023, 0.5
    %v2029 = vmul.f32 %v2011, 0.5
    %v2030 = vmul.f32 %v2025, 0.5
    %v2031 = vmul.f32 %v2009, 0.044715
    %v2032 = vmul.f32 %v2023, 0.044715
    %v2033 = vmul.f32 %v2011, 0.044715
    %v2034 = vmul.f32 %v2025, 0.044715
    %v2035 = vmul.f32 %v2031, %v2009
    %v2036 = vmul.f32 %v2032, %v2023
    %v2037 = vmul.f32 %v2033, %v2011
    %v2038 = vmul.f32 %v2034, %v2025
    %v2039 = vmul.f32 %v2035, %v2009
    %v2040 = vmul.f32 %v2036, %v2023
    %v2041 = vmul.f32 %v2037, %v2011
    %v2042 = vmul.f32 %v2038, %v2025
    %v2043 = vadd.f32 %v2009, %v2039
    %v2044 = vadd.f32 %v2023, %v2040
    %v2045 = vadd.f32 %v2011, %v2041
    %v2046 = vadd.f32 %v2025, %v2042
    %v2047 = vmul.f32 %v2043, 0.7978846
    %v2048 = vmul.f32 %v2044, 0.7978846
    %v2049 = vmul.f32 %v2045, 0.7978846
    %v2050 = vmul.f32 %v2046, 0.7978846
    %v2051 = vtanh.pop %v2047
    %v2052 = vtanh.pop %v2048
    %v2053 = vtanh.pop %v2049
    %v2054 = vtanh.pop %v2050
    %v2055 = vadd.f32 %v2051, 1.0
    %v2056 = vadd.f32 %v2052, 1.0
    %v2057 = vadd.f32 %v2053, 1.0
    %v2058 = vadd.f32 %v2054, 1.0
    %v2059 = vmul.f32 %v2027, %v2055
    %v2060 = vmul.f32 %v2028, %v2056
    %v2061 = vmul.f32 %v2029, %v2057
    %v2062 = vmul.f32 %v2030, %v2058
    %v2063 = vpack.c.bf16 %v2061, %v2059
    %v2064 = vpack.c.bf16 %v2062, %v2060
    %v2066 = vperm.slane %v1333, 0
    %v2100 = vunpack.c.l.b16 %v1300
    %v2101 = vunpack.c.l.b16 %v1301
    %v2102 = vunpack.c.l.b16 %v1302
    %v2103 = vunpack.c.l.b16 %v1303
    %v2104 = vunpack.c.l.b16 %v1304
    %v2105 = vunpack.c.l.b16 %v1305
    %v2106 = vunpack.c.l.b16 %v1306
    %v2107 = vunpack.c.l.b16 %v1307
    %v2108 = vunpack.c.l.b16 %v1308
    %v2109 = vunpack.c.l.b16 %v1309
    %v2110 = vunpack.c.l.b16 %v1310
    %v2111 = vunpack.c.l.b16 %v1311
    %v2112 = vunpack.c.l.b16 %v1312
    %v2113 = vunpack.c.l.b16 %v1313
    %v2114 = vunpack.c.l.b16 %v1314
    %v2115 = vunpack.c.l.b16 %v1315
    %v2116 = vunpack.c.l.b16 %v1316
    %v2117 = vunpack.c.l.b16 %v1317
    %v2118 = vunpack.c.l.b16 %v1318
    %v2119 = vunpack.c.l.b16 %v1319
    %v2120 = vunpack.c.l.b16 %v1320
    %v2121 = vunpack.c.l.b16 %v1321
    %v2122 = vunpack.c.l.b16 %v1322
    %v2123 = vunpack.c.l.b16 %v1323
    %v2124 = vunpack.c.l.b16 %v1324
    %v2125 = vunpack.c.l.b16 %v1325
    %v2126 = vunpack.c.l.b16 %v1326
    %v2127 = vunpack.c.l.b16 %v1327
    %v2128 = vunpack.c.l.b16 %v1328
    %v2129 = vunpack.c.l.b16 %v1329
    %v2130 = vunpack.c.l.b16 %v1330
    %v2131 = vunpack.c.l.b16 %v1331
    %v2132 = vpack.c.b16 %v2101, %v2100
    %v2133 = vpack.c.b16 %v2103, %v2102
    %v2134 = vpack.c.b16 %v2105, %v2104
    %v2135 = vpack.c.b16 %v2107, %v2106
    %v2136 = vpack.c.b16 %v2109, %v2108
    %v2137 = vpack.c.b16 %v2111, %v2110
    %v2138 = vpack.c.b16 %v2113, %v2112
    %v2139 = vpack.c.b16 %v2115, %v2114
    %v2140 = vpack.c.b16 %v2117, %v2116
    %v2141 = vpack.c.b16 %v2119, %v2118
    %v2142 = vpack.c.b16 %v2121, %v2120
    %v2143 = vpack.c.b16 %v2123, %v2122
    %v2144 = vpack.c.b16 %v2125, %v2124
    %v2145 = vpack.c.b16 %v2127, %v2126
    %v2146 = vpack.c.b16 %v2129, %v2128
    %v2147 = vpack.c.b16 %v2131, %v2130
    %2164 = vmatpush.bf16.msra.mxu0 %v2139
    %2165 = vmatpush.bf16.msra.mxu0 %v2138
    %2166 = vmatpush.bf16.msra.mxu0 %v2137
    %2167 = vmatpush.bf16.msra.mxu0 %v2136
    %2168 = vmatpush.bf16.msra.mxu0 %v2135
    %2169 = vmatpush.bf16.msra.mxu0 %v2134
    %2170 = vmatpush.bf16.msra.mxu0 %v2133
    %2171 = vmatpush.bf16.msra.mxu0 %v2132
    %2172 = vmatmul.bf16.gmra.mxu0 %v2063
    %v2173 = vpop.f32.mrf.mxu0
    %v2174 = vadd.f32 %v2066, %v2173
    %v2175 = vpop.f32.mrf.mxu0
    %v2176 = vadd.f32 %v2066, %v2175
    %2177 = vdwg.mxu0
    %2178 = vmatpush.bf16.msra.mxu0 %v2147
    %2179 = vmatpush.bf16.msra.mxu0 %v2146
    %2180 = vmatpush.bf16.msra.mxu0 %v2145
    %2181 = vmatpush.bf16.msra.mxu0 %v2144
    %2182 = vmatpush.bf16.msra.mxu0 %v2143
    %2183 = vmatpush.bf16.msra.mxu0 %v2142
    %2184 = vmatpush.bf16.msra.mxu0 %v2141
    %2185 = vmatpush.bf16.msra.mxu0 %v2140
    %2186 = vmatmul.bf16.gmra.mxu0 %v2064
    %v2187 = vpop.f32.mrf.mxu0
    %v2188 = vadd.f32 %v2174, %v2187
    %v2189 = vpop.f32.mrf.mxu0
    %v2190 = vadd.f32 %v2176, %v2189
    %2191 = vdwg.mxu0
    %v2192 = vadd.f32 %v2188, %v1911
    %v2193 = vadd.f32 %v2190, %v1912
    %2194 = vadd.xlane.f32.xlu0 %v2192
    %v2195 = vpop.xlane.xlu0 %2194
    %2196 = vadd.xlane.f32.xlu0 %v2193
    %v2197 = vpop.xlane.xlu0 %2196
    %v2198 = vmul.f32 %v2195, %v159
    %v2199 = vmul.f32 %v2197, %v159
    %v2200 = vsub.f32 %v2192, %v2198
    %v2201 = vsub.f32 %v2193, %v2199
    %v2202 = vmul.f32 %v2200, %v2200
    %v2203 = vmul.f32 %v2201, %v2201
    %2204 = vadd.xlane.f32.xlu0 %v2202
    %v2205 = vpop.xlane.xlu0 %2204
    %2206 = vadd.xlane.f32.xlu0 %v2203
    %v2207 = vpop.xlane.xlu0 %2206
    %v2208 = vmul.f32 %v2205, %v159
    %v2209 = vmul.f32 %v2207, %v159
    %v2210 = vadd.f32 %v2208, 1e-12
    %v2211 = vadd.f32 %v2209, 1e-12
    %v2212 = vrsqrt.pop %v2210
    %v2213 = vmul.f32 %v2212, %v2210
    %v2214 = vmul.f32 %v2213, %v2212
    %v2215 = vmul.f32 0.5, %v2214
    %v2216 = vsub.f32 1.5, %v2215
    %v2217 = vmul.f32 %v2212, %v2216
    %vm2218 = vweird.f32 %v2210
    %vm2219 = vweird.f32 %v2212
    %vm2220 = vmor %vm2218, %vm2219
    %v2221 = vsel %vm2220, %v2212, %v2217
    %v2222 = vrsqrt.pop %v2211
    %v2223 = vmul.f32 %v2222, %v2211
    %v2224 = vmul.f32 %v2223, %v2222
    %v2225 = vmul.f32 0.5, %v2224
    %v2226 = vsub.f32 1.5, %v2225
    %v2227 = vmul.f32 %v2222, %v2226
    %vm2228 = vweird.f32 %v2211
    %vm2229 = vweird.f32 %v2222
    %vm2230 = vmor %vm2228, %vm2229
    %v2231 = vsel %vm2230, %v2222, %v2227
    %v2232 = vmul.f32 %v2200, %v2221
    %v2233 = vmul.f32 %v2201, %v2231
    %v2235 = vperm.slane %v1335, 0
    %v2237 = vmul.f32 %v2232, %v2235
    %v2238 = vmul.f32 %v2233, %v2235
    %v2240 = vperm.slane %v1337, 0
    %v2242 = vadd.f32 %v2237, %v2240
    %v2243 = vadd.f32 %v2238, %v2240
    %v2245 = vrot.slane %v2243, 7
    %vm2247 = vcmask 1040384
    %v2248 = vsel %vm2247, %v2242, %v2245
    %v2249 = vpack.c.bf16 %v2248, %v2248
    %v2250 = vld [vmem:[#allocation8] sm:$0xf]
    %v2251 = vld [vmem:[#allocation8 + $0x4] sm:$0xf]
    %v2252 = vld [vmem:[#allocation8 + $0x8] sm:$0xf]
    %v2253 = vld [vmem:[#allocation8 + $0xc] sm:$0xf]
    %v2254 = vld [vmem:[#allocation8 + $0x10] sm:$0xf]
    %v2255 = vld [vmem:[#allocation8 + $0x14] sm:$0xf]
    %v2256 = vld [vmem:[#allocation8 + $0x18] sm:$0xf]
    %v2257 = vld [vmem:[#allocation8 + $0x1c] sm:$0xf]
    %v2258 = vld [vmem:[#allocation8 + $0x20] sm:$0xf]
    %v2259 = vld [vmem:[#allocation8 + $0x24] sm:$0xf]
    %v2260 = vld [vmem:[#allocation8 + $0x28] sm:$0xf]
    %v2261 = vld [vmem:[#allocation8 + $0x2c] sm:$0xf]
    %v2262 = vld [vmem:[#allocation8 + $0x30] sm:$0xf]
    %v2263 = vld [vmem:[#allocation8 + $0x34] sm:$0xf]
    %v2264 = vld [vmem:[#allocation8 + $0x38] sm:$0xf]
    %v2265 = vld [vmem:[#allocation8 + $0x3c] sm:$0xf]
    %v2266 = vld [vmem:[%s17] sm:$0x1]
    %v2268 = vperm.slane %v2266, 0
    %v2286 = vunpack.c.l.b16 %v2250
    %v2287 = vunpack.c.l.b16 %v2251
    %v2288 = vunpack.c.l.b16 %v2252
    %v2289 = vunpack.c.l.b16 %v2253
    %v2290 = vunpack.c.l.b16 %v2254
    %v2291 = vunpack.c.l.b16 %v2255
    %v2292 = vunpack.c.l.b16 %v2256
    %v2293 = vunpack.c.l.b16 %v2257
    %v2294 = vunpack.c.l.b16 %v2258
    %v2295 = vunpack.c.l.b16 %v2259
    %v2296 = vunpack.c.l.b16 %v2260
    %v2297 = vunpack.c.l.b16 %v2261
    %v2298 = vunpack.c.l.b16 %v2262
    %v2299 = vunpack.c.l.b16 %v2263
    %v2300 = vunpack.c.l.b16 %v2264
    %v2301 = vunpack.c.l.b16 %v2265
    %v2302 = vpack.c.b16 %v2287, %v2286
    %v2303 = vpack.c.b16 %v2289, %v2288
    %v2304 = vpack.c.b16 %v2291, %v2290
    %v2305 = vpack.c.b16 %v2293, %v2292
    %v2306 = vpack.c.b16 %v2295, %v2294
    %v2307 = vpack.c.b16 %v2297, %v2296
    %v2308 = vpack.c.b16 %v2299, %v2298
    %v2309 = vpack.c.b16 %v2301, %v2300
    %2318 = vmatpush.bf16.msra.mxu0 %v2309
    %2319 = vmatpush.bf16.msra.mxu0 %v2308
    %2320 = vmatpush.bf16.msra.mxu0 %v2307
    %2321 = vmatpush.bf16.msra.mxu0 %v2306
    %2322 = vmatpush.bf16.msra.mxu0 %v2305
    %2323 = vmatpush.bf16.msra.mxu0 %v2304
    %2324 = vmatpush.bf16.msra.mxu0 %v2303
    %2325 = vmatpush.bf16.msra.mxu0 %v2302
    %2326 = vmatmul.bf16.gmra.mxu0 %v2249
    %v2327 = vpop.f32.mrf.mxu0
    %v2328 = vadd.f32 %v2268, %v2327
    %v2329 = vpop.f32.mrf.mxu0
    %2330 = vdwg.mxu0
    %v2331 = vtanh.pop %v2328
    %v2332 = vpack.c.bf16 %v2331, %v2331
    %v2333 = vld [vmem:[#allocation10] sm:$0xf]
    %v2334 = vld [vmem:[#allocation10 + $0x4] sm:$0xf]
    %v2335 = vld [vmem:[#allocation10 + $0x8] sm:$0xf]
    %v2336 = vld [vmem:[#allocation10 + $0xc] sm:$0xf]
    %v2337 = vld [vmem:[#allocation10 + $0x10] sm:$0xf]
    %v2338 = vld [vmem:[#allocation10 + $0x14] sm:$0xf]
    %v2339 = vld [vmem:[#allocation10 + $0x18] sm:$0xf]
    %v2340 = vld [vmem:[#allocation10 + $0x1c] sm:$0xf]
    %v2341 = vld [vmem:[#allocation10 + $0x20] sm:$0xf]
    %v2342 = vld [vmem:[#allocation10 + $0x24] sm:$0xf]
    %v2343 = vld [vmem:[#allocation10 + $0x28] sm:$0xf]
    %v2344 = vld [vmem:[#allocation10 + $0x2c] sm:$0xf]
    %v2345 = vld [vmem:[#allocation10 + $0x30] sm:$0xf]
    %v2346 = vld [vmem:[#allocation10 + $0x34] sm:$0xf]
    %v2347 = vld [vmem:[#allocation10 + $0x38] sm:$0xf]
    %v2348 = vld [vmem:[#allocation10 + $0x3c] sm:$0xf]
    %v2349 = vld [vmem:[%s19] sm:$0x1]
    %v2351 = vperm.slane %v2349, 0
    %v2369 = vunpack.c.l.b16 %v2333
    %v2370 = vunpack.c.l.b16 %v2334
    %v2371 = vunpack.c.l.b16 %v2335
    %v2372 = vunpack.c.l.b16 %v2336
    %v2373 = vunpack.c.l.b16 %v2337
    %v2374 = vunpack.c.l.b16 %v2338
    %v2375 = vunpack.c.l.b16 %v2339
    %v2376 = vunpack.c.l.b16 %v2340
    %v2377 = vunpack.c.l.b16 %v2341
    %v2378 = vunpack.c.l.b16 %v2342
    %v2379 = vunpack.c.l.b16 %v2343
    %v2380 = vunpack.c.l.b16 %v2344
    %v2381 = vunpack.c.l.b16 %v2345
    %v2382 = vunpack.c.l.b16 %v2346
    %v2383 = vunpack.c.l.b16 %v2347
    %v2384 = vunpack.c.l.b16 %v2348
    %v2385 = vpack.c.b16 %v2370, %v2369
    %v2386 = vpack.c.b16 %v2372, %v2371
    %v2387 = vpack.c.b16 %v2374, %v2373
    %v2388 = vpack.c.b16 %v2376, %v2375
    %v2389 = vpack.c.b16 %v2378, %v2377
    %v2390 = vpack.c.b16 %v2380, %v2379
    %v2391 = vpack.c.b16 %v2382, %v2381
    %v2392 = vpack.c.b16 %v2384, %v2383
    %2401 = vmatpush.bf16.msra.mxu0 %v2392
    %2402 = vmatpush.bf16.msra.mxu0 %v2391
    %2403 = vmatpush.bf16.msra.mxu0 %v2390
    %2404 = vmatpush.bf16.msra.mxu0 %v2389
    %2405 = vmatpush.bf16.msra.mxu0 %v2388
    %2406 = vmatpush.bf16.msra.mxu0 %v2387
    %2407 = vmatpush.bf16.msra.mxu0 %v2386
    %2408 = vmatpush.bf16.msra.mxu0 %v2385
    %2409 = vmatmul.bf16.gmra.mxu0 %v2332
    %v2410 = vpop.f32.mrf.mxu0
    %v2411 = vadd.f32 %v2351, %v2410
    %v2412 = vpop.f32.mrf.mxu0
    %2413 = vdwg.mxu0
    %v2414 = vmax.f32 %v2411, 0.0
    %2415 = vst [vmem:[#allocation11] sm:$0x3] %v2414
    // Predicated region
    $region102: #{bert_classifier_forward.1} parent=1 // pred_check
      _
    $region103: #{bert_classifier_forward.1} parent=1 // pred_check_branch
      %2417 = sbr.rel (0) target = $region105
    $region104: #{bert_classifier_forward.1} parent=1 // pred_region
      %2419 = vsyncadd [#allocation4], 0
      %s2421 = sshll.u32 [#allocation11], 4
      %s2422 = int_to_ptr.vmem [resolvable:$true] %s2421
      %s2423 = sshll.u32 %s20, 4
      %s2424 = int_to_ptr.hbm [resolvable:$true] %s2423
      %2426 = dma.vmem_to_hbm [thread:$0]  %s2422, 32, %s2424, [#allocation4]
    $region105: #{bert_classifier_forward.1} parent=1 // pred_fallthru
      _
    // Predicated region
    $region106: #{bert_classifier_forward.1} parent=1 // pred_check
      _
    $region107: #{bert_classifier_forward.1} parent=1 // pred_check_branch
      %2428 = sbr.rel (0) target = $region109
    $region108: #{bert_classifier_forward.1} parent=1 // pred_region
      %2430 = dma.done [#allocation4], 32
    $region109: #{bert_classifier_forward.1} parent=1 // pred_fallthru
      _
    %2431 = vsyncpa [#allocation3], 1
    %2432 = vsyncpa [#allocation6], 1
    %2433 = vsyncpa [#allocation9], 1
    %2434 = vsyncpa [#allocation4], 1

</llo_original>
